<compile_context>
chip_gen: v7x
topology: tpu7x:2x2x1
jax: 0.10.0
libtpu: 0.0.40
codegen_flags: <defaults>
</compile_context>

<pallas_src>
import functools

import jax
import jax.numpy as jnp
import numpy as np
from jax.experimental import pallas as pl
from jax.experimental.pallas import tpu as pltpu


# ----------------------------------------------------------------------------
# Fused Pallas kernel: conv1 -> conv2 -> (conv3 + Wih) -> LSTM -> score
# ----------------------------------------------------------------------------
def _fused_kernel(patches1_ref, q_ref, w1_ref, w2t_ref, wct_ref, hcw_ref,
                  whh_ref, vecs_ref, o_ref, h1_sc, h2_sc,
                  *, k2, s2, k3, hidden, T, B):
    H = hidden
    C1 = w1_ref.shape[1]
    C2 = w2t_ref.shape[2]

    # ---- unpack the packed row-vector operands (one small VMEM slab) ----
    b1  = vecs_ref[0:1, 0:C1]        # conv1 bias
    b2  = vecs_ref[1:2, 0:C2]        # conv2 bias
    bc  = vecs_ref[2:3, 0:4 * H]     # conv3 bias folded through Wih + bih + bhh
    hcb = vecs_ref[3:4, 0:2 * H]     # [h0 bias | c0 bias]
    sw  = vecs_ref[4:5, 0:H]         # score weight
    sb  = vecs_ref[5:6, 0:1]         # score bias

    # ---- conv1: one matmul on precomputed (phase-ordered) im2col patches ----
    h1 = jnp.dot(patches1_ref[...], w1_ref[...],
                 preferred_element_type=jnp.float32) + b1
    h1_sc[...] = jnp.maximum(h1, 0.0)                    # (rows1, C1)

    rows1 = h1_sc.shape[0]                               # B * ceil(Lout1/s2) * s2
    rows2 = h2_sc.shape[0]                               # B * Lout2
    phase_len = rows1 // s2                              # B * n_j

    # ---- conv2 (stride s2) as a sum over kernel taps; stride folded into
    #      the phase-ordered row layout, so every tap is a contiguous slice.
    acc2 = jnp.zeros((rows2, C2), jnp.float32)
    for k in range(k2):
        j, r = k // s2, k % s2
        tap = h1_sc[pl.ds(r * phase_len + B * j, rows2), :]          # (rows2, C1)
        acc2 = acc2 + jnp.dot(tap, w2t_ref[k],
                              preferred_element_type=jnp.float32)
    h2_sc[...] = jnp.maximum(acc2 + b2, 0.0)                         # (rows2, C2)

    # ---- conv3 algebraically fused with the LSTM input projection (no ReLU)
    rows3 = T * B
    accg = jnp.zeros((rows3, 4 * H), jnp.float32)
    for k in range(k3):
        tap = h2_sc[pl.ds(B * k, rows3), :]                          # (rows3, C2)
        accg = accg + jnp.dot(tap, wct_ref[k],
                              preferred_element_type=jnp.float32)
    gx = accg + bc                                       # (T*B, 4H), rows = t*B + b

    # ---- initial hidden/cell: merged h_layer/c_layer projection ----
    hc = jnp.dot(q_ref[...], hcw_ref[...],
                 preferred_element_type=jnp.float32) + hcb           # (B, 2H)
    h = hc[:, 0:H]
    c = hc[:, H:2 * H]

    # ---- LSTM recurrence, fully unrolled (PyTorch gate order i, f, g, o) ----
    for t in range(T):
        g = gx[B * t:B * t + B, :] + jnp.dot(
            h, whh_ref[...], preferred_element_type=jnp.float32)     # (B, 4H)
        i_g = jax.nn.sigmoid(g[:, 0 * H:1 * H])
        f_g = jax.nn.sigmoid(g[:, 1 * H:2 * H])
        g_c = jnp.tanh(g[:, 2 * H:3 * H])
        o_g = jax.nn.sigmoid(g[:, 3 * H:4 * H])
        c = f_g * c + i_g * g_c
        h = o_g * jnp.tanh(c)

    # ---- score head folded into the same kernel (lane reduction, N=1) ----
    o_ref[...] = jnp.sum(h * sw, axis=1, keepdims=True) + sb


# ----------------------------------------------------------------------------
# Wrapper: embedding gather + conv1 im2col + weight folding (plain-JAX glue),
# then a single pallas_call.
# ----------------------------------------------------------------------------
def rnn_score_forward(params, x, q):
    B, Cin, L = x.shape
    C1, _, K1 = params["conv1_w"].shape      # (64, 2, 60)
    C2, _, K2 = params["conv2_w"].shape      # (32, 64, 30)
    C3, _, K3 = params["conv3_w"].shape      # (16, 32, 10)
    H = params["whh"].shape[1]               # 16
    S1, S2 = 6, 3                            # conv strides from the module spec

    Lout1 = (L - K1) // S1 + 1
    Lout2 = (Lout1 - K2) // S2 + 1
    T = Lout2 - K3 + 1

    # Embedding lookup (data-dependent gather) kept as plain-JAX glue.
    q_code = jnp.take(params["emb"], q, axis=0)                      # (B, 32)

    # conv1 im2col with rows ordered (phase r, window j, batch b), p = S2*j + r,
    # so conv2's stride-S2 taps become contiguous row slices inside the kernel.
    n_j = -(-Lout1 // S2)                    # ceil
    rows1 = B * S2 * n_j
    idx = jnp.arange(rows1)
    r = idx // (n_j * B)
    rem = idx % (n_j * B)
    j = rem // B
    b = rem % B
    p = jnp.minimum(S2 * j + r, Lout1 - 1)   # clipped padding rows are never read
    col = p[:, None] * S1 + jnp.arange(K1)[None, :]                  # (rows1, K1)
    patches1 = x[b[:, None, None], jnp.arange(Cin)[None, :, None], col[:, None, :]]
    patches1 = patches1.reshape(rows1, Cin * K1).astype(jnp.float32)

    # Wrapper-side weight preprocessing (zero runtime cost inside the kernel).
    w1_t = params["conv1_w"].reshape(C1, Cin * K1).T                 # (Cin*K1, C1)
    w2_taps = jnp.transpose(params["conv2_w"], (2, 1, 0))            # (K2, C1, C2)
    wih_t = params["wih"].T                                          # (C3, 4H)
    w3_taps = jnp.transpose(params["conv3_w"], (2, 1, 0))            # (K3, C2, C3)
    wc_taps = jnp.einsum("kic,cg->kig", w3_taps, wih_t)              # (K3, C2, 4H)
    b_comb = params["conv3_b"] @ wih_t + params["bih"] + params["bhh"]   # (4H,)
    hc_w_t = jnp.concatenate([params["h_w"].T, params["c_w"].T], axis=1) # (32, 2H)
    hc_b = jnp.concatenate([params["h_b"], params["c_b"]])               # (2H,)
    whh_t = params["whh"].T                                          # (H, 4H)

    # Pack all row-vector operands into a single (8, maxw) slab -> fewer DMAs.
    maxw = max(C1, C2, 4 * H, 2 * H, H, 1)

    def _row(v):
        v = jnp.asarray(v, jnp.float32).reshape(1, -1)
        return jnp.pad(v, ((0, 0), (0, maxw - v.shape[1])))

    vecs = jnp.concatenate([
        _row(params["conv1_b"]),          # row 0: b1
        _row(params["conv2_b"]),          # row 1: b2
        _row(b_comb),                     # row 2: folded LSTM input bias
        _row(hc_b),                       # row 3: [h0_b | c0_b]
        _row(params["score_w"]),          # row 4: score weight
        _row(params["score_b"]),          # row 5: score bias
        jnp.zeros((2, maxw), jnp.float32),
    ], axis=0)                            # (8, maxw) -- sublane-aligned

    kernel = functools.partial(_fused_kernel, k2=K2, s2=S2, k3=K3,
                               hidden=H, T=T, B=B)
    return pl.pallas_call(
        kernel,
        out_shape=jax.ShapeDtypeStruct((B, 1), jnp.float32),
        scratch_shapes=[
            pltpu.VMEM((rows1, C1), jnp.float32),       # conv1 activations
            pltpu.VMEM((B * Lout2, C2), jnp.float32),   # conv2 activations
        ],
    )(patches1, q_code, w1_t, w2_taps, wc_taps, hc_w_t, whh_t, vecs)


# ----------------------------------------------------------------------------
# Pure-JAX reference (for correctness check)
# ----------------------------------------------------------------------------
def reference_forward(params, x, q):
    q_code = params["emb"][q]
    h0 = q_code @ params["h_w"].T + params["h_b"]
    c0 = q_code @ params["c_w"].T + params["c_b"]

    feat = x
    for wk, bk, s, relu in [("conv1_w", "conv1_b", 6, True),
                            ("conv2_w", "conv2_b", 3, True),
                            ("conv3_w", "conv3_b", 1, False)]:
        w, b_ = params[wk], params[bk]
        feat = jax.lax.conv_general_dilated(
            feat, w, (s,), "VALID",
            dimension_numbers=("NCH", "OIH", "NCH")) + b_[None, :, None]
        if relu:
            feat = jnp.maximum(feat, 0.0)
    features = jnp.transpose(feat, (0, 2, 1))          # (B, T, 16)

    def step(carry, x_t):
        h, c = carry
        gates = (x_t @ params["wih"].T + params["bih"]
                 + h @ params["whh"].T + params["bhh"])
        i, f, g, o = jnp.split(gates, 4, axis=-1)
        i, f, o = jax.nn.sigmoid(i), jax.nn.sigmoid(f), jax.nn.sigmoid(o)
        g = jnp.tanh(g)
        c = f * c + i * g
        h = o * jnp.tanh(c)
        return (h, c), None

    (hT, _), _ = jax.lax.scan(step, (h0, c0), jnp.transpose(features, (1, 0, 2)))
    return hT @ params["score_w"].T + params["score_b"]


# ----------------------------------------------------------------------------
# Deterministic parameter init (shapes from RnnScore.__init__)
# ----------------------------------------------------------------------------
def init_params(num_q, key):
    def u(key, shape, fan_in):
        bound = 1.0 / np.sqrt(fan_in)
        return jax.random.uniform(key, shape, jnp.float32, -bound, bound)

    ks = jax.random.split(key, 16)
    return {
        "emb":      jax.random.normal(ks[0], (num_q, 32), jnp.float32),
        "h_w":      u(ks[1], (16, 32), 32),  "h_b": u(ks[2], (16,), 32),
        "c_w":      u(ks[3], (16, 32), 32),  "c_b": u(ks[4], (16,), 32),
        "conv1_w":  u(ks[5], (64, 2, 60), 2 * 60),  "conv1_b": u(ks[6], (64,), 2 * 60),
        "conv2_w":  u(ks[7], (32, 64, 30), 64 * 30), "conv2_b": u(ks[8], (32,), 64 * 30),
        "conv3_w":  u(ks[9], (16, 32, 10), 32 * 10), "conv3_b": u(ks[10], (16,), 32 * 10),
        "wih":      u(ks[11], (64, 16), 16), "whh": u(ks[12], (64, 16), 16),
        "bih":      u(ks[13], (64,), 16),    "bhh": u(ks[14], (64,), 16),
        "score_w":  u(ks[15], (1, 16), 16),  "score_b": jnp.zeros((1,), jnp.float32),
    }


if __name__ == "__main__":
    key = jax.random.PRNGKey(0)
    k_param, k_x, k_q = jax.random.split(key, 3)

    num_q, B, L = 10, 2, 450           # L=450 -> conv chain gives T=4 timesteps
    params = init_params(num_q, k_param)
    x = jax.random.normal(k_x, (B, 2, L), jnp.float32)
    q = jax.random.randint(k_q, (B,), 0, num_q, jnp.int32)

    fwd = jax.jit(rnn_score_forward)
    out = jax.block_until_ready(fwd(params, x, q))
    ref = jax.block_until_ready(reference_forward(params, x, q))

    assert out.shape == (B, 1), out.shape
    np.testing.assert_allclose(np.asarray(out), np.asarray(ref),
                               rtol=1e-3, atol=1e-3)
    print("KERNEL_OK")
</pallas_src>

<mosaic_0001>
module attributes {stable_mosaic.version = 11 : i64} {
  func.func @_fused_kernel(%arg0: memref<132x120xf32, #tpu.memory_space<vmem>>, %arg1: memref<2x32xf32, #tpu.memory_space<vmem>>, %arg2: memref<120x64xf32, #tpu.memory_space<vmem>>, %arg3: memref<30x64x32xf32, #tpu.memory_space<vmem>>, %arg4: memref<10x32x64xf32, #tpu.memory_space<vmem>>, %arg5: memref<32x32xf32, #tpu.memory_space<vmem>>, %arg6: memref<16x64xf32, #tpu.memory_space<vmem>>, %arg7: memref<8x64xf32, #tpu.memory_space<vmem>>, %arg8: memref<2x1xf32, #tpu.memory_space<vmem>>, %arg9: memref<132x64xf32, #tpu.memory_space<vmem>>, %arg10: memref<26x32xf32, #tpu.memory_space<vmem>>) attributes {dimension_semantics = [], scalar_prefetch = 0 : i64, scratch_operands = 2 : i64, tpu.core_type = #tpu.core_type<tc>} {
    %c0 = arith.constant 0 : index
    %c0_0 = arith.constant 0 : index
    %0 = vector.load %arg7[%c0, %c0_0] : memref<8x64xf32, #tpu.memory_space<vmem>>, vector<1x64xf32>
    %c1 = arith.constant 1 : index
    %c0_1 = arith.constant 0 : index
    %1 = vector.load %arg7[%c1, %c0_1] : memref<8x64xf32, #tpu.memory_space<vmem>>, vector<1x32xf32>
    %c2 = arith.constant 2 : index
    %c0_2 = arith.constant 0 : index
    %2 = vector.load %arg7[%c2, %c0_2] : memref<8x64xf32, #tpu.memory_space<vmem>>, vector<1x64xf32>
    %c3 = arith.constant 3 : index
    %c0_3 = arith.constant 0 : index
    %3 = vector.load %arg7[%c3, %c0_3] : memref<8x64xf32, #tpu.memory_space<vmem>>, vector<1x32xf32>
    %c4 = arith.constant 4 : index
    %c0_4 = arith.constant 0 : index
    %4 = vector.load %arg7[%c4, %c0_4] : memref<8x64xf32, #tpu.memory_space<vmem>>, vector<1x16xf32>
    %c5 = arith.constant 5 : index
    %c0_5 = arith.constant 0 : index
    %5 = vector.load %arg7[%c5, %c0_5] : memref<8x64xf32, #tpu.memory_space<vmem>>, vector<1x1xf32>
    %c0_6 = arith.constant 0 : index
    %c0_7 = arith.constant 0 : index
    %6 = vector.load %arg0[%c0_6, %c0_7] : memref<132x120xf32, #tpu.memory_space<vmem>>, vector<132x120xf32>
    %c0_8 = arith.constant 0 : index
    %c0_9 = arith.constant 0 : index
    %7 = vector.load %arg2[%c0_8, %c0_9] : memref<120x64xf32, #tpu.memory_space<vmem>>, vector<120x64xf32>
    %cst = arith.constant dense<0.000000e+00> : vector<132x64xf32>
    %8 = tpu.matmul %6, %7, %cst {dimension_numbers = #tpu.dot_dimension_numbers<[1], [0], [0], [1], [0, 0, 1, 1], [], []>} : vector<132x120xf32>, vector<120x64xf32>, vector<132x64xf32> -> vector<132x64xf32>
    %9 = vector.broadcast %0 : vector<1x64xf32> to vector<132x64xf32>
    %10 = arith.addf %8, %9 : vector<132x64xf32>
    %cst_10 = arith.constant 0.000000e+00 : f32
    %11 = vector.broadcast %cst_10 : f32 to vector<132x64xf32>
    %12 = arith.maximumf %10, %11 : vector<132x64xf32>
    %c0_11 = arith.constant 0 : index
    %c0_12 = arith.constant 0 : index
    %13 = vector.load %arg9[%c0_11, %c0_12] : memref<132x64xf32, #tpu.memory_space<vmem>>, vector<132x64xf32>
    tpu.vector_store %arg9[%c0_11, %c0_12], %12 {strides = array<i32>} : memref<132x64xf32, #tpu.memory_space<vmem>>, vector<132x64xf32>,
    %cst_13 = arith.constant 0.000000e+00 : f32
    %14 = vector.broadcast %cst_13 : f32 to vector<26x32xf32>
    %c0_14 = arith.constant 0 : index
    %c0_15 = arith.constant 0 : index
    %15 = vector.load %arg9[%c0_14, %c0_15] : memref<132x64xf32, #tpu.memory_space<vmem>>, vector<26x64xf32>
    %c0_16 = arith.constant 0 : index
    %c0_17 = arith.constant 0 : index
    %c0_18 = arith.constant 0 : index
    %16 = vector.load %arg3[%c0_16, %c0_17, %c0_18] : memref<30x64x32xf32, #tpu.memory_space<vmem>>, vector<1x64x32xf32>
    %17 = vector.shape_cast %16 : vector<1x64x32xf32> to vector<64x32xf32>
    %cst_19 = arith.constant dense<0.000000e+00> : vector<26x32xf32>
    %18 = tpu.matmul %15, %17, %cst_19 {dimension_numbers = #tpu.dot_dimension_numbers<[1], [0], [0], [1], [0, 0, 1, 1], [], []>} : vector<26x64xf32>, vector<64x32xf32>, vector<26x32xf32> -> vector<26x32xf32>
    %19 = arith.addf %14, %18 : vector<26x32xf32>
    %c44 = arith.constant 44 : index
    %c0_20 = arith.constant 0 : index
    %20 = vector.load %arg9[%c44, %c0_20] : memref<132x64xf32, #tpu.memory_space<vmem>>, vector<26x64xf32>
    %c1_21 = arith.constant 1 : index
    %c0_22 = arith.constant 0 : index
    %c0_23 = arith.constant 0 : index
    %21 = vector.load %arg3[%c1_21, %c0_22, %c0_23] : memref<30x64x32xf32, #tpu.memory_space<vmem>>, vector<1x64x32xf32>
    %22 = vector.shape_cast %21 : vector<1x64x32xf32> to vector<64x32xf32>
    %cst_24 = arith.constant dense<0.000000e+00> : vector<26x32xf32>
    %23 = tpu.matmul %20, %22, %cst_24 {dimension_numbers = #tpu.dot_dimension_numbers<[1], [0], [0], [1], [0, 0, 1, 1], [], []>} : vector<26x64xf32>, vector<64x32xf32>, vector<26x32xf32> -> vector<26x32xf32>
    %24 = arith.addf %19, %23 : vector<26x32xf32>
    %c88 = arith.constant 88 : index
    %c0_25 = arith.constant 0 : index
    %25 = vector.load %arg9[%c88, %c0_25] : memref<132x64xf32, #tpu.memory_space<vmem>>, vector<26x64xf32>
    %c2_26 = arith.constant 2 : index
    %c0_27 = arith.constant 0 : index
    %c0_28 = arith.constant 0 : index
    %26 = vector.load %arg3[%c2_26, %c0_27, %c0_28] : memref<30x64x32xf32, #tpu.memory_space<vmem>>, vector<1x64x32xf32>
    %27 = vector.shape_cast %26 : vector<1x64x32xf32> to vector<64x32xf32>
    %cst_29 = arith.constant dense<0.000000e+00> : vector<26x32xf32>
    %28 = tpu.matmul %25, %27, %cst_29 {dimension_numbers = #tpu.dot_dimension_numbers<[1], [0], [0], [1], [0, 0, 1, 1], [], []>} : vector<26x64xf32>, vector<64x32xf32>, vector<26x32xf32> -> vector<26x32xf32>
    %29 = arith.addf %24, %28 : vector<26x32xf32>
    %c2_30 = arith.constant 2 : index
    %c0_31 = arith.constant 0 : index
    %30 = vector.load %arg9[%c2_30, %c0_31] : memref<132x64xf32, #tpu.memory_space<vmem>>, vector<26x64xf32>
    %c3_32 = arith.constant 3 : index
    %c0_33 = arith.constant 0 : index
    %c0_34 = arith.constant 0 : index
    %31 = vector.load %arg3[%c3_32, %c0_33, %c0_34] : memref<30x64x32xf32, #tpu.memory_space<vmem>>, vector<1x64x32xf32>
    %32 = vector.shape_cast %31 : vector<1x64x32xf32> to vector<64x32xf32>
    %cst_35 = arith.constant dense<0.000000e+00> : vector<26x32xf32>
    %33 = tpu.matmul %30, %32, %cst_35 {dimension_numbers = #tpu.dot_dimension_numbers<[1], [0], [0], [1], [0, 0, 1, 1], [], []>} : vector<26x64xf32>, vector<64x32xf32>, vector<26x32xf32> -> vector<26x32xf32>
    %34 = arith.addf %29, %33 : vector<26x32xf32>
    %c46 = arith.constant 46 : index
    %c0_36 = arith.constant 0 : index
    %35 = vector.load %arg9[%c46, %c0_36] : memref<132x64xf32, #tpu.memory_space<vmem>>, vector<26x64xf32>
    %c4_37 = arith.constant 4 : index
    %c0_38 = arith.constant 0 : index
    %c0_39 = arith.constant 0 : index
    %36 = vector.load %arg3[%c4_37, %c0_38, %c0_39] : memref<30x64x32xf32, #tpu.memory_space<vmem>>, vector<1x64x32xf32>
    %37 = vector.shape_cast %36 : vector<1x64x32xf32> to vector<64x32xf32>
    %cst_40 = arith.constant dense<0.000000e+00> : vector<26x32xf32>
    %38 = tpu.matmul %35, %37, %cst_40 {dimension_numbers = #tpu.dot_dimension_numbers<[1], [0], [0], [1], [0, 0, 1, 1], [], []>} : vector<26x64xf32>, vector<64x32xf32>, vector<26x32xf32> -> vector<26x32xf32>
    %39 = arith.addf %34, %38 : vector<26x32xf32>
    %c90 = arith.constant 90 : index
    %c0_41 = arith.constant 0 : index
    %40 = vector.load %arg9[%c90, %c0_41] : memref<132x64xf32, #tpu.memory_space<vmem>>, vector<26x64xf32>
    %c5_42 = arith.constant 5 : index
    %c0_43 = arith.constant 0 : index
    %c0_44 = arith.constant 0 : index
    %41 = vector.load %arg3[%c5_42, %c0_43, %c0_44] : memref<30x64x32xf32, #tpu.memory_space<vmem>>, vector<1x64x32xf32>
    %42 = vector.shape_cast %41 : vector<1x64x32xf32> to vector<64x32xf32>
    %cst_45 = arith.constant dense<0.000000e+00> : vector<26x32xf32>
    %43 = tpu.matmul %40, %42, %cst_45 {dimension_numbers = #tpu.dot_dimension_numbers<[1], [0], [0], [1], [0, 0, 1, 1], [], []>} : vector<26x64xf32>, vector<64x32xf32>, vector<26x32xf32> -> vector<26x32xf32>
    %44 = arith.addf %39, %43 : vector<26x32xf32>
    %c4_46 = arith.constant 4 : index
    %c0_47 = arith.constant 0 : index
    %45 = vector.load %arg9[%c4_46, %c0_47] : memref<132x64xf32, #tpu.memory_space<vmem>>, vector<26x64xf32>
    %c6 = arith.constant 6 : index
    %c0_48 = arith.constant 0 : index
    %c0_49 = arith.constant 0 : index
    %46 = vector.load %arg3[%c6, %c0_48, %c0_49] : memref<30x64x32xf32, #tpu.memory_space<vmem>>, vector<1x64x32xf32>
    %47 = vector.shape_cast %46 : vector<1x64x32xf32> to vector<64x32xf32>
    %cst_50 = arith.constant dense<0.000000e+00> : vector<26x32xf32>
    %48 = tpu.matmul %45, %47, %cst_50 {dimension_numbers = #tpu.dot_dimension_numbers<[1], [0], [0], [1], [0, 0, 1, 1], [], []>} : vector<26x64xf32>, vector<64x32xf32>, vector<26x32xf32> -> vector<26x32xf32>
    %49 = arith.addf %44, %48 : vector<26x32xf32>
    %c48 = arith.constant 48 : index
    %c0_51 = arith.constant 0 : index
    %50 = vector.load %arg9[%c48, %c0_51] : memref<132x64xf32, #tpu.memory_space<vmem>>, vector<26x64xf32>
    %c7 = arith.constant 7 : index
    %c0_52 = arith.constant 0 : index
    %c0_53 = arith.constant 0 : index
    %51 = vector.load %arg3[%c7, %c0_52, %c0_53] : memref<30x64x32xf32, #tpu.memory_space<vmem>>, vector<1x64x32xf32>
    %52 = vector.shape_cast %51 : vector<1x64x32xf32> to vector<64x32xf32>
    %cst_54 = arith.constant dense<0.000000e+00> : vector<26x32xf32>
    %53 = tpu.matmul %50, %52, %cst_54 {dimension_numbers = #tpu.dot_dimension_numbers<[1], [0], [0], [1], [0, 0, 1, 1], [], []>} : vector<26x64xf32>, vector<64x32xf32>, vector<26x32xf32> -> vector<26x32xf32>
    %54 = arith.addf %49, %53 : vector<26x32xf32>
    %c92 = arith.constant 92 : index
    %c0_55 = arith.constant 0 : index
    %55 = vector.load %arg9[%c92, %c0_55] : memref<132x64xf32, #tpu.memory_space<vmem>>, vector<26x64xf32>
    %c8 = arith.constant 8 : index
    %c0_56 = arith.constant 0 : index
    %c0_57 = arith.constant 0 : index
    %56 = vector.load %arg3[%c8, %c0_56, %c0_57] : memref<30x64x32xf32, #tpu.memory_space<vmem>>, vector<1x64x32xf32>
    %57 = vector.shape_cast %56 : vector<1x64x32xf32> to vector<64x32xf32>
    %cst_58 = arith.constant dense<0.000000e+00> : vector<26x32xf32>
    %58 = tpu.matmul %55, %57, %cst_58 {dimension_numbers = #tpu.dot_dimension_numbers<[1], [0], [0], [1], [0, 0, 1, 1], [], []>} : vector<26x64xf32>, vector<64x32xf32>, vector<26x32xf32> -> vector<26x32xf32>
    %59 = arith.addf %54, %58 : vector<26x32xf32>
    %c6_59 = arith.constant 6 : index
    %c0_60 = arith.constant 0 : index
    %60 = vector.load %arg9[%c6_59, %c0_60] : memref<132x64xf32, #tpu.memory_space<vmem>>, vector<26x64xf32>
    %c9 = arith.constant 9 : index
    %c0_61 = arith.constant 0 : index
    %c0_62 = arith.constant 0 : index
    %61 = vector.load %arg3[%c9, %c0_61, %c0_62] : memref<30x64x32xf32, #tpu.memory_space<vmem>>, vector<1x64x32xf32>
    %62 = vector.shape_cast %61 : vector<1x64x32xf32> to vector<64x32xf32>
    %cst_63 = arith.constant dense<0.000000e+00> : vector<26x32xf32>
    %63 = tpu.matmul %60, %62, %cst_63 {dimension_numbers = #tpu.dot_dimension_numbers<[1], [0], [0], [1], [0, 0, 1, 1], [], []>} : vector<26x64xf32>, vector<64x32xf32>, vector<26x32xf32> -> vector<26x32xf32>
    %64 = arith.addf %59, %63 : vector<26x32xf32>
    %c50 = arith.constant 50 : index
    %c0_64 = arith.constant 0 : index
    %65 = vector.load %arg9[%c50, %c0_64] : memref<132x64xf32, #tpu.memory_space<vmem>>, vector<26x64xf32>
    %c10 = arith.constant 10 : index
    %c0_65 = arith.constant 0 : index
    %c0_66 = arith.constant 0 : index
    %66 = vector.load %arg3[%c10, %c0_65, %c0_66] : memref<30x64x32xf32, #tpu.memory_space<vmem>>, vector<1x64x32xf32>
    %67 = vector.shape_cast %66 : vector<1x64x32xf32> to vector<64x32xf32>
    %cst_67 = arith.constant dense<0.000000e+00> : vector<26x32xf32>
    %68 = tpu.matmul %65, %67, %cst_67 {dimension_numbers = #tpu.dot_dimension_numbers<[1], [0], [0], [1], [0, 0, 1, 1], [], []>} : vector<26x64xf32>, vector<64x32xf32>, vector<26x32xf32> -> vector<26x32xf32>
    %69 = arith.addf %64, %68 : vector<26x32xf32>
    %c94 = arith.constant 94 : index
    %c0_68 = arith.constant 0 : index
    %70 = vector.load %arg9[%c94, %c0_68] : memref<132x64xf32, #tpu.memory_space<vmem>>, vector<26x64xf32>
    %c11 = arith.constant 11 : index
    %c0_69 = arith.constant 0 : index
    %c0_70 = arith.constant 0 : index
    %71 = vector.load %arg3[%c11, %c0_69, %c0_70] : memref<30x64x32xf32, #tpu.memory_space<vmem>>, vector<1x64x32xf32>
    %72 = vector.shape_cast %71 : vector<1x64x32xf32> to vector<64x32xf32>
    %cst_71 = arith.constant dense<0.000000e+00> : vector<26x32xf32>
    %73 = tpu.matmul %70, %72, %cst_71 {dimension_numbers = #tpu.dot_dimension_numbers<[1], [0], [0], [1], [0, 0, 1, 1], [], []>} : vector<26x64xf32>, vector<64x32xf32>, vector<26x32xf32> -> vector<26x32xf32>
    %74 = arith.addf %69, %73 : vector<26x32xf32>
    %c8_72 = arith.constant 8 : index
    %c0_73 = arith.constant 0 : index
    %75 = vector.load %arg9[%c8_72, %c0_73] : memref<132x64xf32, #tpu.memory_space<vmem>>, vector<26x64xf32>
    %c12 = arith.constant 12 : index
    %c0_74 = arith.constant 0 : index
    %c0_75 = arith.constant 0 : index
    %76 = vector.load %arg3[%c12, %c0_74, %c0_75] : memref<30x64x32xf32, #tpu.memory_space<vmem>>, vector<1x64x32xf32>
    %77 = vector.shape_cast %76 : vector<1x64x32xf32> to vector<64x32xf32>
    %cst_76 = arith.constant dense<0.000000e+00> : vector<26x32xf32>
    %78 = tpu.matmul %75, %77, %cst_76 {dimension_numbers = #tpu.dot_dimension_numbers<[1], [0], [0], [1], [0, 0, 1, 1], [], []>} : vector<26x64xf32>, vector<64x32xf32>, vector<26x32xf32> -> vector<26x32xf32>
    %79 = arith.addf %74, %78 : vector<26x32xf32>
    %c52 = arith.constant 52 : index
    %c0_77 = arith.constant 0 : index
    %80 = vector.load %arg9[%c52, %c0_77] : memref<132x64xf32, #tpu.memory_space<vmem>>, vector<26x64xf32>
    %c13 = arith.constant 13 : index
    %c0_78 = arith.constant 0 : index
    %c0_79 = arith.constant 0 : index
    %81 = vector.load %arg3[%c13, %c0_78, %c0_79] : memref<30x64x32xf32, #tpu.memory_space<vmem>>, vector<1x64x32xf32>
    %82 = vector.shape_cast %81 : vector<1x64x32xf32> to vector<64x32xf32>
    %cst_80 = arith.constant dense<0.000000e+00> : vector<26x32xf32>
    %83 = tpu.matmul %80, %82, %cst_80 {dimension_numbers = #tpu.dot_dimension_numbers<[1], [0], [0], [1], [0, 0, 1, 1], [], []>} : vector<26x64xf32>, vector<64x32xf32>, vector<26x32xf32> -> vector<26x32xf32>
    %84 = arith.addf %79, %83 : vector<26x32xf32>
    %c96 = arith.constant 96 : index
    %c0_81 = arith.constant 0 : index
    %85 = vector.load %arg9[%c96, %c0_81] : memref<132x64xf32, #tpu.memory_space<vmem>>, vector<26x64xf32>
    %c14 = arith.constant 14 : index
    %c0_82 = arith.constant 0 : index
    %c0_83 = arith.constant 0 : index
    %86 = vector.load %arg3[%c14, %c0_82, %c0_83] : memref<30x64x32xf32, #tpu.memory_space<vmem>>, vector<1x64x32xf32>
    %87 = vector.shape_cast %86 : vector<1x64x32xf32> to vector<64x32xf32>
    %cst_84 = arith.constant dense<0.000000e+00> : vector<26x32xf32>
    %88 = tpu.matmul %85, %87, %cst_84 {dimension_numbers = #tpu.dot_dimension_numbers<[1], [0], [0], [1], [0, 0, 1, 1], [], []>} : vector<26x64xf32>, vector<64x32xf32>, vector<26x32xf32> -> vector<26x32xf32>
    %89 = arith.addf %84, %88 : vector<26x32xf32>
    %c10_85 = arith.constant 10 : index
    %c0_86 = arith.constant 0 : index
    %90 = vector.load %arg9[%c10_85, %c0_86] : memref<132x64xf32, #tpu.memory_space<vmem>>, vector<26x64xf32>
    %c15 = arith.constant 15 : index
    %c0_87 = arith.constant 0 : index
    %c0_88 = arith.constant 0 : index
    %91 = vector.load %arg3[%c15, %c0_87, %c0_88] : memref<30x64x32xf32, #tpu.memory_space<vmem>>, vector<1x64x32xf32>
    %92 = vector.shape_cast %91 : vector<1x64x32xf32> to vector<64x32xf32>
    %cst_89 = arith.constant dense<0.000000e+00> : vector<26x32xf32>
    %93 = tpu.matmul %90, %92, %cst_89 {dimension_numbers = #tpu.dot_dimension_numbers<[1], [0], [0], [1], [0, 0, 1, 1], [], []>} : vector<26x64xf32>, vector<64x32xf32>, vector<26x32xf32> -> vector<26x32xf32>
    %94 = arith.addf %89, %93 : vector<26x32xf32>
    %c54 = arith.constant 54 : index
    %c0_90 = arith.constant 0 : index
    %95 = vector.load %arg9[%c54, %c0_90] : memref<132x64xf32, #tpu.memory_space<vmem>>, vector<26x64xf32>
    %c16 = arith.constant 16 : index
    %c0_91 = arith.constant 0 : index
    %c0_92 = arith.constant 0 : index
    %96 = vector.load %arg3[%c16, %c0_91, %c0_92] : memref<30x64x32xf32, #tpu.memory_space<vmem>>, vector<1x64x32xf32>
    %97 = vector.shape_cast %96 : vector<1x64x32xf32> to vector<64x32xf32>
    %cst_93 = arith.constant dense<0.000000e+00> : vector<26x32xf32>
    %98 = tpu.matmul %95, %97, %cst_93 {dimension_numbers = #tpu.dot_dimension_numbers<[1], [0], [0], [1], [0, 0, 1, 1], [], []>} : vector<26x64xf32>, vector<64x32xf32>, vector<26x32xf32> -> vector<26x32xf32>
    %99 = arith.addf %94, %98 : vector<26x32xf32>
    %c98 = arith.constant 98 : index
    %c0_94 = arith.constant 0 : index
    %100 = vector.load %arg9[%c98, %c0_94] : memref<132x64xf32, #tpu.memory_space<vmem>>, vector<26x64xf32>
    %c17 = arith.constant 17 : index
    %c0_95 = arith.constant 0 : index
    %c0_96 = arith.constant 0 : index
    %101 = vector.load %arg3[%c17, %c0_95, %c0_96] : memref<30x64x32xf32, #tpu.memory_space<vmem>>, vector<1x64x32xf32>
    %102 = vector.shape_cast %101 : vector<1x64x32xf32> to vector<64x32xf32>
    %cst_97 = arith.constant dense<0.000000e+00> : vector<26x32xf32>
    %103 = tpu.matmul %100, %102, %cst_97 {dimension_numbers = #tpu.dot_dimension_numbers<[1], [0], [0], [1], [0, 0, 1, 1], [], []>} : vector<26x64xf32>, vector<64x32xf32>, vector<26x32xf32> -> vector<26x32xf32>
    %104 = arith.addf %99, %103 : vector<26x32xf32>
    %c12_98 = arith.constant 12 : index
    %c0_99 = arith.constant 0 : index
    %105 = vector.load %arg9[%c12_98, %c0_99] : memref<132x64xf32, #tpu.memory_space<vmem>>, vector<26x64xf32>
    %c18 = arith.constant 18 : index
    %c0_100 = arith.constant 0 : index
    %c0_101 = arith.constant 0 : index
    %106 = vector.load %arg3[%c18, %c0_100, %c0_101] : memref<30x64x32xf32, #tpu.memory_space<vmem>>, vector<1x64x32xf32>
    %107 = vector.shape_cast %106 : vector<1x64x32xf32> to vector<64x32xf32>
    %cst_102 = arith.constant dense<0.000000e+00> : vector<26x32xf32>
    %108 = tpu.matmul %105, %107, %cst_102 {dimension_numbers = #tpu.dot_dimension_numbers<[1], [0], [0], [1], [0, 0, 1, 1], [], []>} : vector<26x64xf32>, vector<64x32xf32>, vector<26x32xf32> -> vector<26x32xf32>
    %109 = arith.addf %104, %108 : vector<26x32xf32>
    %c56 = arith.constant 56 : index
    %c0_103 = arith.constant 0 : index
    %110 = vector.load %arg9[%c56, %c0_103] : memref<132x64xf32, #tpu.memory_space<vmem>>, vector<26x64xf32>
    %c19 = arith.constant 19 : index
    %c0_104 = arith.constant 0 : index
    %c0_105 = arith.constant 0 : index
    %111 = vector.load %arg3[%c19, %c0_104, %c0_105] : memref<30x64x32xf32, #tpu.memory_space<vmem>>, vector<1x64x32xf32>
    %112 = vector.shape_cast %111 : vector<1x64x32xf32> to vector<64x32xf32>
    %cst_106 = arith.constant dense<0.000000e+00> : vector<26x32xf32>
    %113 = tpu.matmul %110, %112, %cst_106 {dimension_numbers = #tpu.dot_dimension_numbers<[1], [0], [0], [1], [0, 0, 1, 1], [], []>} : vector<26x64xf32>, vector<64x32xf32>, vector<26x32xf32> -> vector<26x32xf32>
    %114 = arith.addf %109, %113 : vector<26x32xf32>
    %c100 = arith.constant 100 : index
    %c0_107 = arith.constant 0 : index
    %115 = vector.load %arg9[%c100, %c0_107] : memref<132x64xf32, #tpu.memory_space<vmem>>, vector<26x64xf32>
    %c20 = arith.constant 20 : index
    %c0_108 = arith.constant 0 : index
    %c0_109 = arith.constant 0 : index
    %116 = vector.load %arg3[%c20, %c0_108, %c0_109] : memref<30x64x32xf32, #tpu.memory_space<vmem>>, vector<1x64x32xf32>
    %117 = vector.shape_cast %116 : vector<1x64x32xf32> to vector<64x32xf32>
    %cst_110 = arith.constant dense<0.000000e+00> : vector<26x32xf32>
    %118 = tpu.matmul %115, %117, %cst_110 {dimension_numbers = #tpu.dot_dimension_numbers<[1], [0], [0], [1], [0, 0, 1, 1], [], []>} : vector<26x64xf32>, vector<64x32xf32>, vector<26x32xf32> -> vector<26x32xf32>
    %119 = arith.addf %114, %118 : vector<26x32xf32>
    %c14_111 = arith.constant 14 : index
    %c0_112 = arith.constant 0 : index
    %120 = vector.load %arg9[%c14_111, %c0_112] : memref<132x64xf32, #tpu.memory_space<vmem>>, vector<26x64xf32>
    %c21 = arith.constant 21 : index
    %c0_113 = arith.constant 0 : index
    %c0_114 = arith.constant 0 : index
    %121 = vector.load %arg3[%c21, %c0_113, %c0_114] : memref<30x64x32xf32, #tpu.memory_space<vmem>>, vector<1x64x32xf32>
    %122 = vector.shape_cast %121 : vector<1x64x32xf32> to vector<64x32xf32>
    %cst_115 = arith.constant dense<0.000000e+00> : vector<26x32xf32>
    %123 = tpu.matmul %120, %122, %cst_115 {dimension_numbers = #tpu.dot_dimension_numbers<[1], [0], [0], [1], [0, 0, 1, 1], [], []>} : vector<26x64xf32>, vector<64x32xf32>, vector<26x32xf32> -> vector<26x32xf32>
    %124 = arith.addf %119, %123 : vector<26x32xf32>
    %c58 = arith.constant 58 : index
    %c0_116 = arith.constant 0 : index
    %125 = vector.load %arg9[%c58, %c0_116] : memref<132x64xf32, #tpu.memory_space<vmem>>, vector<26x64xf32>
    %c22 = arith.constant 22 : index
    %c0_117 = arith.constant 0 : index
    %c0_118 = arith.constant 0 : index
    %126 = vector.load %arg3[%c22, %c0_117, %c0_118] : memref<30x64x32xf32, #tpu.memory_space<vmem>>, vector<1x64x32xf32>
    %127 = vector.shape_cast %126 : vector<1x64x32xf32> to vector<64x32xf32>
    %cst_119 = arith.constant dense<0.000000e+00> : vector<26x32xf32>
    %128 = tpu.matmul %125, %127, %cst_119 {dimension_numbers = #tpu.dot_dimension_numbers<[1], [0], [0], [1], [0, 0, 1, 1], [], []>} : vector<26x64xf32>, vector<64x32xf32>, vector<26x32xf32> -> vector<26x32xf32>
    %129 = arith.addf %124, %128 : vector<26x32xf32>
    %c102 = arith.constant 102 : index
    %c0_120 = arith.constant 0 : index
    %130 = vector.load %arg9[%c102, %c0_120] : memref<132x64xf32, #tpu.memory_space<vmem>>, vector<26x64xf32>
    %c23 = arith.constant 23 : index
    %c0_121 = arith.constant 0 : index
    %c0_122 = arith.constant 0 : index
    %131 = vector.load %arg3[%c23, %c0_121, %c0_122] : memref<30x64x32xf32, #tpu.memory_space<vmem>>, vector<1x64x32xf32>
    %132 = vector.shape_cast %131 : vector<1x64x32xf32> to vector<64x32xf32>
    %cst_123 = arith.constant dense<0.000000e+00> : vector<26x32xf32>
    %133 = tpu.matmul %130, %132, %cst_123 {dimension_numbers = #tpu.dot_dimension_numbers<[1], [0], [0], [1], [0, 0, 1, 1], [], []>} : vector<26x64xf32>, vector<64x32xf32>, vector<26x32xf32> -> vector<26x32xf32>
    %134 = arith.addf %129, %133 : vector<26x32xf32>
    %c16_124 = arith.constant 16 : index
    %c0_125 = arith.constant 0 : index
    %135 = vector.load %arg9[%c16_124, %c0_125] : memref<132x64xf32, #tpu.memory_space<vmem>>, vector<26x64xf32>
    %c24 = arith.constant 24 : index
    %c0_126 = arith.constant 0 : index
    %c0_127 = arith.constant 0 : index
    %136 = vector.load %arg3[%c24, %c0_126, %c0_127] : memref<30x64x32xf32, #tpu.memory_space<vmem>>, vector<1x64x32xf32>
    %137 = vector.shape_cast %136 : vector<1x64x32xf32> to vector<64x32xf32>
    %cst_128 = arith.constant dense<0.000000e+00> : vector<26x32xf32>
    %138 = tpu.matmul %135, %137, %cst_128 {dimension_numbers = #tpu.dot_dimension_numbers<[1], [0], [0], [1], [0, 0, 1, 1], [], []>} : vector<26x64xf32>, vector<64x32xf32>, vector<26x32xf32> -> vector<26x32xf32>
    %139 = arith.addf %134, %138 : vector<26x32xf32>
    %c60 = arith.constant 60 : index
    %c0_129 = arith.constant 0 : index
    %140 = vector.load %arg9[%c60, %c0_129] : memref<132x64xf32, #tpu.memory_space<vmem>>, vector<26x64xf32>
    %c25 = arith.constant 25 : index
    %c0_130 = arith.constant 0 : index
    %c0_131 = arith.constant 0 : index
    %141 = vector.load %arg3[%c25, %c0_130, %c0_131] : memref<30x64x32xf32, #tpu.memory_space<vmem>>, vector<1x64x32xf32>
    %142 = vector.shape_cast %141 : vector<1x64x32xf32> to vector<64x32xf32>
    %cst_132 = arith.constant dense<0.000000e+00> : vector<26x32xf32>
    %143 = tpu.matmul %140, %142, %cst_132 {dimension_numbers = #tpu.dot_dimension_numbers<[1], [0], [0], [1], [0, 0, 1, 1], [], []>} : vector<26x64xf32>, vector<64x32xf32>, vector<26x32xf32> -> vector<26x32xf32>
    %144 = arith.addf %139, %143 : vector<26x32xf32>
    %c104 = arith.constant 104 : index
    %c0_133 = arith.constant 0 : index
    %145 = vector.load %arg9[%c104, %c0_133] : memref<132x64xf32, #tpu.memory_space<vmem>>, vector<26x64xf32>
    %c26 = arith.constant 26 : index
    %c0_134 = arith.constant 0 : index
    %c0_135 = arith.constant 0 : index
    %146 = vector.load %arg3[%c26, %c0_134, %c0_135] : memref<30x64x32xf32, #tpu.memory_space<vmem>>, vector<1x64x32xf32>
    %147 = vector.shape_cast %146 : vector<1x64x32xf32> to vector<64x32xf32>
    %cst_136 = arith.constant dense<0.000000e+00> : vector<26x32xf32>
    %148 = tpu.matmul %145, %147, %cst_136 {dimension_numbers = #tpu.dot_dimension_numbers<[1], [0], [0], [1], [0, 0, 1, 1], [], []>} : vector<26x64xf32>, vector<64x32xf32>, vector<26x32xf32> -> vector<26x32xf32>
    %149 = arith.addf %144, %148 : vector<26x32xf32>
    %c18_137 = arith.constant 18 : index
    %c0_138 = arith.constant 0 : index
    %150 = vector.load %arg9[%c18_137, %c0_138] : memref<132x64xf32, #tpu.memory_space<vmem>>, vector<26x64xf32>
    %c27 = arith.constant 27 : index
    %c0_139 = arith.constant 0 : index
    %c0_140 = arith.constant 0 : index
    %151 = vector.load %arg3[%c27, %c0_139, %c0_140] : memref<30x64x32xf32, #tpu.memory_space<vmem>>, vector<1x64x32xf32>
    %152 = vector.shape_cast %151 : vector<1x64x32xf32> to vector<64x32xf32>
    %cst_141 = arith.constant dense<0.000000e+00> : vector<26x32xf32>
    %153 = tpu.matmul %150, %152, %cst_141 {dimension_numbers = #tpu.dot_dimension_numbers<[1], [0], [0], [1], [0, 0, 1, 1], [], []>} : vector<26x64xf32>, vector<64x32xf32>, vector<26x32xf32> -> vector<26x32xf32>
    %154 = arith.addf %149, %153 : vector<26x32xf32>
    %c62 = arith.constant 62 : index
    %c0_142 = arith.constant 0 : index
    %155 = vector.load %arg9[%c62, %c0_142] : memref<132x64xf32, #tpu.memory_space<vmem>>, vector<26x64xf32>
    %c28 = arith.constant 28 : index
    %c0_143 = arith.constant 0 : index
    %c0_144 = arith.constant 0 : index
    %156 = vector.load %arg3[%c28, %c0_143, %c0_144] : memref<30x64x32xf32, #tpu.memory_space<vmem>>, vector<1x64x32xf32>
    %157 = vector.shape_cast %156 : vector<1x64x32xf32> to vector<64x32xf32>
    %cst_145 = arith.constant dense<0.000000e+00> : vector<26x32xf32>
    %158 = tpu.matmul %155, %157, %cst_145 {dimension_numbers = #tpu.dot_dimension_numbers<[1], [0], [0], [1], [0, 0, 1, 1], [], []>} : vector<26x64xf32>, vector<64x32xf32>, vector<26x32xf32> -> vector<26x32xf32>
    %159 = arith.addf %154, %158 : vector<26x32xf32>
    %c106 = arith.constant 106 : index
    %c0_146 = arith.constant 0 : index
    %160 = vector.load %arg9[%c106, %c0_146] : memref<132x64xf32, #tpu.memory_space<vmem>>, vector<26x64xf32>
    %c29 = arith.constant 29 : index
    %c0_147 = arith.constant 0 : index
    %c0_148 = arith.constant 0 : index
    %161 = vector.load %arg3[%c29, %c0_147, %c0_148] : memref<30x64x32xf32, #tpu.memory_space<vmem>>, vector<1x64x32xf32>
    %162 = vector.shape_cast %161 : vector<1x64x32xf32> to vector<64x32xf32>
    %cst_149 = arith.constant dense<0.000000e+00> : vector<26x32xf32>
    %163 = tpu.matmul %160, %162, %cst_149 {dimension_numbers = #tpu.dot_dimension_numbers<[1], [0], [0], [1], [0, 0, 1, 1], [], []>} : vector<26x64xf32>, vector<64x32xf32>, vector<26x32xf32> -> vector<26x32xf32>
    %164 = arith.addf %159, %163 : vector<26x32xf32>
    %165 = vector.broadcast %1 : vector<1x32xf32> to vector<26x32xf32>
    %166 = arith.addf %164, %165 : vector<26x32xf32>
    %cst_150 = arith.constant 0.000000e+00 : f32
    %167 = vector.broadcast %cst_150 : f32 to vector<26x32xf32>
    %168 = arith.maximumf %166, %167 : vector<26x32xf32>
    %c0_151 = arith.constant 0 : index
    %c0_152 = arith.constant 0 : index
    %169 = vector.load %arg10[%c0_151, %c0_152] : memref<26x32xf32, #tpu.memory_space<vmem>>, vector<26x32xf32>
    tpu.vector_store %arg10[%c0_151, %c0_152], %168 {strides = array<i32>} : memref<26x32xf32, #tpu.memory_space<vmem>>, vector<26x32xf32>,
    %cst_153 = arith.constant 0.000000e+00 : f32
    %170 = vector.broadcast %cst_153 : f32 to vector<8x64xf32>
    %c0_154 = arith.constant 0 : index
    %c0_155 = arith.constant 0 : index
    %171 = vector.load %arg10[%c0_154, %c0_155] : memref<26x32xf32, #tpu.memory_space<vmem>>, vector<8x32xf32>
    %c0_156 = arith.constant 0 : index
    %c0_157 = arith.constant 0 : index
    %c0_158 = arith.constant 0 : index
    %172 = vector.load %arg4[%c0_156, %c0_157, %c0_158] : memref<10x32x64xf32, #tpu.memory_space<vmem>>, vector<1x32x64xf32>
    %173 = vector.shape_cast %172 : vector<1x32x64xf32> to vector<32x64xf32>
    %cst_159 = arith.constant dense<0.000000e+00> : vector<8x64xf32>
    %174 = tpu.matmul %171, %173, %cst_159 {dimension_numbers = #tpu.dot_dimension_numbers<[1], [0], [0], [1], [0, 0, 1, 1], [], []>} : vector<8x32xf32>, vector<32x64xf32>, vector<8x64xf32> -> vector<8x64xf32>
    %175 = arith.addf %170, %174 : vector<8x64xf32>
    %c2_160 = arith.constant 2 : index
    %c0_161 = arith.constant 0 : index
    %176 = vector.load %arg10[%c2_160, %c0_161] : memref<26x32xf32, #tpu.memory_space<vmem>>, vector<8x32xf32>
    %c1_162 = arith.constant 1 : index
    %c0_163 = arith.constant 0 : index
    %c0_164 = arith.constant 0 : index
    %177 = vector.load %arg4[%c1_162, %c0_163, %c0_164] : memref<10x32x64xf32, #tpu.memory_space<vmem>>, vector<1x32x64xf32>
    %178 = vector.shape_cast %177 : vector<1x32x64xf32> to vector<32x64xf32>
    %cst_165 = arith.constant dense<0.000000e+00> : vector<8x64xf32>
    %179 = tpu.matmul %176, %178, %cst_165 {dimension_numbers = #tpu.dot_dimension_numbers<[1], [0], [0], [1], [0, 0, 1, 1], [], []>} : vector<8x32xf32>, vector<32x64xf32>, vector<8x64xf32> -> vector<8x64xf32>
    %180 = arith.addf %175, %179 : vector<8x64xf32>
    %c4_166 = arith.constant 4 : index
    %c0_167 = arith.constant 0 : index
    %181 = vector.load %arg10[%c4_166, %c0_167] : memref<26x32xf32, #tpu.memory_space<vmem>>, vector<8x32xf32>
    %c2_168 = arith.constant 2 : index
    %c0_169 = arith.constant 0 : index
    %c0_170 = arith.constant 0 : index
    %182 = vector.load %arg4[%c2_168, %c0_169, %c0_170] : memref<10x32x64xf32, #tpu.memory_space<vmem>>, vector<1x32x64xf32>
    %183 = vector.shape_cast %182 : vector<1x32x64xf32> to vector<32x64xf32>
    %cst_171 = arith.constant dense<0.000000e+00> : vector<8x64xf32>
    %184 = tpu.matmul %181, %183, %cst_171 {dimension_numbers = #tpu.dot_dimension_numbers<[1], [0], [0], [1], [0, 0, 1, 1], [], []>} : vector<8x32xf32>, vector<32x64xf32>, vector<8x64xf32> -> vector<8x64xf32>
    %185 = arith.addf %180, %184 : vector<8x64xf32>
    %c6_172 = arith.constant 6 : index
    %c0_173 = arith.constant 0 : index
    %186 = vector.load %arg10[%c6_172, %c0_173] : memref<26x32xf32, #tpu.memory_space<vmem>>, vector<8x32xf32>
    %c3_174 = arith.constant 3 : index
    %c0_175 = arith.constant 0 : index
    %c0_176 = arith.constant 0 : index
    %187 = vector.load %arg4[%c3_174, %c0_175, %c0_176] : memref<10x32x64xf32, #tpu.memory_space<vmem>>, vector<1x32x64xf32>
    %188 = vector.shape_cast %187 : vector<1x32x64xf32> to vector<32x64xf32>
    %cst_177 = arith.constant dense<0.000000e+00> : vector<8x64xf32>
    %189 = tpu.matmul %186, %188, %cst_177 {dimension_numbers = #tpu.dot_dimension_numbers<[1], [0], [0], [1], [0, 0, 1, 1], [], []>} : vector<8x32xf32>, vector<32x64xf32>, vector<8x64xf32> -> vector<8x64xf32>
    %190 = arith.addf %185, %189 : vector<8x64xf32>
    %c8_178 = arith.constant 8 : index
    %c0_179 = arith.constant 0 : index
    %191 = vector.load %arg10[%c8_178, %c0_179] : memref<26x32xf32, #tpu.memory_space<vmem>>, vector<8x32xf32>
    %c4_180 = arith.constant 4 : index
    %c0_181 = arith.constant 0 : index
    %c0_182 = arith.constant 0 : index
    %192 = vector.load %arg4[%c4_180, %c0_181, %c0_182] : memref<10x32x64xf32, #tpu.memory_space<vmem>>, vector<1x32x64xf32>
    %193 = vector.shape_cast %192 : vector<1x32x64xf32> to vector<32x64xf32>
    %cst_183 = arith.constant dense<0.000000e+00> : vector<8x64xf32>
    %194 = tpu.matmul %191, %193, %cst_183 {dimension_numbers = #tpu.dot_dimension_numbers<[1], [0], [0], [1], [0, 0, 1, 1], [], []>} : vector<8x32xf32>, vector<32x64xf32>, vector<8x64xf32> -> vector<8x64xf32>
    %195 = arith.addf %190, %194 : vector<8x64xf32>
    %c10_184 = arith.constant 10 : index
    %c0_185 = arith.constant 0 : index
    %196 = vector.load %arg10[%c10_184, %c0_185] : memref<26x32xf32, #tpu.memory_space<vmem>>, vector<8x32xf32>
    %c5_186 = arith.constant 5 : index
    %c0_187 = arith.constant 0 : index
    %c0_188 = arith.constant 0 : index
    %197 = vector.load %arg4[%c5_186, %c0_187, %c0_188] : memref<10x32x64xf32, #tpu.memory_space<vmem>>, vector<1x32x64xf32>
    %198 = vector.shape_cast %197 : vector<1x32x64xf32> to vector<32x64xf32>
    %cst_189 = arith.constant dense<0.000000e+00> : vector<8x64xf32>
    %199 = tpu.matmul %196, %198, %cst_189 {dimension_numbers = #tpu.dot_dimension_numbers<[1], [0], [0], [1], [0, 0, 1, 1], [], []>} : vector<8x32xf32>, vector<32x64xf32>, vector<8x64xf32> -> vector<8x64xf32>
    %200 = arith.addf %195, %199 : vector<8x64xf32>
    %c12_190 = arith.constant 12 : index
    %c0_191 = arith.constant 0 : index
    %201 = vector.load %arg10[%c12_190, %c0_191] : memref<26x32xf32, #tpu.memory_space<vmem>>, vector<8x32xf32>
    %c6_192 = arith.constant 6 : index
    %c0_193 = arith.constant 0 : index
    %c0_194 = arith.constant 0 : index
    %202 = vector.load %arg4[%c6_192, %c0_193, %c0_194] : memref<10x32x64xf32, #tpu.memory_space<vmem>>, vector<1x32x64xf32>
    %203 = vector.shape_cast %202 : vector<1x32x64xf32> to vector<32x64xf32>
    %cst_195 = arith.constant dense<0.000000e+00> : vector<8x64xf32>
    %204 = tpu.matmul %201, %203, %cst_195 {dimension_numbers = #tpu.dot_dimension_numbers<[1], [0], [0], [1], [0, 0, 1, 1], [], []>} : vector<8x32xf32>, vector<32x64xf32>, vector<8x64xf32> -> vector<8x64xf32>
    %205 = arith.addf %200, %204 : vector<8x64xf32>
    %c14_196 = arith.constant 14 : index
    %c0_197 = arith.constant 0 : index
    %206 = vector.load %arg10[%c14_196, %c0_197] : memref<26x32xf32, #tpu.memory_space<vmem>>, vector<8x32xf32>
    %c7_198 = arith.constant 7 : index
    %c0_199 = arith.constant 0 : index
    %c0_200 = arith.constant 0 : index
    %207 = vector.load %arg4[%c7_198, %c0_199, %c0_200] : memref<10x32x64xf32, #tpu.memory_space<vmem>>, vector<1x32x64xf32>
    %208 = vector.shape_cast %207 : vector<1x32x64xf32> to vector<32x64xf32>
    %cst_201 = arith.constant dense<0.000000e+00> : vector<8x64xf32>
    %209 = tpu.matmul %206, %208, %cst_201 {dimension_numbers = #tpu.dot_dimension_numbers<[1], [0], [0], [1], [0, 0, 1, 1], [], []>} : vector<8x32xf32>, vector<32x64xf32>, vector<8x64xf32> -> vector<8x64xf32>
    %210 = arith.addf %205, %209 : vector<8x64xf32>
    %c16_202 = arith.constant 16 : index
    %c0_203 = arith.constant 0 : index
    %211 = vector.load %arg10[%c16_202, %c0_203] : memref<26x32xf32, #tpu.memory_space<vmem>>, vector<8x32xf32>
    %c8_204 = arith.constant 8 : index
    %c0_205 = arith.constant 0 : index
    %c0_206 = arith.constant 0 : index
    %212 = vector.load %arg4[%c8_204, %c0_205, %c0_206] : memref<10x32x64xf32, #tpu.memory_space<vmem>>, vector<1x32x64xf32>
    %213 = vector.shape_cast %212 : vector<1x32x64xf32> to vector<32x64xf32>
    %cst_207 = arith.constant dense<0.000000e+00> : vector<8x64xf32>
    %214 = tpu.matmul %211, %213, %cst_207 {dimension_numbers = #tpu.dot_dimension_numbers<[1], [0], [0], [1], [0, 0, 1, 1], [], []>} : vector<8x32xf32>, vector<32x64xf32>, vector<8x64xf32> -> vector<8x64xf32>
    %215 = arith.addf %210, %214 : vector<8x64xf32>
    %c18_208 = arith.constant 18 : index
    %c0_209 = arith.constant 0 : index
    %216 = vector.load %arg10[%c18_208, %c0_209] : memref<26x32xf32, #tpu.memory_space<vmem>>, vector<8x32xf32>
    %c9_210 = arith.constant 9 : index
    %c0_211 = arith.constant 0 : index
    %c0_212 = arith.constant 0 : index
    %217 = vector.load %arg4[%c9_210, %c0_211, %c0_212] : memref<10x32x64xf32, #tpu.memory_space<vmem>>, vector<1x32x64xf32>
    %218 = vector.shape_cast %217 : vector<1x32x64xf32> to vector<32x64xf32>
    %cst_213 = arith.constant dense<0.000000e+00> : vector<8x64xf32>
    %219 = tpu.matmul %216, %218, %cst_213 {dimension_numbers = #tpu.dot_dimension_numbers<[1], [0], [0], [1], [0, 0, 1, 1], [], []>} : vector<8x32xf32>, vector<32x64xf32>, vector<8x64xf32> -> vector<8x64xf32>
    %220 = arith.addf %215, %219 : vector<8x64xf32>
    %221 = vector.broadcast %2 : vector<1x64xf32> to vector<8x64xf32>
    %222 = arith.addf %220, %221 : vector<8x64xf32>
    %c0_214 = arith.constant 0 : index
    %c0_215 = arith.constant 0 : index
    %223 = vector.load %arg1[%c0_214, %c0_215] : memref<2x32xf32, #tpu.memory_space<vmem>>, vector<2x32xf32>
    %c0_216 = arith.constant 0 : index
    %c0_217 = arith.constant 0 : index
    %224 = vector.load %arg5[%c0_216, %c0_217] : memref<32x32xf32, #tpu.memory_space<vmem>>, vector<32x32xf32>
    %cst_218 = arith.constant dense<0.000000e+00> : vector<2x32xf32>
    %225 = tpu.matmul %223, %224, %cst_218 {dimension_numbers = #tpu.dot_dimension_numbers<[1], [0], [0], [1], [0, 0, 1, 1], [], []>} : vector<2x32xf32>, vector<32x32xf32>, vector<2x32xf32> -> vector<2x32xf32>
    %226 = vector.broadcast %3 : vector<1x32xf32> to vector<2x32xf32>
    %227 = arith.addf %225, %226 : vector<2x32xf32>
    %228 = vector.extract_strided_slice %227 {offsets = [0, 0], sizes = [2, 16], strides = [1, 1]} : vector<2x32xf32> to vector<2x16xf32>
    %229 = vector.extract_strided_slice %227 {offsets = [0, 16], sizes = [2, 16], strides = [1, 1]} : vector<2x32xf32> to vector<2x16xf32>
    %230 = vector.extract_strided_slice %222 {offsets = [0, 0], sizes = [2, 64], strides = [1, 1]} : vector<8x64xf32> to vector<2x64xf32>
    %c0_219 = arith.constant 0 : index
    %c0_220 = arith.constant 0 : index
    %231 = vector.load %arg6[%c0_219, %c0_220] : memref<16x64xf32, #tpu.memory_space<vmem>>, vector<16x64xf32>
    %cst_221 = arith.constant dense<0.000000e+00> : vector<2x64xf32>
    %232 = tpu.matmul %228, %231, %cst_221 {dimension_numbers = #tpu.dot_dimension_numbers<[1], [0], [0], [1], [0, 0, 1, 1], [], []>} : vector<2x16xf32>, vector<16x64xf32>, vector<2x64xf32> -> vector<2x64xf32>
    %233 = arith.addf %230, %232 : vector<2x64xf32>
    %234 = vector.extract_strided_slice %233 {offsets = [0, 0], sizes = [2, 16], strides = [1, 1]} : vector<2x64xf32> to vector<2x16xf32>
    %235 = arith.negf %234 : vector<2x16xf32>
    %236 = math.exp %235 : vector<2x16xf32>
    %cst_222 = arith.constant 1.000000e+00 : f32
    %237 = vector.broadcast %cst_222 : f32 to vector<2x16xf32>
    %238 = arith.addf %237, %236 : vector<2x16xf32>
    %239 = arith.divf %237, %238 : vector<2x16xf32>
    %240 = vector.extract_strided_slice %233 {offsets = [0, 16], sizes = [2, 16], strides = [1, 1]} : vector<2x64xf32> to vector<2x16xf32>
    %241 = arith.negf %240 : vector<2x16xf32>
    %242 = math.exp %241 : vector<2x16xf32>
    %cst_223 = arith.constant 1.000000e+00 : f32
    %243 = vector.broadcast %cst_223 : f32 to vector<2x16xf32>
    %244 = arith.addf %243, %242 : vector<2x16xf32>
    %245 = arith.divf %243, %244 : vector<2x16xf32>
    %246 = vector.extract_strided_slice %233 {offsets = [0, 32], sizes = [2, 16], strides = [1, 1]} : vector<2x64xf32> to vector<2x16xf32>
    %247 = math.tanh %246 : vector<2x16xf32>
    %248 = vector.extract_strided_slice %233 {offsets = [0, 48], sizes = [2, 16], strides = [1, 1]} : vector<2x64xf32> to vector<2x16xf32>
    %249 = arith.negf %248 : vector<2x16xf32>
    %250 = math.exp %249 : vector<2x16xf32>
    %cst_224 = arith.constant 1.000000e+00 : f32
    %251 = vector.broadcast %cst_224 : f32 to vector<2x16xf32>
    %252 = arith.addf %251, %250 : vector<2x16xf32>
    %253 = arith.divf %251, %252 : vector<2x16xf32>
    %254 = arith.mulf %245, %229 : vector<2x16xf32>
    %255 = arith.mulf %239, %247 : vector<2x16xf32>
    %256 = arith.addf %254, %255 : vector<2x16xf32>
    %257 = math.tanh %256 : vector<2x16xf32>
    %258 = arith.mulf %253, %257 : vector<2x16xf32>
    %259 = vector.extract_strided_slice %222 {offsets = [2, 0], sizes = [2, 64], strides = [1, 1]} : vector<8x64xf32> to vector<2x64xf32>
    %c0_225 = arith.constant 0 : index
    %c0_226 = arith.constant 0 : index
    %260 = vector.load %arg6[%c0_225, %c0_226] : memref<16x64xf32, #tpu.memory_space<vmem>>, vector<16x64xf32>
    %cst_227 = arith.constant dense<0.000000e+00> : vector<2x64xf32>
    %261 = tpu.matmul %258, %260, %cst_227 {dimension_numbers = #tpu.dot_dimension_numbers<[1], [0], [0], [1], [0, 0, 1, 1], [], []>} : vector<2x16xf32>, vector<16x64xf32>, vector<2x64xf32> -> vector<2x64xf32>
    %262 = arith.addf %259, %261 : vector<2x64xf32>
    %263 = vector.extract_strided_slice %262 {offsets = [0, 0], sizes = [2, 16], strides = [1, 1]} : vector<2x64xf32> to vector<2x16xf32>
    %264 = arith.negf %263 : vector<2x16xf32>
    %265 = math.exp %264 : vector<2x16xf32>
    %cst_228 = arith.constant 1.000000e+00 : f32
    %266 = vector.broadcast %cst_228 : f32 to vector<2x16xf32>
    %267 = arith.addf %266, %265 : vector<2x16xf32>
    %268 = arith.divf %266, %267 : vector<2x16xf32>
    %269 = vector.extract_strided_slice %262 {offsets = [0, 16], sizes = [2, 16], strides = [1, 1]} : vector<2x64xf32> to vector<2x16xf32>
    %270 = arith.negf %269 : vector<2x16xf32>
    %271 = math.exp %270 : vector<2x16xf32>
    %cst_229 = arith.constant 1.000000e+00 : f32
    %272 = vector.broadcast %cst_229 : f32 to vector<2x16xf32>
    %273 = arith.addf %272, %271 : vector<2x16xf32>
    %274 = arith.divf %272, %273 : vector<2x16xf32>
    %275 = vector.extract_strided_slice %262 {offsets = [0, 32], sizes = [2, 16], strides = [1, 1]} : vector<2x64xf32> to vector<2x16xf32>
    %276 = math.tanh %275 : vector<2x16xf32>
    %277 = vector.extract_strided_slice %262 {offsets = [0, 48], sizes = [2, 16], strides = [1, 1]} : vector<2x64xf32> to vector<2x16xf32>
    %278 = arith.negf %277 : vector<2x16xf32>
    %279 = math.exp %278 : vector<2x16xf32>
    %cst_230 = arith.constant 1.000000e+00 : f32
    %280 = vector.broadcast %cst_230 : f32 to vector<2x16xf32>
    %281 = arith.addf %280, %279 : vector<2x16xf32>
    %282 = arith.divf %280, %281 : vector<2x16xf32>
    %283 = arith.mulf %274, %256 : vector<2x16xf32>
    %284 = arith.mulf %268, %276 : vector<2x16xf32>
    %285 = arith.addf %283, %284 : vector<2x16xf32>
    %286 = math.tanh %285 : vector<2x16xf32>
    %287 = arith.mulf %282, %286 : vector<2x16xf32>
    %288 = vector.extract_strided_slice %222 {offsets = [4, 0], sizes = [2, 64], strides = [1, 1]} : vector<8x64xf32> to vector<2x64xf32>
    %c0_231 = arith.constant 0 : index
    %c0_232 = arith.constant 0 : index
    %289 = vector.load %arg6[%c0_231, %c0_232] : memref<16x64xf32, #tpu.memory_space<vmem>>, vector<16x64xf32>
    %cst_233 = arith.constant dense<0.000000e+00> : vector<2x64xf32>
    %290 = tpu.matmul %287, %289, %cst_233 {dimension_numbers = #tpu.dot_dimension_numbers<[1], [0], [0], [1], [0, 0, 1, 1], [], []>} : vector<2x16xf32>, vector<16x64xf32>, vector<2x64xf32> -> vector<2x64xf32>
    %291 = arith.addf %288, %290 : vector<2x64xf32>
    %292 = vector.extract_strided_slice %291 {offsets = [0, 0], sizes = [2, 16], strides = [1, 1]} : vector<2x64xf32> to vector<2x16xf32>
    %293 = arith.negf %292 : vector<2x16xf32>
    %294 = math.exp %293 : vector<2x16xf32>
    %cst_234 = arith.constant 1.000000e+00 : f32
    %295 = vector.broadcast %cst_234 : f32 to vector<2x16xf32>
    %296 = arith.addf %295, %294 : vector<2x16xf32>
    %297 = arith.divf %295, %296 : vector<2x16xf32>
    %298 = vector.extract_strided_slice %291 {offsets = [0, 16], sizes = [2, 16], strides = [1, 1]} : vector<2x64xf32> to vector<2x16xf32>
    %299 = arith.negf %298 : vector<2x16xf32>
    %300 = math.exp %299 : vector<2x16xf32>
    %cst_235 = arith.constant 1.000000e+00 : f32
    %301 = vector.broadcast %cst_235 : f32 to vector<2x16xf32>
    %302 = arith.addf %301, %300 : vector<2x16xf32>
    %303 = arith.divf %301, %302 : vector<2x16xf32>
    %304 = vector.extract_strided_slice %291 {offsets = [0, 32], sizes = [2, 16], strides = [1, 1]} : vector<2x64xf32> to vector<2x16xf32>
    %305 = math.tanh %304 : vector<2x16xf32>
    %306 = vector.extract_strided_slice %291 {offsets = [0, 48], sizes = [2, 16], strides = [1, 1]} : vector<2x64xf32> to vector<2x16xf32>
    %307 = arith.negf %306 : vector<2x16xf32>
    %308 = math.exp %307 : vector<2x16xf32>
    %cst_236 = arith.constant 1.000000e+00 : f32
    %309 = vector.broadcast %cst_236 : f32 to vector<2x16xf32>
    %310 = arith.addf %309, %308 : vector<2x16xf32>
    %311 = arith.divf %309, %310 : vector<2x16xf32>
    %312 = arith.mulf %303, %285 : vector<2x16xf32>
    %313 = arith.mulf %297, %305 : vector<2x16xf32>
    %314 = arith.addf %312, %313 : vector<2x16xf32>
    %315 = math.tanh %314 : vector<2x16xf32>
    %316 = arith.mulf %311, %315 : vector<2x16xf32>
    %317 = vector.extract_strided_slice %222 {offsets = [6, 0], sizes = [2, 64], strides = [1, 1]} : vector<8x64xf32> to vector<2x64xf32>
    %c0_237 = arith.constant 0 : index
    %c0_238 = arith.constant 0 : index
    %318 = vector.load %arg6[%c0_237, %c0_238] : memref<16x64xf32, #tpu.memory_space<vmem>>, vector<16x64xf32>
    %cst_239 = arith.constant dense<0.000000e+00> : vector<2x64xf32>
    %319 = tpu.matmul %316, %318, %cst_239 {dimension_numbers = #tpu.dot_dimension_numbers<[1], [0], [0], [1], [0, 0, 1, 1], [], []>} : vector<2x16xf32>, vector<16x64xf32>, vector<2x64xf32> -> vector<2x64xf32>
    %320 = arith.addf %317, %319 : vector<2x64xf32>
    %321 = vector.extract_strided_slice %320 {offsets = [0, 0], sizes = [2, 16], strides = [1, 1]} : vector<2x64xf32> to vector<2x16xf32>
    %322 = arith.negf %321 : vector<2x16xf32>
    %323 = math.exp %322 : vector<2x16xf32>
    %cst_240 = arith.constant 1.000000e+00 : f32
    %324 = vector.broadcast %cst_240 : f32 to vector<2x16xf32>
    %325 = arith.addf %324, %323 : vector<2x16xf32>
    %326 = arith.divf %324, %325 : vector<2x16xf32>
    %327 = vector.extract_strided_slice %320 {offsets = [0, 16], sizes = [2, 16], strides = [1, 1]} : vector<2x64xf32> to vector<2x16xf32>
    %328 = arith.negf %327 : vector<2x16xf32>
    %329 = math.exp %328 : vector<2x16xf32>
    %cst_241 = arith.constant 1.000000e+00 : f32
    %330 = vector.broadcast %cst_241 : f32 to vector<2x16xf32>
    %331 = arith.addf %330, %329 : vector<2x16xf32>
    %332 = arith.divf %330, %331 : vector<2x16xf32>
    %333 = vector.extract_strided_slice %320 {offsets = [0, 32], sizes = [2, 16], strides = [1, 1]} : vector<2x64xf32> to vector<2x16xf32>
    %334 = math.tanh %333 : vector<2x16xf32>
    %335 = vector.extract_strided_slice %320 {offsets = [0, 48], sizes = [2, 16], strides = [1, 1]} : vector<2x64xf32> to vector<2x16xf32>
    %336 = arith.negf %335 : vector<2x16xf32>
    %337 = math.exp %336 : vector<2x16xf32>
    %cst_242 = arith.constant 1.000000e+00 : f32
    %338 = vector.broadcast %cst_242 : f32 to vector<2x16xf32>
    %339 = arith.addf %338, %337 : vector<2x16xf32>
    %340 = arith.divf %338, %339 : vector<2x16xf32>
    %341 = arith.mulf %332, %314 : vector<2x16xf32>
    %342 = arith.mulf %326, %334 : vector<2x16xf32>
    %343 = arith.addf %341, %342 : vector<2x16xf32>
    %344 = math.tanh %343 : vector<2x16xf32>
    %345 = arith.mulf %340, %344 : vector<2x16xf32>
    %346 = vector.broadcast %4 : vector<1x16xf32> to vector<2x16xf32>
    %347 = arith.mulf %345, %346 : vector<2x16xf32>
    %cst_243 = arith.constant dense<0.000000e+00> : vector<2xf32>
    %348 = vector.multi_reduction <add>, %347, %cst_243 [1] : vector<2x16xf32> to vector<2xf32>
    %349 = vector.shape_cast %348 : vector<2xf32> to vector<2x1xf32>
    %350 = vector.broadcast %5 : vector<1x1xf32> to vector<2x1xf32>
    %351 = arith.addf %349, %350 : vector<2x1xf32>
    %c0_244 = arith.constant 0 : index
    %c0_245 = arith.constant 0 : index
    %352 = vector.load %arg8[%c0_244, %c0_245] : memref<2x1xf32, #tpu.memory_space<vmem>>, vector<2x1xf32>
    tpu.vector_store %arg8[%c0_244, %c0_245], %351 {strides = array<i32>} : memref<2x1xf32, #tpu.memory_space<vmem>>, vector<2x1xf32>,
    return
  }
}

</mosaic_0001>

<llo_original>
// kernel: rnn_score_forward.1
$region0: #{rnn_score_forward.1}
  #allocation0 [shape = 'u32[]', space=smem, size = 0x4, offset = 0x4, fixed_abs, tag = 'smem constant byte address 0x4 - core index']
  #allocation1 [shape = 'u32[144,128]{1,0:T(1,128)}', space=vmem, size = 0x12000, scoped, tag = 'internal scratch']
  #allocation2 [shape = 'f32[132,64]{1,0:T(8,128)}', space=vmem, size = 0x11000, scoped, tag = 'scratch operand']
  #allocation3 [shape = 'f32[26,32]{1,0:T(8,128)}', space=vmem, size = 0x4000, scoped, tag = 'scratch operand']
  %s0 = inlined_call_operand.vmem [shape: f32[132,120], index: 0, kind: input, shape index: {}]
  %s1 = inlined_call_operand.vmem [shape: f32[2,32], index: 1, kind: input, shape index: {}]
  %s2 = inlined_call_operand.vmem [shape: f32[120,64], index: 2, kind: input, shape index: {}]
  %s3 = inlined_call_operand.vmem [shape: f32[30,64,32], index: 3, kind: input, shape index: {}]
  %s4 = inlined_call_operand.vmem [shape: f32[10,32,64], index: 4, kind: input, shape index: {}]
  %s5 = inlined_call_operand.vmem [shape: f32[32,32], index: 5, kind: input, shape index: {}]
  %s6 = inlined_call_operand.vmem [shape: f32[16,64], index: 6, kind: input, shape index: {}]
  %s7 = inlined_call_operand.vmem [shape: f32[8,64], index: 7, kind: input, shape index: {}]
  %s8 = inlined_call_operand.vmem [shape: f32[2,1], index: 8, kind: output, shape index: {}]
  %s9 = sld [smem:[#allocation0]]
  $region42: #{rnn_score_forward.1} parent=0
    _
  %s11 = ssub.s32 1, %s9
  %s12 = scalar_select 0, %s11, %s9
  // Predicated region
  $region2: #{rnn_score_forward.1} parent=0 // pred_check
    _
  $region3: #{rnn_score_forward.1} parent=0 // pred_check_branch
    %14 = sbr.rel (0) target = $region5
  $region4: #{rnn_score_forward.1} parent=0 // pred_region
    _
  $region5: #{rnn_score_forward.1} parent=0 // pred_fallthru
    _
  // Predicated region
  $region6: #{rnn_score_forward.1} parent=0 // pred_check
    _
  $region7: #{rnn_score_forward.1} parent=0 // pred_check_branch
    %16 = sbr.rel (0) target = $region9
  $region8: #{rnn_score_forward.1} parent=0 // pred_region
    _
  $region9: #{rnn_score_forward.1} parent=0 // pred_fallthru
    _
  // Predicated region
  $region10: #{rnn_score_forward.1} parent=0 // pred_check
    _
  $region11: #{rnn_score_forward.1} parent=0 // pred_check_branch
    %18 = sbr.rel (0) target = $region13
  $region12: #{rnn_score_forward.1} parent=0 // pred_region
    _
  $region13: #{rnn_score_forward.1} parent=0 // pred_fallthru
    _
  // Predicated region
  $region14: #{rnn_score_forward.1} parent=0 // pred_check
    _
  $region15: #{rnn_score_forward.1} parent=0 // pred_check_branch
    %20 = sbr.rel (0) target = $region17
  $region16: #{rnn_score_forward.1} parent=0 // pred_region
    _
  $region17: #{rnn_score_forward.1} parent=0 // pred_fallthru
    _
  // Predicated region
  $region18: #{rnn_score_forward.1} parent=0 // pred_check
    _
  $region19: #{rnn_score_forward.1} parent=0 // pred_check_branch
    %22 = sbr.rel (0) target = $region21
  $region20: #{rnn_score_forward.1} parent=0 // pred_region
    _
  $region21: #{rnn_score_forward.1} parent=0 // pred_fallthru
    _
  // Predicated region
  $region22: #{rnn_score_forward.1} parent=0 // pred_check
    _
  $region23: #{rnn_score_forward.1} parent=0 // pred_check_branch
    %24 = sbr.rel (0) target = $region25
  $region24: #{rnn_score_forward.1} parent=0 // pred_region
    _
  $region25: #{rnn_score_forward.1} parent=0 // pred_fallthru
    _
  // Predicated region
  $region26: #{rnn_score_forward.1} parent=0 // pred_check
    _
  $region27: #{rnn_score_forward.1} parent=0 // pred_check_branch
    %26 = sbr.rel (0) target = $region29
  $region28: #{rnn_score_forward.1} parent=0 // pred_region
    _
  $region29: #{rnn_score_forward.1} parent=0 // pred_fallthru
    _
  // Predicated region
  $region30: #{rnn_score_forward.1} parent=0 // pred_check
    _
  $region31: #{rnn_score_forward.1} parent=0 // pred_check_branch
    %28 = sbr.rel (0) target = $region33
  $region32: #{rnn_score_forward.1} parent=0 // pred_region
    _
  $region33: #{rnn_score_forward.1} parent=0 // pred_fallthru
    _
  %v29 = vld [vmem:[%s7] sm:$0x1]
  %v30 = vld [vmem:[%s7 + $0x1] sm:$0x1]
  %v31 = vld [vmem:[%s7 + $0x2] sm:$0x1]
  %v32 = vld [vmem:[%s7 + $0x3] sm:$0x1]
  %v33 = vld [vmem:[%s7 + $0x4] sm:$0x1]
  %v34 = vld [vmem:[%s7 + $0x5] sm:$0x1]
  %v35 = vld [vmem:[%s0] sm:$0xff]
  %v36 = vld [vmem:[%s0 + $0x8] sm:$0xff]
  %v37 = vld [vmem:[%s0 + $0x10] sm:$0xff]
  %v38 = vld [vmem:[%s0 + $0x18] sm:$0xff]
  %v39 = vld [vmem:[%s0 + $0x20] sm:$0xff]
  %v40 = vld [vmem:[%s0 + $0x28] sm:$0xff]
  %v41 = vld [vmem:[%s0 + $0x30] sm:$0xff]
  %v42 = vld [vmem:[%s0 + $0x38] sm:$0xff]
  %v43 = vld [vmem:[%s0 + $0x40] sm:$0xff]
  %v44 = vld [vmem:[%s0 + $0x48] sm:$0xff]
  %v45 = vld [vmem:[%s0 + $0x50] sm:$0xff]
  %v46 = vld [vmem:[%s0 + $0x58] sm:$0xff]
  %v47 = vld [vmem:[%s0 + $0x60] sm:$0xff]
  %v48 = vld [vmem:[%s0 + $0x68] sm:$0xff]
  %v49 = vld [vmem:[%s0 + $0x70] sm:$0xff]
  %v50 = vld [vmem:[%s0 + $0x78] sm:$0xff]
  %v51 = vld [vmem:[%s0 + $0x80] sm:$0xf]
  %v52 = vld [vmem:[%s2] sm:$0xff]
  %v53 = vld [vmem:[%s2 + $0x8] sm:$0xff]
  %v54 = vld [vmem:[%s2 + $0x10] sm:$0xff]
  %v55 = vld [vmem:[%s2 + $0x18] sm:$0xff]
  %v56 = vld [vmem:[%s2 + $0x20] sm:$0xff]
  %v57 = vld [vmem:[%s2 + $0x28] sm:$0xff]
  %v58 = vld [vmem:[%s2 + $0x30] sm:$0xff]
  %v59 = vld [vmem:[%s2 + $0x38] sm:$0xff]
  %v60 = vld [vmem:[%s2 + $0x40] sm:$0xff]
  %v61 = vld [vmem:[%s2 + $0x48] sm:$0xff]
  %v62 = vld [vmem:[%s2 + $0x50] sm:$0xff]
  %v63 = vld [vmem:[%s2 + $0x58] sm:$0xff]
  %v64 = vld [vmem:[%s2 + $0x60] sm:$0xff]
  %v65 = vld [vmem:[%s2 + $0x68] sm:$0xff]
  %v66 = vld [vmem:[%s2 + $0x70] sm:$0xff]
  %v67 = vlaneseq
  %v68 = vshrl.u32 %v67, 7
  %v69 = vsub.s32 0, %v68
  %v70 = vrot.slane %v29, %v69
  %vm71 = vcmask 982016
  %v73 = vsel %vm71, %v35, 0
  %v76 = vsel %vm71, %v36, 0
  %v79 = vsel %vm71, %v37, 0
  %v82 = vsel %vm71, %v38, 0
  %v85 = vsel %vm71, %v39, 0
  %v88 = vsel %vm71, %v40, 0
  %v91 = vsel %vm71, %v41, 0
  %v94 = vsel %vm71, %v42, 0
  %v97 = vsel %vm71, %v43, 0
  %v100 = vsel %vm71, %v44, 0
  %v103 = vsel %vm71, %v45, 0
  %v106 = vsel %vm71, %v46, 0
  %v109 = vsel %vm71, %v47, 0
  %v112 = vsel %vm71, %v48, 0
  %v115 = vsel %vm71, %v49, 0
  %v118 = vsel %vm71, %v50, 0
  %v121 = vsel %vm71, %v51, 0
  %123 = vmatprep.subr.mxu0 0.0
  %124 = vmatpush1.msra.mxu0 %v52
  %125 = vmatprep.subr.mxu0 0.0
  %126 = vmatpush1.msra.mxu0 %v53
  %127 = vmatprep.subr.mxu0 0.0
  %128 = vmatpush1.msra.mxu0 %v54
  %129 = vmatprep.subr.mxu0 0.0
  %130 = vmatpush1.msra.mxu0 %v55
  %131 = vmatprep.subr.mxu0 0.0
  %132 = vmatpush1.msra.mxu0 %v56
  %133 = vmatprep.subr.mxu0 0.0
  %134 = vmatpush1.msra.mxu0 %v57
  %135 = vmatprep.subr.mxu0 0.0
  %136 = vmatpush1.msra.mxu0 %v58
  %137 = vmatprep.subr.mxu0 0.0
  %138 = vmatpush1.msra.mxu0 %v59
  %139 = vmatprep.subr.mxu0 0.0
  %140 = vmatpush1.msra.mxu0 %v60
  %141 = vmatprep.subr.mxu0 0.0
  %142 = vmatpush1.msra.mxu0 %v61
  %143 = vmatprep.subr.mxu0 0.0
  %144 = vmatpush1.msra.mxu0 %v62
  %145 = vmatprep.subr.mxu0 0.0
  %146 = vmatpush1.msra.mxu0 %v63
  %147 = vmatprep.subr.mxu0 0.0
  %148 = vmatpush1.msra.mxu0 %v64
  %149 = vmatprep.subr.mxu0 0.0
  %150 = vmatpush1.msra.mxu0 %v65
  %151 = vmatprep.subr.mxu0 0.0
  %152 = vmatpush1.msra.mxu0 %v66
  %153 = vmatprep.subr.mxu0 0.0
  %154 = vmatpush1.msra.mxu0 0.0
  %155 = vmatprep.subr.mxu0 0.0
  %156 = vmatpush1.msra.mxu0 0.0
  %157 = vmatprep.subr.mxu0 0.0
  %158 = vmatpush1.msra.mxu0 0.0
  %159 = vmatprep.subr.mxu0 0.0
  %160 = vmatpush1.msra.mxu0 0.0
  %161 = vmatprep.subr.mxu0 0.0
  %162 = vmatpush1.msra.mxu0 0.0
  %163 = vmatprep.subr.mxu0 0.0
  %164 = vmatpush1.msra.mxu0 0.0
  %165 = vmatprep.subr.mxu0 0.0
  %166 = vmatpush1.msra.mxu0 0.0
  %167 = vmatprep.subr.mxu0 0.0
  %168 = vmatpush1.msra.mxu0 0.0
  %169 = vmatprep.subr.mxu0 0.0
  %170 = vmatpush1.msra.mxu0 0.0
  %171 = vmatprep.subr.mxu0 0.0
  %172 = vmatpush1.msra.mxu0 0.0
  %173 = vmatprep.subr.mxu0 0.0
  %174 = vmatpush1.msra.mxu0 0.0
  %175 = vmatprep.subr.mxu0 0.0
  %176 = vmatpush1.msra.mxu0 0.0
  %177 = vmatprep.subr.mxu0 0.0
  %178 = vmatpush1.msra.mxu0 0.0
  %179 = vmatprep.subr.mxu0 0.0
  %180 = vmatpush1.msra.mxu0 0.0
  %181 = vmatprep.subr.mxu0 0.0
  %182 = vmatpush1.msra.mxu0 0.0
  %183 = vmatprep.subr.mxu0 0.0
  %184 = vmatpush1.msra.mxu0 0.0
  %185 = vmatprep.subr.mxu0 0.0
  %186 = vmatpush1.msra.mxu0 0.0
  %187 = vmatprep.mubr.f32.mxu0 0.0
  %188 = vmatmul.mubr.f32.gmra.mrb[0].mxu0 %v73
  %v189 = vpop.f32.mrb[0].mxu0
  %v190 = vadd.f32 %v70, %v189
  %v191 = vpop.f32.mrb[0].mxu0
  %192 = vmatprep.mubr.f32.mxu0 0.0
  %193 = vmatmul.mubr.f32.gmra.mrb[0].mxu0 %v76
  %v194 = vpop.f32.mrb[0].mxu0
  %v195 = vadd.f32 %v70, %v194
  %v196 = vpop.f32.mrb[0].mxu0
  %197 = vmatprep.mubr.f32.mxu0 0.0
  %198 = vmatmul.mubr.f32.gmra.mrb[0].mxu0 %v79
  %v199 = vpop.f32.mrb[0].mxu0
  %v200 = vadd.f32 %v70, %v199
  %v201 = vpop.f32.mrb[0].mxu0
  %202 = vmatprep.mubr.f32.mxu0 0.0
  %203 = vmatmul.mubr.f32.gmra.mrb[0].mxu0 %v82
  %v204 = vpop.f32.mrb[0].mxu0
  %v205 = vadd.f32 %v70, %v204
  %v206 = vpop.f32.mrb[0].mxu0
  %207 = vmatprep.mubr.f32.mxu0 0.0
  %208 = vmatmul.mubr.f32.gmra.mrb[0].mxu0 %v85
  %v209 = vpop.f32.mrb[0].mxu0
  %v210 = vadd.f32 %v70, %v209
  %v211 = vpop.f32.mrb[0].mxu0
  %212 = vmatprep.mubr.f32.mxu0 0.0
  %213 = vmatmul.mubr.f32.gmra.mrb[0].mxu0 %v88
  %v214 = vpop.f32.mrb[0].mxu0
  %v215 = vadd.f32 %v70, %v214
  %v216 = vpop.f32.mrb[0].mxu0
  %217 = vmatprep.mubr.f32.mxu0 0.0
  %218 = vmatmul.mubr.f32.gmra.mrb[0].mxu0 %v91
  %v219 = vpop.f32.mrb[0].mxu0
  %v220 = vadd.f32 %v70, %v219
  %v221 = vpop.f32.mrb[0].mxu0
  %222 = vmatprep.mubr.f32.mxu0 0.0
  %223 = vmatmul.mubr.f32.gmra.mrb[0].mxu0 %v94
  %v224 = vpop.f32.mrb[0].mxu0
  %v225 = vadd.f32 %v70, %v224
  %v226 = vpop.f32.mrb[0].mxu0
  %227 = vmatprep.mubr.f32.mxu0 0.0
  %228 = vmatmul.mubr.f32.gmra.mrb[0].mxu0 %v97
  %v229 = vpop.f32.mrb[0].mxu0
  %v230 = vadd.f32 %v70, %v229
  %v231 = vpop.f32.mrb[0].mxu0
  %232 = vmatprep.mubr.f32.mxu0 0.0
  %233 = vmatmul.mubr.f32.gmra.mrb[0].mxu0 %v100
  %v234 = vpop.f32.mrb[0].mxu0
  %v235 = vadd.f32 %v70, %v234
  %v236 = vpop.f32.mrb[0].mxu0
  %237 = vmatprep.mubr.f32.mxu0 0.0
  %238 = vmatmul.mubr.f32.gmra.mrb[0].mxu0 %v103
  %v239 = vpop.f32.mrb[0].mxu0
  %v240 = vadd.f32 %v70, %v239
  %v241 = vpop.f32.mrb[0].mxu0
  %242 = vmatprep.mubr.f32.mxu0 0.0
  %243 = vmatmul.mubr.f32.gmra.mrb[0].mxu0 %v106
  %v244 = vpop.f32.mrb[0].mxu0
  %v245 = vadd.f32 %v70, %v244
  %v246 = vpop.f32.mrb[0].mxu0
  %247 = vmatprep.mubr.f32.mxu0 0.0
  %248 = vmatmul.mubr.f32.gmra.mrb[0].mxu0 %v109
  %v249 = vpop.f32.mrb[0].mxu0
  %v250 = vadd.f32 %v70, %v249
  %v251 = vpop.f32.mrb[0].mxu0
  %252 = vmatprep.mubr.f32.mxu0 0.0
  %253 = vmatmul.mubr.f32.gmra.mrb[0].mxu0 %v112
  %v254 = vpop.f32.mrb[0].mxu0
  %v255 = vadd.f32 %v70, %v254
  %v256 = vpop.f32.mrb[0].mxu0
  %257 = vmatprep.mubr.f32.mxu0 0.0
  %258 = vmatmul.mubr.f32.gmra.mrb[0].mxu0 %v115
  %v259 = vpop.f32.mrb[0].mxu0
  %v260 = vadd.f32 %v70, %v259
  %v261 = vpop.f32.mrb[0].mxu0
  %262 = vmatprep.mubr.f32.mxu0 0.0
  %263 = vmatmul.mubr.f32.gmra.mrb[0].mxu0 %v118
  %v264 = vpop.f32.mrb[0].mxu0
  %v265 = vadd.f32 %v70, %v264
  %v266 = vpop.f32.mrb[0].mxu0
  %267 = vmatprep.mubr.f32.mxu0 0.0
  %268 = vmatmul.mubr.f32.gmra.mrb[0].mxu0 %v121
  %v269 = vpop.f32.mrb[0].mxu0
  %v270 = vadd.f32 %v70, %v269
  %v271 = vpop.f32.mrb[0].mxu0
  %272 = vdwg.mxu0
  %v273 = vmax.f32 %v190, 0.0
  %v274 = vmax.f32 %v195, 0.0
  %v275 = vmax.f32 %v200, 0.0
  %v276 = vmax.f32 %v205, 0.0
  %v277 = vmax.f32 %v210, 0.0
  %v278 = vmax.f32 %v215, 0.0
  %v279 = vmax.f32 %v220, 0.0
  %v280 = vmax.f32 %v225, 0.0
  %v281 = vmax.f32 %v230, 0.0
  %v282 = vmax.f32 %v235, 0.0
  %v283 = vmax.f32 %v240, 0.0
  %v284 = vmax.f32 %v245, 0.0
  %v285 = vmax.f32 %v250, 0.0
  %v286 = vmax.f32 %v255, 0.0
  %v287 = vmax.f32 %v260, 0.0
  %v288 = vmax.f32 %v265, 0.0
  %v289 = vmax.f32 %v270, 0.0
  %vm290 = vcmask 523264
  %291 = vst.msk [vmem:[#allocation2] sm:$0xff] %vm290, %v273
  %292 = vst.msk [vmem:[#allocation2 + $0x8] sm:$0xff] %vm290, %v274
  %293 = vst.msk [vmem:[#allocation2 + $0x10] sm:$0xff] %vm290, %v275
  %294 = vst.msk [vmem:[#allocation2 + $0x18] sm:$0xff] %vm290, %v276
  %295 = vst.msk [vmem:[#allocation2 + $0x20] sm:$0xff] %vm290, %v277
  %296 = vst.msk [vmem:[#allocation2 + $0x28] sm:$0xff] %vm290, %v278
  %297 = vst.msk [vmem:[#allocation2 + $0x30] sm:$0xff] %vm290, %v279
  %298 = vst.msk [vmem:[#allocation2 + $0x38] sm:$0xff] %vm290, %v280
  %299 = vst.msk [vmem:[#allocation2 + $0x40] sm:$0xff] %vm290, %v281
  %300 = vst.msk [vmem:[#allocation2 + $0x48] sm:$0xff] %vm290, %v282
  %301 = vst.msk [vmem:[#allocation2 + $0x50] sm:$0xff] %vm290, %v283
  %302 = vst.msk [vmem:[#allocation2 + $0x58] sm:$0xff] %vm290, %v284
  %303 = vst.msk [vmem:[#allocation2 + $0x60] sm:$0xff] %vm290, %v285
  %304 = vst.msk [vmem:[#allocation2 + $0x68] sm:$0xff] %vm290, %v286
  %305 = vst.msk [vmem:[#allocation2 + $0x70] sm:$0xff] %vm290, %v287
  %306 = vst.msk [vmem:[#allocation2 + $0x78] sm:$0xff] %vm290, %v288
  %vm307 = vcmask 519168
  %308 = vst.msk [vmem:[#allocation2 + $0x80] sm:$0xf] %vm307, %v289
  %v309 = vld [vmem:[#allocation2] sm:$0xff]
  %v310 = vld [vmem:[#allocation2 + $0x8] sm:$0xff]
  %v311 = vld [vmem:[#allocation2 + $0x10] sm:$0xff]
  %v312 = vld [vmem:[#allocation2 + $0x18] sm:$0x3]
  %v313 = vld [vmem:[%s3] sm:$0xff]
  %v314 = vld [vmem:[%s3 + $0x8] sm:$0xff]
  %v315 = vld [vmem:[%s3 + $0x10] sm:$0xff]
  %v316 = vld [vmem:[%s3 + $0x18] sm:$0xff]
  %v317 = vld [vmem:[%s3 + $0x20] sm:$0xff]
  %v318 = vld [vmem:[%s3 + $0x28] sm:$0xff]
  %v319 = vld [vmem:[%s3 + $0x30] sm:$0xff]
  %v320 = vld [vmem:[%s3 + $0x38] sm:$0xff]
  %v321 = vld [vmem:[#allocation2 + $0x2c] sm:$0xff]
  %v322 = vld [vmem:[#allocation2 + $0x34] sm:$0xff]
  %v323 = vld [vmem:[#allocation2 + $0x3c] sm:$0xff]
  %v324 = vld [vmem:[#allocation2 + $0x44] sm:$0x3]
  %s325 = scalar_lea.vmem %s3, 64
  %v326 = vld [vmem:[%s325] sm:$0xff]
  %v327 = vld [vmem:[%s325 + $0x8] sm:$0xff]
  %v328 = vld [vmem:[%s325 + $0x10] sm:$0xff]
  %v329 = vld [vmem:[%s325 + $0x18] sm:$0xff]
  %v330 = vld [vmem:[%s325 + $0x20] sm:$0xff]
  %v331 = vld [vmem:[%s325 + $0x28] sm:$0xff]
  %v332 = vld [vmem:[%s325 + $0x30] sm:$0xff]
  %v333 = vld [vmem:[%s325 + $0x38] sm:$0xff]
  %v335 = vsel %vm290, %v321, 0
  %v338 = vsel %vm290, %v322, 0
  %v341 = vsel %vm290, %v323, 0
  %v344 = vsel %vm290, %v324, 0
  %346 = vmatprep.subr.mxu0 0.0
  %347 = vmatpush1.msra.mxu0 %v326
  %348 = vmatprep.subr.mxu0 0.0
  %349 = vmatpush1.msra.mxu0 %v327
  %350 = vmatprep.subr.mxu0 0.0
  %351 = vmatpush1.msra.mxu0 %v328
  %352 = vmatprep.subr.mxu0 0.0
  %353 = vmatpush1.msra.mxu0 %v329
  %354 = vmatprep.subr.mxu0 0.0
  %355 = vmatpush1.msra.mxu0 %v330
  %356 = vmatprep.subr.mxu0 0.0
  %357 = vmatpush1.msra.mxu0 %v331
  %358 = vmatprep.subr.mxu0 0.0
  %359 = vmatpush1.msra.mxu0 %v332
  %360 = vmatprep.subr.mxu0 0.0
  %361 = vmatpush1.msra.mxu0 %v333
  %362 = vmatprep.subr.mxu0 0.0
  %363 = vmatpush1.msra.mxu0 0.0
  %364 = vmatprep.subr.mxu0 0.0
  %365 = vmatpush1.msra.mxu0 0.0
  %366 = vmatprep.subr.mxu0 0.0
  %367 = vmatpush1.msra.mxu0 0.0
  %368 = vmatprep.subr.mxu0 0.0
  %369 = vmatpush1.msra.mxu0 0.0
  %370 = vmatprep.subr.mxu0 0.0
  %371 = vmatpush1.msra.mxu0 0.0
  %372 = vmatprep.subr.mxu0 0.0
  %373 = vmatpush1.msra.mxu0 0.0
  %374 = vmatprep.subr.mxu0 0.0
  %375 = vmatpush1.msra.mxu0 0.0
  %376 = vmatprep.subr.mxu0 0.0
  %377 = vmatpush1.msra.mxu0 0.0
  %378 = vmatprep.subr.mxu0 0.0
  %379 = vmatpush1.msra.mxu0 0.0
  %380 = vmatprep.subr.mxu0 0.0
  %381 = vmatpush1.msra.mxu0 0.0
  %382 = vmatprep.subr.mxu0 0.0
  %383 = vmatpush1.msra.mxu0 0.0
  %384 = vmatprep.subr.mxu0 0.0
  %385 = vmatpush1.msra.mxu0 0.0
  %386 = vmatprep.subr.mxu0 0.0
  %387 = vmatpush1.msra.mxu0 0.0
  %388 = vmatprep.subr.mxu0 0.0
  %389 = vmatpush1.msra.mxu0 0.0
  %390 = vmatprep.subr.mxu0 0.0
  %391 = vmatpush1.msra.mxu0 0.0
  %392 = vmatprep.subr.mxu0 0.0
  %393 = vmatpush1.msra.mxu0 0.0
  %394 = vmatprep.subr.mxu0 0.0
  %395 = vmatpush1.msra.mxu0 0.0
  %396 = vmatprep.subr.mxu0 0.0
  %397 = vmatpush1.msra.mxu0 0.0
  %398 = vmatprep.subr.mxu0 0.0
  %399 = vmatpush1.msra.mxu0 0.0
  %400 = vmatprep.subr.mxu0 0.0
  %401 = vmatpush1.msra.mxu0 0.0
  %402 = vmatprep.subr.mxu0 0.0
  %403 = vmatpush1.msra.mxu0 0.0
  %404 = vmatprep.subr.mxu0 0.0
  %405 = vmatpush1.msra.mxu0 0.0
  %406 = vmatprep.subr.mxu0 0.0
  %407 = vmatpush1.msra.mxu0 0.0
  %408 = vmatprep.subr.mxu0 0.0
  %409 = vmatpush1.msra.mxu0 0.0
  %410 = vmatprep.mubr.f32.mxu0 0.0
  %411 = vmatmul.mubr.f32.gmra.mrb[0].mxu0 %v335
  %v412 = vpop.f32.mrb[0].mxu0
  %v413 = vadd.f32 0.0, %v412
  %v414 = vpop.f32.mrb[0].mxu0
  %415 = vmatprep.mubr.f32.mxu0 0.0
  %416 = vmatmul.mubr.f32.gmra.mrb[0].mxu0 %v338
  %v417 = vpop.f32.mrb[0].mxu0
  %v418 = vadd.f32 0.0, %v417
  %v419 = vpop.f32.mrb[0].mxu0
  %420 = vmatprep.mubr.f32.mxu0 0.0
  %421 = vmatmul.mubr.f32.gmra.mrb[0].mxu0 %v341
  %v422 = vpop.f32.mrb[0].mxu0
  %v423 = vadd.f32 0.0, %v422
  %v424 = vpop.f32.mrb[0].mxu0
  %425 = vmatprep.mubr.f32.mxu0 0.0
  %426 = vmatmul.mubr.f32.gmra.mrb[0].mxu0 %v344
  %v427 = vpop.f32.mrb[0].mxu0
  %v428 = vadd.f32 0.0, %v427
  %v429 = vpop.f32.mrb[0].mxu0
  %430 = vdwg.mxu0
  %v432 = vsel %vm290, %v309, 0
  %v435 = vsel %vm290, %v310, 0
  %v438 = vsel %vm290, %v311, 0
  %v441 = vsel %vm290, %v312, 0
  %443 = vmatprep.subr.mxu0 0.0
  %444 = vmatpush1.msra.mxu0 %v313
  %445 = vmatprep.subr.mxu0 0.0
  %446 = vmatpush1.msra.mxu0 %v314
  %447 = vmatprep.subr.mxu0 0.0
  %448 = vmatpush1.msra.mxu0 %v315
  %449 = vmatprep.subr.mxu0 0.0
  %450 = vmatpush1.msra.mxu0 %v316
  %451 = vmatprep.subr.mxu0 0.0
  %452 = vmatpush1.msra.mxu0 %v317
  %453 = vmatprep.subr.mxu0 0.0
  %454 = vmatpush1.msra.mxu0 %v318
  %455 = vmatprep.subr.mxu0 0.0
  %456 = vmatpush1.msra.mxu0 %v319
  %457 = vmatprep.subr.mxu0 0.0
  %458 = vmatpush1.msra.mxu0 %v320
  %459 = vmatprep.subr.mxu0 0.0
  %460 = vmatpush1.msra.mxu0 0.0
  %461 = vmatprep.subr.mxu0 0.0
  %462 = vmatpush1.msra.mxu0 0.0
  %463 = vmatprep.subr.mxu0 0.0
  %464 = vmatpush1.msra.mxu0 0.0
  %465 = vmatprep.subr.mxu0 0.0
  %466 = vmatpush1.msra.mxu0 0.0
  %467 = vmatprep.subr.mxu0 0.0
  %468 = vmatpush1.msra.mxu0 0.0
  %469 = vmatprep.subr.mxu0 0.0
  %470 = vmatpush1.msra.mxu0 0.0
  %471 = vmatprep.subr.mxu0 0.0
  %472 = vmatpush1.msra.mxu0 0.0
  %473 = vmatprep.subr.mxu0 0.0
  %474 = vmatpush1.msra.mxu0 0.0
  %475 = vmatprep.subr.mxu0 0.0
  %476 = vmatpush1.msra.mxu0 0.0
  %477 = vmatprep.subr.mxu0 0.0
  %478 = vmatpush1.msra.mxu0 0.0
  %479 = vmatprep.subr.mxu0 0.0
  %480 = vmatpush1.msra.mxu0 0.0
  %481 = vmatprep.subr.mxu0 0.0
  %482 = vmatpush1.msra.mxu0 0.0
  %483 = vmatprep.subr.mxu0 0.0
  %484 = vmatpush1.msra.mxu0 0.0
  %485 = vmatprep.subr.mxu0 0.0
  %486 = vmatpush1.msra.mxu0 0.0
  %487 = vmatprep.subr.mxu0 0.0
  %488 = vmatpush1.msra.mxu0 0.0
  %489 = vmatprep.subr.mxu0 0.0
  %490 = vmatpush1.msra.mxu0 0.0
  %491 = vmatprep.subr.mxu0 0.0
  %492 = vmatpush1.msra.mxu0 0.0
  %493 = vmatprep.subr.mxu0 0.0
  %494 = vmatpush1.msra.mxu0 0.0
  %495 = vmatprep.subr.mxu0 0.0
  %496 = vmatpush1.msra.mxu0 0.0
  %497 = vmatprep.subr.mxu0 0.0
  %498 = vmatpush1.msra.mxu0 0.0
  %499 = vmatprep.subr.mxu0 0.0
  %500 = vmatpush1.msra.mxu0 0.0
  %501 = vmatprep.subr.mxu0 0.0
  %502 = vmatpush1.msra.mxu0 0.0
  %503 = vmatprep.subr.mxu0 0.0
  %504 = vmatpush1.msra.mxu0 0.0
  %505 = vmatprep.subr.mxu0 0.0
  %506 = vmatpush1.msra.mxu0 0.0
  %507 = vmatprep.mubr.f32.mxu0 0.0
  %508 = vmatmul.mubr.f32.gmra.mrb[0].mxu0 %v432
  %v509 = vpop.f32.mrb[0].mxu0
  %v510 = vadd.f32 %v413, %v509
  %v511 = vpop.f32.mrb[0].mxu0
  %512 = vmatprep.mubr.f32.mxu0 0.0
  %513 = vmatmul.mubr.f32.gmra.mrb[0].mxu0 %v435
  %v514 = vpop.f32.mrb[0].mxu0
  %v515 = vadd.f32 %v418, %v514
  %v516 = vpop.f32.mrb[0].mxu0
  %517 = vmatprep.mubr.f32.mxu0 0.0
  %518 = vmatmul.mubr.f32.gmra.mrb[0].mxu0 %v438
  %v519 = vpop.f32.mrb[0].mxu0
  %v520 = vadd.f32 %v423, %v519
  %v521 = vpop.f32.mrb[0].mxu0
  %522 = vmatprep.mubr.f32.mxu0 0.0
  %523 = vmatmul.mubr.f32.gmra.mrb[0].mxu0 %v441
  %v524 = vpop.f32.mrb[0].mxu0
  %v525 = vadd.f32 %v428, %v524
  %v526 = vpop.f32.mrb[0].mxu0
  %527 = vdwg.mxu0
  %v528 = vld [vmem:[#allocation2 + $0x58] sm:$0xff]
  %v529 = vld [vmem:[#allocation2 + $0x60] sm:$0xff]
  %v530 = vld [vmem:[#allocation2 + $0x68] sm:$0xff]
  %v531 = vld [vmem:[#allocation2 + $0x70] sm:$0x3]
  %s532 = scalar_lea.vmem %s3, 128
  %v533 = vld [vmem:[%s532] sm:$0xff]
  %v534 = vld [vmem:[%s532 + $0x8] sm:$0xff]
  %v535 = vld [vmem:[%s532 + $0x10] sm:$0xff]
  %v536 = vld [vmem:[%s532 + $0x18] sm:$0xff]
  %v537 = vld [vmem:[%s532 + $0x20] sm:$0xff]
  %v538 = vld [vmem:[%s532 + $0x28] sm:$0xff]
  %v539 = vld [vmem:[%s532 + $0x30] sm:$0xff]
  %v540 = vld [vmem:[%s532 + $0x38] sm:$0xff]
  %v542 = vsel %vm290, %v528, 0
  %v545 = vsel %vm290, %v529, 0
  %v548 = vsel %vm290, %v530, 0
  %v551 = vsel %vm290, %v531, 0
  %553 = vmatprep.subr.mxu0 0.0
  %554 = vmatpush1.msra.mxu0 %v533
  %555 = vmatprep.subr.mxu0 0.0
  %556 = vmatpush1.msra.mxu0 %v534
  %557 = vmatprep.subr.mxu0 0.0
  %558 = vmatpush1.msra.mxu0 %v535
  %559 = vmatprep.subr.mxu0 0.0
  %560 = vmatpush1.msra.mxu0 %v536
  %561 = vmatprep.subr.mxu0 0.0
  %562 = vmatpush1.msra.mxu0 %v537
  %563 = vmatprep.subr.mxu0 0.0
  %564 = vmatpush1.msra.mxu0 %v538
  %565 = vmatprep.subr.mxu0 0.0
  %566 = vmatpush1.msra.mxu0 %v539
  %567 = vmatprep.subr.mxu0 0.0
  %568 = vmatpush1.msra.mxu0 %v540
  %569 = vmatprep.subr.mxu0 0.0
  %570 = vmatpush1.msra.mxu0 0.0
  %571 = vmatprep.subr.mxu0 0.0
  %572 = vmatpush1.msra.mxu0 0.0
  %573 = vmatprep.subr.mxu0 0.0
  %574 = vmatpush1.msra.mxu0 0.0
  %575 = vmatprep.subr.mxu0 0.0
  %576 = vmatpush1.msra.mxu0 0.0
  %577 = vmatprep.subr.mxu0 0.0
  %578 = vmatpush1.msra.mxu0 0.0
  %579 = vmatprep.subr.mxu0 0.0
  %580 = vmatpush1.msra.mxu0 0.0
  %581 = vmatprep.subr.mxu0 0.0
  %582 = vmatpush1.msra.mxu0 0.0
  %583 = vmatprep.subr.mxu0 0.0
  %584 = vmatpush1.msra.mxu0 0.0
  %585 = vmatprep.subr.mxu0 0.0
  %586 = vmatpush1.msra.mxu0 0.0
  %587 = vmatprep.subr.mxu0 0.0
  %588 = vmatpush1.msra.mxu0 0.0
  %589 = vmatprep.subr.mxu0 0.0
  %590 = vmatpush1.msra.mxu0 0.0
  %591 = vmatprep.subr.mxu0 0.0
  %592 = vmatpush1.msra.mxu0 0.0
  %593 = vmatprep.subr.mxu0 0.0
  %594 = vmatpush1.msra.mxu0 0.0
  %595 = vmatprep.subr.mxu0 0.0
  %596 = vmatpush1.msra.mxu0 0.0
  %597 = vmatprep.subr.mxu0 0.0
  %598 = vmatpush1.msra.mxu0 0.0
  %599 = vmatprep.subr.mxu0 0.0
  %600 = vmatpush1.msra.mxu0 0.0
  %601 = vmatprep.subr.mxu0 0.0
  %602 = vmatpush1.msra.mxu0 0.0
  %603 = vmatprep.subr.mxu0 0.0
  %604 = vmatpush1.msra.mxu0 0.0
  %605 = vmatprep.subr.mxu0 0.0
  %606 = vmatpush1.msra.mxu0 0.0
  %607 = vmatprep.subr.mxu0 0.0
  %608 = vmatpush1.msra.mxu0 0.0
  %609 = vmatprep.subr.mxu0 0.0
  %610 = vmatpush1.msra.mxu0 0.0
  %611 = vmatprep.subr.mxu0 0.0
  %612 = vmatpush1.msra.mxu0 0.0
  %613 = vmatprep.subr.mxu0 0.0
  %614 = vmatpush1.msra.mxu0 0.0
  %615 = vmatprep.subr.mxu0 0.0
  %616 = vmatpush1.msra.mxu0 0.0
  %617 = vmatprep.mubr.f32.mxu0 0.0
  %618 = vmatmul.mubr.f32.gmra.mrb[0].mxu0 %v542
  %v619 = vpop.f32.mrb[0].mxu0
  %v620 = vadd.f32 0.0, %v619
  %v621 = vpop.f32.mrb[0].mxu0
  %622 = vmatprep.mubr.f32.mxu0 0.0
  %623 = vmatmul.mubr.f32.gmra.mrb[0].mxu0 %v545
  %v624 = vpop.f32.mrb[0].mxu0
  %v625 = vadd.f32 0.0, %v624
  %v626 = vpop.f32.mrb[0].mxu0
  %627 = vmatprep.mubr.f32.mxu0 0.0
  %628 = vmatmul.mubr.f32.gmra.mrb[0].mxu0 %v548
  %v629 = vpop.f32.mrb[0].mxu0
  %v630 = vadd.f32 0.0, %v629
  %v631 = vpop.f32.mrb[0].mxu0
  %632 = vmatprep.mubr.f32.mxu0 0.0
  %633 = vmatmul.mubr.f32.gmra.mrb[0].mxu0 %v551
  %v634 = vpop.f32.mrb[0].mxu0
  %v635 = vadd.f32 0.0, %v634
  %v636 = vpop.f32.mrb[0].mxu0
  %637 = vdwg.mxu0
  %v638 = vadd.f32 %v510, %v620
  %v639 = vadd.f32 %v515, %v625
  %v640 = vadd.f32 %v520, %v630
  %v641 = vadd.f32 %v525, %v635
  %v642 = vld [vmem:[#allocation2 + $0x2] sm:$0xff]
  %v643 = vld [vmem:[#allocation2 + $0xa] sm:$0xff]
  %v644 = vld [vmem:[#allocation2 + $0x12] sm:$0xff]
  %v645 = vld [vmem:[#allocation2 + $0x1a] sm:$0x3]
  %s646 = scalar_lea.vmem %s3, 192
  %v647 = vld [vmem:[%s646] sm:$0xff]
  %v648 = vld [vmem:[%s646 + $0x8] sm:$0xff]
  %v649 = vld [vmem:[%s646 + $0x10] sm:$0xff]
  %v650 = vld [vmem:[%s646 + $0x18] sm:$0xff]
  %v651 = vld [vmem:[%s646 + $0x20] sm:$0xff]
  %v652 = vld [vmem:[%s646 + $0x28] sm:$0xff]
  %v653 = vld [vmem:[%s646 + $0x30] sm:$0xff]
  %v654 = vld [vmem:[%s646 + $0x38] sm:$0xff]
  %v656 = vsel %vm290, %v642, 0
  %v659 = vsel %vm290, %v643, 0
  %v662 = vsel %vm290, %v644, 0
  %v665 = vsel %vm290, %v645, 0
  %667 = vmatprep.subr.mxu0 0.0
  %668 = vmatpush1.msra.mxu0 %v647
  %669 = vmatprep.subr.mxu0 0.0
  %670 = vmatpush1.msra.mxu0 %v648
  %671 = vmatprep.subr.mxu0 0.0
  %672 = vmatpush1.msra.mxu0 %v649
  %673 = vmatprep.subr.mxu0 0.0
  %674 = vmatpush1.msra.mxu0 %v650
  %675 = vmatprep.subr.mxu0 0.0
  %676 = vmatpush1.msra.mxu0 %v651
  %677 = vmatprep.subr.mxu0 0.0
  %678 = vmatpush1.msra.mxu0 %v652
  %679 = vmatprep.subr.mxu0 0.0
  %680 = vmatpush1.msra.mxu0 %v653
  %681 = vmatprep.subr.mxu0 0.0
  %682 = vmatpush1.msra.mxu0 %v654
  %683 = vmatprep.subr.mxu0 0.0
  %684 = vmatpush1.msra.mxu0 0.0
  %685 = vmatprep.subr.mxu0 0.0
  %686 = vmatpush1.msra.mxu0 0.0
  %687 = vmatprep.subr.mxu0 0.0
  %688 = vmatpush1.msra.mxu0 0.0
  %689 = vmatprep.subr.mxu0 0.0
  %690 = vmatpush1.msra.mxu0 0.0
  %691 = vmatprep.subr.mxu0 0.0
  %692 = vmatpush1.msra.mxu0 0.0
  %693 = vmatprep.subr.mxu0 0.0
  %694 = vmatpush1.msra.mxu0 0.0
  %695 = vmatprep.subr.mxu0 0.0
  %696 = vmatpush1.msra.mxu0 0.0
  %697 = vmatprep.subr.mxu0 0.0
  %698 = vmatpush1.msra.mxu0 0.0
  %699 = vmatprep.subr.mxu0 0.0
  %700 = vmatpush1.msra.mxu0 0.0
  %701 = vmatprep.subr.mxu0 0.0
  %702 = vmatpush1.msra.mxu0 0.0
  %703 = vmatprep.subr.mxu0 0.0
  %704 = vmatpush1.msra.mxu0 0.0
  %705 = vmatprep.subr.mxu0 0.0
  %706 = vmatpush1.msra.mxu0 0.0
  %707 = vmatprep.subr.mxu0 0.0
  %708 = vmatpush1.msra.mxu0 0.0
  %709 = vmatprep.subr.mxu0 0.0
  %710 = vmatpush1.msra.mxu0 0.0
  %711 = vmatprep.subr.mxu0 0.0
  %712 = vmatpush1.msra.mxu0 0.0
  %713 = vmatprep.subr.mxu0 0.0
  %714 = vmatpush1.msra.mxu0 0.0
  %715 = vmatprep.subr.mxu0 0.0
  %716 = vmatpush1.msra.mxu0 0.0
  %717 = vmatprep.subr.mxu0 0.0
  %718 = vmatpush1.msra.mxu0 0.0
  %719 = vmatprep.subr.mxu0 0.0
  %720 = vmatpush1.msra.mxu0 0.0
  %721 = vmatprep.subr.mxu0 0.0
  %722 = vmatpush1.msra.mxu0 0.0
  %723 = vmatprep.subr.mxu0 0.0
  %724 = vmatpush1.msra.mxu0 0.0
  %725 = vmatprep.subr.mxu0 0.0
  %726 = vmatpush1.msra.mxu0 0.0
  %727 = vmatprep.subr.mxu0 0.0
  %728 = vmatpush1.msra.mxu0 0.0
  %729 = vmatprep.subr.mxu0 0.0
  %730 = vmatpush1.msra.mxu0 0.0
  %731 = vmatprep.mubr.f32.mxu0 0.0
  %732 = vmatmul.mubr.f32.gmra.mrb[0].mxu0 %v656
  %v733 = vpop.f32.mrb[0].mxu0
  %v734 = vadd.f32 0.0, %v733
  %v735 = vpop.f32.mrb[0].mxu0
  %736 = vmatprep.mubr.f32.mxu0 0.0
  %737 = vmatmul.mubr.f32.gmra.mrb[0].mxu0 %v659
  %v738 = vpop.f32.mrb[0].mxu0
  %v739 = vadd.f32 0.0, %v738
  %v740 = vpop.f32.mrb[0].mxu0
  %741 = vmatprep.mubr.f32.mxu0 0.0
  %742 = vmatmul.mubr.f32.gmra.mrb[0].mxu0 %v662
  %v743 = vpop.f32.mrb[0].mxu0
  %v744 = vadd.f32 0.0, %v743
  %v745 = vpop.f32.mrb[0].mxu0
  %746 = vmatprep.mubr.f32.mxu0 0.0
  %747 = vmatmul.mubr.f32.gmra.mrb[0].mxu0 %v665
  %v748 = vpop.f32.mrb[0].mxu0
  %v749 = vadd.f32 0.0, %v748
  %v750 = vpop.f32.mrb[0].mxu0
  %751 = vdwg.mxu0
  %v752 = vadd.f32 %v638, %v734
  %v753 = vadd.f32 %v639, %v739
  %v754 = vadd.f32 %v640, %v744
  %v755 = vadd.f32 %v641, %v749
  %v756 = vld [vmem:[#allocation2 + $0x2e] sm:$0xff]
  %v757 = vld [vmem:[#allocation2 + $0x36] sm:$0xff]
  %v758 = vld [vmem:[#allocation2 + $0x3e] sm:$0xff]
  %v759 = vld [vmem:[#allocation2 + $0x46] sm:$0x3]
  %s760 = scalar_lea.vmem %s3, 256
  %v761 = vld [vmem:[%s760] sm:$0xff]
  %v762 = vld [vmem:[%s760 + $0x8] sm:$0xff]
  %v763 = vld [vmem:[%s760 + $0x10] sm:$0xff]
  %v764 = vld [vmem:[%s760 + $0x18] sm:$0xff]
  %v765 = vld [vmem:[%s760 + $0x20] sm:$0xff]
  %v766 = vld [vmem:[%s760 + $0x28] sm:$0xff]
  %v767 = vld [vmem:[%s760 + $0x30] sm:$0xff]
  %v768 = vld [vmem:[%s760 + $0x38] sm:$0xff]
  %v770 = vsel %vm290, %v756, 0
  %v773 = vsel %vm290, %v757, 0
  %v776 = vsel %vm290, %v758, 0
  %v779 = vsel %vm290, %v759, 0
  %781 = vmatprep.subr.mxu0 0.0
  %782 = vmatpush1.msra.mxu0 %v761
  %783 = vmatprep.subr.mxu0 0.0
  %784 = vmatpush1.msra.mxu0 %v762
  %785 = vmatprep.subr.mxu0 0.0
  %786 = vmatpush1.msra.mxu0 %v763
  %787 = vmatprep.subr.mxu0 0.0
  %788 = vmatpush1.msra.mxu0 %v764
  %789 = vmatprep.subr.mxu0 0.0
  %790 = vmatpush1.msra.mxu0 %v765
  %791 = vmatprep.subr.mxu0 0.0
  %792 = vmatpush1.msra.mxu0 %v766
  %793 = vmatprep.subr.mxu0 0.0
  %794 = vmatpush1.msra.mxu0 %v767
  %795 = vmatprep.subr.mxu0 0.0
  %796 = vmatpush1.msra.mxu0 %v768
  %797 = vmatprep.subr.mxu0 0.0
  %798 = vmatpush1.msra.mxu0 0.0
  %799 = vmatprep.subr.mxu0 0.0
  %800 = vmatpush1.msra.mxu0 0.0
  %801 = vmatprep.subr.mxu0 0.0
  %802 = vmatpush1.msra.mxu0 0.0
  %803 = vmatprep.subr.mxu0 0.0
  %804 = vmatpush1.msra.mxu0 0.0
  %805 = vmatprep.subr.mxu0 0.0
  %806 = vmatpush1.msra.mxu0 0.0
  %807 = vmatprep.subr.mxu0 0.0
  %808 = vmatpush1.msra.mxu0 0.0
  %809 = vmatprep.subr.mxu0 0.0
  %810 = vmatpush1.msra.mxu0 0.0
  %811 = vmatprep.subr.mxu0 0.0
  %812 = vmatpush1.msra.mxu0 0.0
  %813 = vmatprep.subr.mxu0 0.0
  %814 = vmatpush1.msra.mxu0 0.0
  %815 = vmatprep.subr.mxu0 0.0
  %816 = vmatpush1.msra.mxu0 0.0
  %817 = vmatprep.subr.mxu0 0.0
  %818 = vmatpush1.msra.mxu0 0.0
  %819 = vmatprep.subr.mxu0 0.0
  %820 = vmatpush1.msra.mxu0 0.0
  %821 = vmatprep.subr.mxu0 0.0
  %822 = vmatpush1.msra.mxu0 0.0
  %823 = vmatprep.subr.mxu0 0.0
  %824 = vmatpush1.msra.mxu0 0.0
  %825 = vmatprep.subr.mxu0 0.0
  %826 = vmatpush1.msra.mxu0 0.0
  %827 = vmatprep.subr.mxu0 0.0
  %828 = vmatpush1.msra.mxu0 0.0
  %829 = vmatprep.subr.mxu0 0.0
  %830 = vmatpush1.msra.mxu0 0.0
  %831 = vmatprep.subr.mxu0 0.0
  %832 = vmatpush1.msra.mxu0 0.0
  %833 = vmatprep.subr.mxu0 0.0
  %834 = vmatpush1.msra.mxu0 0.0
  %835 = vmatprep.subr.mxu0 0.0
  %836 = vmatpush1.msra.mxu0 0.0
  %837 = vmatprep.subr.mxu0 0.0
  %838 = vmatpush1.msra.mxu0 0.0
  %839 = vmatprep.subr.mxu0 0.0
  %840 = vmatpush1.msra.mxu0 0.0
  %841 = vmatprep.subr.mxu0 0.0
  %842 = vmatpush1.msra.mxu0 0.0
  %843 = vmatprep.subr.mxu0 0.0
  %844 = vmatpush1.msra.mxu0 0.0
  %845 = vmatprep.mubr.f32.mxu0 0.0
  %846 = vmatmul.mubr.f32.gmra.mrb[0].mxu0 %v770
  %v847 = vpop.f32.mrb[0].mxu0
  %v848 = vadd.f32 0.0, %v847
  %v849 = vpop.f32.mrb[0].mxu0
  %850 = vmatprep.mubr.f32.mxu0 0.0
  %851 = vmatmul.mubr.f32.gmra.mrb[0].mxu0 %v773
  %v852 = vpop.f32.mrb[0].mxu0
  %v853 = vadd.f32 0.0, %v852
  %v854 = vpop.f32.mrb[0].mxu0
  %855 = vmatprep.mubr.f32.mxu0 0.0
  %856 = vmatmul.mubr.f32.gmra.mrb[0].mxu0 %v776
  %v857 = vpop.f32.mrb[0].mxu0
  %v858 = vadd.f32 0.0, %v857
  %v859 = vpop.f32.mrb[0].mxu0
  %860 = vmatprep.mubr.f32.mxu0 0.0
  %861 = vmatmul.mubr.f32.gmra.mrb[0].mxu0 %v779
  %v862 = vpop.f32.mrb[0].mxu0
  %v863 = vadd.f32 0.0, %v862
  %v864 = vpop.f32.mrb[0].mxu0
  %865 = vdwg.mxu0
  %v866 = vadd.f32 %v752, %v848
  %v867 = vadd.f32 %v753, %v853
  %v868 = vadd.f32 %v754, %v858
  %v869 = vadd.f32 %v755, %v863
  %v870 = vld [vmem:[#allocation2 + $0x5a] sm:$0xff]
  %v871 = vld [vmem:[#allocation2 + $0x62] sm:$0xff]
  %v872 = vld [vmem:[#allocation2 + $0x6a] sm:$0xff]
  %v873 = vld [vmem:[#allocation2 + $0x72] sm:$0x3]
  %s874 = scalar_lea.vmem %s3, 320
  %v875 = vld [vmem:[%s874] sm:$0xff]
  %v876 = vld [vmem:[%s874 + $0x8] sm:$0xff]
  %v877 = vld [vmem:[%s874 + $0x10] sm:$0xff]
  %v878 = vld [vmem:[%s874 + $0x18] sm:$0xff]
  %v879 = vld [vmem:[%s874 + $0x20] sm:$0xff]
  %v880 = vld [vmem:[%s874 + $0x28] sm:$0xff]
  %v881 = vld [vmem:[%s874 + $0x30] sm:$0xff]
  %v882 = vld [vmem:[%s874 + $0x38] sm:$0xff]
  %v884 = vsel %vm290, %v870, 0
  %v887 = vsel %vm290, %v871, 0
  %v890 = vsel %vm290, %v872, 0
  %v893 = vsel %vm290, %v873, 0
  %895 = vmatprep.subr.mxu0 0.0
  %896 = vmatpush1.msra.mxu0 %v875
  %897 = vmatprep.subr.mxu0 0.0
  %898 = vmatpush1.msra.mxu0 %v876
  %899 = vmatprep.subr.mxu0 0.0
  %900 = vmatpush1.msra.mxu0 %v877
  %901 = vmatprep.subr.mxu0 0.0
  %902 = vmatpush1.msra.mxu0 %v878
  %903 = vmatprep.subr.mxu0 0.0
  %904 = vmatpush1.msra.mxu0 %v879
  %905 = vmatprep.subr.mxu0 0.0
  %906 = vmatpush1.msra.mxu0 %v880
  %907 = vmatprep.subr.mxu0 0.0
  %908 = vmatpush1.msra.mxu0 %v881
  %909 = vmatprep.subr.mxu0 0.0
  %910 = vmatpush1.msra.mxu0 %v882
  %911 = vmatprep.subr.mxu0 0.0
  %912 = vmatpush1.msra.mxu0 0.0
  %913 = vmatprep.subr.mxu0 0.0
  %914 = vmatpush1.msra.mxu0 0.0
  %915 = vmatprep.subr.mxu0 0.0
  %916 = vmatpush1.msra.mxu0 0.0
  %917 = vmatprep.subr.mxu0 0.0
  %918 = vmatpush1.msra.mxu0 0.0
  %919 = vmatprep.subr.mxu0 0.0
  %920 = vmatpush1.msra.mxu0 0.0
  %921 = vmatprep.subr.mxu0 0.0
  %922 = vmatpush1.msra.mxu0 0.0
  %923 = vmatprep.subr.mxu0 0.0
  %924 = vmatpush1.msra.mxu0 0.0
  %925 = vmatprep.subr.mxu0 0.0
  %926 = vmatpush1.msra.mxu0 0.0
  %927 = vmatprep.subr.mxu0 0.0
  %928 = vmatpush1.msra.mxu0 0.0
  %929 = vmatprep.subr.mxu0 0.0
  %930 = vmatpush1.msra.mxu0 0.0
  %931 = vmatprep.subr.mxu0 0.0
  %932 = vmatpush1.msra.mxu0 0.0
  %933 = vmatprep.subr.mxu0 0.0
  %934 = vmatpush1.msra.mxu0 0.0
  %935 = vmatprep.subr.mxu0 0.0
  %936 = vmatpush1.msra.mxu0 0.0
  %937 = vmatprep.subr.mxu0 0.0
  %938 = vmatpush1.msra.mxu0 0.0
  %939 = vmatprep.subr.mxu0 0.0
  %940 = vmatpush1.msra.mxu0 0.0
  %941 = vmatprep.subr.mxu0 0.0
  %942 = vmatpush1.msra.mxu0 0.0
  %943 = vmatprep.subr.mxu0 0.0
  %944 = vmatpush1.msra.mxu0 0.0
  %945 = vmatprep.subr.mxu0 0.0
  %946 = vmatpush1.msra.mxu0 0.0
  %947 = vmatprep.subr.mxu0 0.0
  %948 = vmatpush1.msra.mxu0 0.0
  %949 = vmatprep.subr.mxu0 0.0
  %950 = vmatpush1.msra.mxu0 0.0
  %951 = vmatprep.subr.mxu0 0.0
  %952 = vmatpush1.msra.mxu0 0.0
  %953 = vmatprep.subr.mxu0 0.0
  %954 = vmatpush1.msra.mxu0 0.0
  %955 = vmatprep.subr.mxu0 0.0
  %956 = vmatpush1.msra.mxu0 0.0
  %957 = vmatprep.subr.mxu0 0.0
  %958 = vmatpush1.msra.mxu0 0.0
  %959 = vmatprep.mubr.f32.mxu0 0.0
  %960 = vmatmul.mubr.f32.gmra.mrb[0].mxu0 %v884
  %v961 = vpop.f32.mrb[0].mxu0
  %v962 = vadd.f32 0.0, %v961
  %v963 = vpop.f32.mrb[0].mxu0
  %964 = vmatprep.mubr.f32.mxu0 0.0
  %965 = vmatmul.mubr.f32.gmra.mrb[0].mxu0 %v887
  %v966 = vpop.f32.mrb[0].mxu0
  %v967 = vadd.f32 0.0, %v966
  %v968 = vpop.f32.mrb[0].mxu0
  %969 = vmatprep.mubr.f32.mxu0 0.0
  %970 = vmatmul.mubr.f32.gmra.mrb[0].mxu0 %v890
  %v971 = vpop.f32.mrb[0].mxu0
  %v972 = vadd.f32 0.0, %v971
  %v973 = vpop.f32.mrb[0].mxu0
  %974 = vmatprep.mubr.f32.mxu0 0.0
  %975 = vmatmul.mubr.f32.gmra.mrb[0].mxu0 %v893
  %v976 = vpop.f32.mrb[0].mxu0
  %v977 = vadd.f32 0.0, %v976
  %v978 = vpop.f32.mrb[0].mxu0
  %979 = vdwg.mxu0
  %v980 = vadd.f32 %v866, %v962
  %v981 = vadd.f32 %v867, %v967
  %v982 = vadd.f32 %v868, %v972
  %v983 = vadd.f32 %v869, %v977
  %v984 = vld [vmem:[#allocation2 + $0x4] sm:$0xff]
  %v985 = vld [vmem:[#allocation2 + $0xc] sm:$0xff]
  %v986 = vld [vmem:[#allocation2 + $0x14] sm:$0xff]
  %v987 = vld [vmem:[#allocation2 + $0x1c] sm:$0x3]
  %s988 = scalar_lea.vmem %s3, 384
  %v989 = vld [vmem:[%s988] sm:$0xff]
  %v990 = vld [vmem:[%s988 + $0x8] sm:$0xff]
  %v991 = vld [vmem:[%s988 + $0x10] sm:$0xff]
  %v992 = vld [vmem:[%s988 + $0x18] sm:$0xff]
  %v993 = vld [vmem:[%s988 + $0x20] sm:$0xff]
  %v994 = vld [vmem:[%s988 + $0x28] sm:$0xff]
  %v995 = vld [vmem:[%s988 + $0x30] sm:$0xff]
  %v996 = vld [vmem:[%s988 + $0x38] sm:$0xff]
  %v998 = vsel %vm290, %v984, 0
  %v1001 = vsel %vm290, %v985, 0
  %v1004 = vsel %vm290, %v986, 0
  %v1007 = vsel %vm290, %v987, 0
  %1009 = vmatprep.subr.mxu0 0.0
  %1010 = vmatpush1.msra.mxu0 %v989
  %1011 = vmatprep.subr.mxu0 0.0
  %1012 = vmatpush1.msra.mxu0 %v990
  %1013 = vmatprep.subr.mxu0 0.0
  %1014 = vmatpush1.msra.mxu0 %v991
  %1015 = vmatprep.subr.mxu0 0.0
  %1016 = vmatpush1.msra.mxu0 %v992
  %1017 = vmatprep.subr.mxu0 0.0
  %1018 = vmatpush1.msra.mxu0 %v993
  %1019 = vmatprep.subr.mxu0 0.0
  %1020 = vmatpush1.msra.mxu0 %v994
  %1021 = vmatprep.subr.mxu0 0.0
  %1022 = vmatpush1.msra.mxu0 %v995
  %1023 = vmatprep.subr.mxu0 0.0
  %1024 = vmatpush1.msra.mxu0 %v996
  %1025 = vmatprep.subr.mxu0 0.0
  %1026 = vmatpush1.msra.mxu0 0.0
  %1027 = vmatprep.subr.mxu0 0.0
  %1028 = vmatpush1.msra.mxu0 0.0
  %1029 = vmatprep.subr.mxu0 0.0
  %1030 = vmatpush1.msra.mxu0 0.0
  %1031 = vmatprep.subr.mxu0 0.0
  %1032 = vmatpush1.msra.mxu0 0.0
  %1033 = vmatprep.subr.mxu0 0.0
  %1034 = vmatpush1.msra.mxu0 0.0
  %1035 = vmatprep.subr.mxu0 0.0
  %1036 = vmatpush1.msra.mxu0 0.0
  %1037 = vmatprep.subr.mxu0 0.0
  %1038 = vmatpush1.msra.mxu0 0.0
  %1039 = vmatprep.subr.mxu0 0.0
  %1040 = vmatpush1.msra.mxu0 0.0
  %1041 = vmatprep.subr.mxu0 0.0
  %1042 = vmatpush1.msra.mxu0 0.0
  %1043 = vmatprep.subr.mxu0 0.0
  %1044 = vmatpush1.msra.mxu0 0.0
  %1045 = vmatprep.subr.mxu0 0.0
  %1046 = vmatpush1.msra.mxu0 0.0
  %1047 = vmatprep.subr.mxu0 0.0
  %1048 = vmatpush1.msra.mxu0 0.0
  %1049 = vmatprep.subr.mxu0 0.0
  %1050 = vmatpush1.msra.mxu0 0.0
  %1051 = vmatprep.subr.mxu0 0.0
  %1052 = vmatpush1.msra.mxu0 0.0
  %1053 = vmatprep.subr.mxu0 0.0
  %1054 = vmatpush1.msra.mxu0 0.0
  %1055 = vmatprep.subr.mxu0 0.0
  %1056 = vmatpush1.msra.mxu0 0.0
  %1057 = vmatprep.subr.mxu0 0.0
  %1058 = vmatpush1.msra.mxu0 0.0
  %1059 = vmatprep.subr.mxu0 0.0
  %1060 = vmatpush1.msra.mxu0 0.0
  %1061 = vmatprep.subr.mxu0 0.0
  %1062 = vmatpush1.msra.mxu0 0.0
  %1063 = vmatprep.subr.mxu0 0.0
  %1064 = vmatpush1.msra.mxu0 0.0
  %1065 = vmatprep.subr.mxu0 0.0
  %1066 = vmatpush1.msra.mxu0 0.0
  %1067 = vmatprep.subr.mxu0 0.0
  %1068 = vmatpush1.msra.mxu0 0.0
  %1069 = vmatprep.subr.mxu0 0.0
  %1070 = vmatpush1.msra.mxu0 0.0
  %1071 = vmatprep.subr.mxu0 0.0
  %1072 = vmatpush1.msra.mxu0 0.0
  %1073 = vmatprep.mubr.f32.mxu0 0.0
  %1074 = vmatmul.mubr.f32.gmra.mrb[0].mxu0 %v998
  %v1075 = vpop.f32.mrb[0].mxu0
  %v1076 = vadd.f32 0.0, %v1075
  %v1077 = vpop.f32.mrb[0].mxu0
  %1078 = vmatprep.mubr.f32.mxu0 0.0
  %1079 = vmatmul.mubr.f32.gmra.mrb[0].mxu0 %v1001
  %v1080 = vpop.f32.mrb[0].mxu0
  %v1081 = vadd.f32 0.0, %v1080
  %v1082 = vpop.f32.mrb[0].mxu0
  %1083 = vmatprep.mubr.f32.mxu0 0.0
  %1084 = vmatmul.mubr.f32.gmra.mrb[0].mxu0 %v1004
  %v1085 = vpop.f32.mrb[0].mxu0
  %v1086 = vadd.f32 0.0, %v1085
  %v1087 = vpop.f32.mrb[0].mxu0
  %1088 = vmatprep.mubr.f32.mxu0 0.0
  %1089 = vmatmul.mubr.f32.gmra.mrb[0].mxu0 %v1007
  %v1090 = vpop.f32.mrb[0].mxu0
  %v1091 = vadd.f32 0.0, %v1090
  %v1092 = vpop.f32.mrb[0].mxu0
  %1093 = vdwg.mxu0
  %v1094 = vadd.f32 %v980, %v1076
  %v1095 = vadd.f32 %v981, %v1081
  %v1096 = vadd.f32 %v982, %v1086
  %v1097 = vadd.f32 %v983, %v1091
  %v1098 = vld [vmem:[#allocation2 + $0x30] sm:$0xff]
  %v1099 = vld [vmem:[#allocation2 + $0x38] sm:$0xff]
  %v1100 = vld [vmem:[#allocation2 + $0x40] sm:$0xff]
  %v1101 = vld [vmem:[#allocation2 + $0x48] sm:$0x3]
  %s1102 = scalar_lea.vmem %s3, 448
  %v1103 = vld [vmem:[%s1102] sm:$0xff]
  %v1104 = vld [vmem:[%s1102 + $0x8] sm:$0xff]
  %v1105 = vld [vmem:[%s1102 + $0x10] sm:$0xff]
  %v1106 = vld [vmem:[%s1102 + $0x18] sm:$0xff]
  %v1107 = vld [vmem:[%s1102 + $0x20] sm:$0xff]
  %v1108 = vld [vmem:[%s1102 + $0x28] sm:$0xff]
  %v1109 = vld [vmem:[%s1102 + $0x30] sm:$0xff]
  %v1110 = vld [vmem:[%s1102 + $0x38] sm:$0xff]
  %v1112 = vsel %vm290, %v1098, 0
  %v1115 = vsel %vm290, %v1099, 0
  %v1118 = vsel %vm290, %v1100, 0
  %v1121 = vsel %vm290, %v1101, 0
  %1123 = vmatprep.subr.mxu0 0.0
  %1124 = vmatpush1.msra.mxu0 %v1103
  %1125 = vmatprep.subr.mxu0 0.0
  %1126 = vmatpush1.msra.mxu0 %v1104
  %1127 = vmatprep.subr.mxu0 0.0
  %1128 = vmatpush1.msra.mxu0 %v1105
  %1129 = vmatprep.subr.mxu0 0.0
  %1130 = vmatpush1.msra.mxu0 %v1106
  %1131 = vmatprep.subr.mxu0 0.0
  %1132 = vmatpush1.msra.mxu0 %v1107
  %1133 = vmatprep.subr.mxu0 0.0
  %1134 = vmatpush1.msra.mxu0 %v1108
  %1135 = vmatprep.subr.mxu0 0.0
  %1136 = vmatpush1.msra.mxu0 %v1109
  %1137 = vmatprep.subr.mxu0 0.0
  %1138 = vmatpush1.msra.mxu0 %v1110
  %1139 = vmatprep.subr.mxu0 0.0
  %1140 = vmatpush1.msra.mxu0 0.0
  %1141 = vmatprep.subr.mxu0 0.0
  %1142 = vmatpush1.msra.mxu0 0.0
  %1143 = vmatprep.subr.mxu0 0.0
  %1144 = vmatpush1.msra.mxu0 0.0
  %1145 = vmatprep.subr.mxu0 0.0
  %1146 = vmatpush1.msra.mxu0 0.0
  %1147 = vmatprep.subr.mxu0 0.0
  %1148 = vmatpush1.msra.mxu0 0.0
  %1149 = vmatprep.subr.mxu0 0.0
  %1150 = vmatpush1.msra.mxu0 0.0
  %1151 = vmatprep.subr.mxu0 0.0
  %1152 = vmatpush1.msra.mxu0 0.0
  %1153 = vmatprep.subr.mxu0 0.0
  %1154 = vmatpush1.msra.mxu0 0.0
  %1155 = vmatprep.subr.mxu0 0.0
  %1156 = vmatpush1.msra.mxu0 0.0
  %1157 = vmatprep.subr.mxu0 0.0
  %1158 = vmatpush1.msra.mxu0 0.0
  %1159 = vmatprep.subr.mxu0 0.0
  %1160 = vmatpush1.msra.mxu0 0.0
  %1161 = vmatprep.subr.mxu0 0.0
  %1162 = vmatpush1.msra.mxu0 0.0
  %1163 = vmatprep.subr.mxu0 0.0
  %1164 = vmatpush1.msra.mxu0 0.0
  %1165 = vmatprep.subr.mxu0 0.0
  %1166 = vmatpush1.msra.mxu0 0.0
  %1167 = vmatprep.subr.mxu0 0.0
  %1168 = vmatpush1.msra.mxu0 0.0
  %1169 = vmatprep.subr.mxu0 0.0
  %1170 = vmatpush1.msra.mxu0 0.0
  %1171 = vmatprep.subr.mxu0 0.0
  %1172 = vmatpush1.msra.mxu0 0.0
  %1173 = vmatprep.subr.mxu0 0.0
  %1174 = vmatpush1.msra.mxu0 0.0
  %1175 = vmatprep.subr.mxu0 0.0
  %1176 = vmatpush1.msra.mxu0 0.0
  %1177 = vmatprep.subr.mxu0 0.0
  %1178 = vmatpush1.msra.mxu0 0.0
  %1179 = vmatprep.subr.mxu0 0.0
  %1180 = vmatpush1.msra.mxu0 0.0
  %1181 = vmatprep.subr.mxu0 0.0
  %1182 = vmatpush1.msra.mxu0 0.0
  %1183 = vmatprep.subr.mxu0 0.0
  %1184 = vmatpush1.msra.mxu0 0.0
  %1185 = vmatprep.subr.mxu0 0.0
  %1186 = vmatpush1.msra.mxu0 0.0
  %1187 = vmatprep.mubr.f32.mxu0 0.0
  %1188 = vmatmul.mubr.f32.gmra.mrb[0].mxu0 %v1112
  %v1189 = vpop.f32.mrb[0].mxu0
  %v1190 = vadd.f32 0.0, %v1189
  %v1191 = vpop.f32.mrb[0].mxu0
  %1192 = vmatprep.mubr.f32.mxu0 0.0
  %1193 = vmatmul.mubr.f32.gmra.mrb[0].mxu0 %v1115
  %v1194 = vpop.f32.mrb[0].mxu0
  %v1195 = vadd.f32 0.0, %v1194
  %v1196 = vpop.f32.mrb[0].mxu0
  %1197 = vmatprep.mubr.f32.mxu0 0.0
  %1198 = vmatmul.mubr.f32.gmra.mrb[0].mxu0 %v1118
  %v1199 = vpop.f32.mrb[0].mxu0
  %v1200 = vadd.f32 0.0, %v1199
  %v1201 = vpop.f32.mrb[0].mxu0
  %1202 = vmatprep.mubr.f32.mxu0 0.0
  %1203 = vmatmul.mubr.f32.gmra.mrb[0].mxu0 %v1121
  %v1204 = vpop.f32.mrb[0].mxu0
  %v1205 = vadd.f32 0.0, %v1204
  %v1206 = vpop.f32.mrb[0].mxu0
  %1207 = vdwg.mxu0
  %v1208 = vadd.f32 %v1094, %v1190
  %v1209 = vadd.f32 %v1095, %v1195
  %v1210 = vadd.f32 %v1096, %v1200
  %v1211 = vadd.f32 %v1097, %v1205
  %v1212 = vld [vmem:[#allocation2 + $0x5c] sm:$0xff]
  %v1213 = vld [vmem:[#allocation2 + $0x64] sm:$0xff]
  %v1214 = vld [vmem:[#allocation2 + $0x6c] sm:$0xff]
  %v1215 = vld [vmem:[#allocation2 + $0x74] sm:$0x3]
  %s1216 = scalar_lea.vmem %s3, 512
  %v1217 = vld [vmem:[%s1216] sm:$0xff]
  %v1218 = vld [vmem:[%s1216 + $0x8] sm:$0xff]
  %v1219 = vld [vmem:[%s1216 + $0x10] sm:$0xff]
  %v1220 = vld [vmem:[%s1216 + $0x18] sm:$0xff]
  %v1221 = vld [vmem:[%s1216 + $0x20] sm:$0xff]
  %v1222 = vld [vmem:[%s1216 + $0x28] sm:$0xff]
  %v1223 = vld [vmem:[%s1216 + $0x30] sm:$0xff]
  %v1224 = vld [vmem:[%s1216 + $0x38] sm:$0xff]
  %v1226 = vsel %vm290, %v1212, 0
  %v1229 = vsel %vm290, %v1213, 0
  %v1232 = vsel %vm290, %v1214, 0
  %v1235 = vsel %vm290, %v1215, 0
  %1237 = vmatprep.subr.mxu0 0.0
  %1238 = vmatpush1.msra.mxu0 %v1217
  %1239 = vmatprep.subr.mxu0 0.0
  %1240 = vmatpush1.msra.mxu0 %v1218
  %1241 = vmatprep.subr.mxu0 0.0
  %1242 = vmatpush1.msra.mxu0 %v1219
  %1243 = vmatprep.subr.mxu0 0.0
  %1244 = vmatpush1.msra.mxu0 %v1220
  %1245 = vmatprep.subr.mxu0 0.0
  %1246 = vmatpush1.msra.mxu0 %v1221
  %1247 = vmatprep.subr.mxu0 0.0
  %1248 = vmatpush1.msra.mxu0 %v1222
  %1249 = vmatprep.subr.mxu0 0.0
  %1250 = vmatpush1.msra.mxu0 %v1223
  %1251 = vmatprep.subr.mxu0 0.0
  %1252 = vmatpush1.msra.mxu0 %v1224
  %1253 = vmatprep.subr.mxu0 0.0
  %1254 = vmatpush1.msra.mxu0 0.0
  %1255 = vmatprep.subr.mxu0 0.0
  %1256 = vmatpush1.msra.mxu0 0.0
  %1257 = vmatprep.subr.mxu0 0.0
  %1258 = vmatpush1.msra.mxu0 0.0
  %1259 = vmatprep.subr.mxu0 0.0
  %1260 = vmatpush1.msra.mxu0 0.0
  %1261 = vmatprep.subr.mxu0 0.0
  %1262 = vmatpush1.msra.mxu0 0.0
  %1263 = vmatprep.subr.mxu0 0.0
  %1264 = vmatpush1.msra.mxu0 0.0
  %1265 = vmatprep.subr.mxu0 0.0
  %1266 = vmatpush1.msra.mxu0 0.0
  %1267 = vmatprep.subr.mxu0 0.0
  %1268 = vmatpush1.msra.mxu0 0.0
  %1269 = vmatprep.subr.mxu0 0.0
  %1270 = vmatpush1.msra.mxu0 0.0
  %1271 = vmatprep.subr.mxu0 0.0
  %1272 = vmatpush1.msra.mxu0 0.0
  %1273 = vmatprep.subr.mxu0 0.0
  %1274 = vmatpush1.msra.mxu0 0.0
  %1275 = vmatprep.subr.mxu0 0.0
  %1276 = vmatpush1.msra.mxu0 0.0
  %1277 = vmatprep.subr.mxu0 0.0
  %1278 = vmatpush1.msra.mxu0 0.0
  %1279 = vmatprep.subr.mxu0 0.0
  %1280 = vmatpush1.msra.mxu0 0.0
  %1281 = vmatprep.subr.mxu0 0.0
  %1282 = vmatpush1.msra.mxu0 0.0
  %1283 = vmatprep.subr.mxu0 0.0
  %1284 = vmatpush1.msra.mxu0 0.0
  %1285 = vmatprep.subr.mxu0 0.0
  %1286 = vmatpush1.msra.mxu0 0.0
  %1287 = vmatprep.subr.mxu0 0.0
  %1288 = vmatpush1.msra.mxu0 0.0
  %1289 = vmatprep.subr.mxu0 0.0
  %1290 = vmatpush1.msra.mxu0 0.0
  %1291 = vmatprep.subr.mxu0 0.0
  %1292 = vmatpush1.msra.mxu0 0.0
  %1293 = vmatprep.subr.mxu0 0.0
  %1294 = vmatpush1.msra.mxu0 0.0
  %1295 = vmatprep.subr.mxu0 0.0
  %1296 = vmatpush1.msra.mxu0 0.0
  %1297 = vmatprep.subr.mxu0 0.0
  %1298 = vmatpush1.msra.mxu0 0.0
  %1299 = vmatprep.subr.mxu0 0.0
  %1300 = vmatpush1.msra.mxu0 0.0
  %1301 = vmatprep.mubr.f32.mxu0 0.0
  %1302 = vmatmul.mubr.f32.gmra.mrb[0].mxu0 %v1226
  %v1303 = vpop.f32.mrb[0].mxu0
  %v1304 = vadd.f32 0.0, %v1303
  %v1305 = vpop.f32.mrb[0].mxu0
  %1306 = vmatprep.mubr.f32.mxu0 0.0
  %1307 = vmatmul.mubr.f32.gmra.mrb[0].mxu0 %v1229
  %v1308 = vpop.f32.mrb[0].mxu0
  %v1309 = vadd.f32 0.0, %v1308
  %v1310 = vpop.f32.mrb[0].mxu0
  %1311 = vmatprep.mubr.f32.mxu0 0.0
  %1312 = vmatmul.mubr.f32.gmra.mrb[0].mxu0 %v1232
  %v1313 = vpop.f32.mrb[0].mxu0
  %v1314 = vadd.f32 0.0, %v1313
  %v1315 = vpop.f32.mrb[0].mxu0
  %1316 = vmatprep.mubr.f32.mxu0 0.0
  %1317 = vmatmul.mubr.f32.gmra.mrb[0].mxu0 %v1235
  %v1318 = vpop.f32.mrb[0].mxu0
  %v1319 = vadd.f32 0.0, %v1318
  %v1320 = vpop.f32.mrb[0].mxu0
  %1321 = vdwg.mxu0
  %v1322 = vadd.f32 %v1208, %v1304
  %v1323 = vadd.f32 %v1209, %v1309
  %v1324 = vadd.f32 %v1210, %v1314
  %v1325 = vadd.f32 %v1211, %v1319
  %v1326 = vld [vmem:[#allocation2 + $0x6] sm:$0xff]
  %v1327 = vld [vmem:[#allocation2 + $0xe] sm:$0xff]
  %v1328 = vld [vmem:[#allocation2 + $0x16] sm:$0xff]
  %v1329 = vld [vmem:[#allocation2 + $0x1e] sm:$0x3]
  %s1330 = scalar_lea.vmem %s3, 576
  %v1331 = vld [vmem:[%s1330] sm:$0xff]
  %v1332 = vld [vmem:[%s1330 + $0x8] sm:$0xff]
  %v1333 = vld [vmem:[%s1330 + $0x10] sm:$0xff]
  %v1334 = vld [vmem:[%s1330 + $0x18] sm:$0xff]
  %v1335 = vld [vmem:[%s1330 + $0x20] sm:$0xff]
  %v1336 = vld [vmem:[%s1330 + $0x28] sm:$0xff]
  %v1337 = vld [vmem:[%s1330 + $0x30] sm:$0xff]
  %v1338 = vld [vmem:[%s1330 + $0x38] sm:$0xff]
  %v1340 = vsel %vm290, %v1326, 0
  %v1343 = vsel %vm290, %v1327, 0
  %v1346 = vsel %vm290, %v1328, 0
  %v1349 = vsel %vm290, %v1329, 0
  %1351 = vmatprep.subr.mxu0 0.0
  %1352 = vmatpush1.msra.mxu0 %v1331
  %1353 = vmatprep.subr.mxu0 0.0
  %1354 = vmatpush1.msra.mxu0 %v1332
  %1355 = vmatprep.subr.mxu0 0.0
  %1356 = vmatpush1.msra.mxu0 %v1333
  %1357 = vmatprep.subr.mxu0 0.0
  %1358 = vmatpush1.msra.mxu0 %v1334
  %1359 = vmatprep.subr.mxu0 0.0
  %1360 = vmatpush1.msra.mxu0 %v1335
  %1361 = vmatprep.subr.mxu0 0.0
  %1362 = vmatpush1.msra.mxu0 %v1336
  %1363 = vmatprep.subr.mxu0 0.0
  %1364 = vmatpush1.msra.mxu0 %v1337
  %1365 = vmatprep.subr.mxu0 0.0
  %1366 = vmatpush1.msra.mxu0 %v1338
  %1367 = vmatprep.subr.mxu0 0.0
  %1368 = vmatpush1.msra.mxu0 0.0
  %1369 = vmatprep.subr.mxu0 0.0
  %1370 = vmatpush1.msra.mxu0 0.0
  %1371 = vmatprep.subr.mxu0 0.0
  %1372 = vmatpush1.msra.mxu0 0.0
  %1373 = vmatprep.subr.mxu0 0.0
  %1374 = vmatpush1.msra.mxu0 0.0
  %1375 = vmatprep.subr.mxu0 0.0
  %1376 = vmatpush1.msra.mxu0 0.0
  %1377 = vmatprep.subr.mxu0 0.0
  %1378 = vmatpush1.msra.mxu0 0.0
  %1379 = vmatprep.subr.mxu0 0.0
  %1380 = vmatpush1.msra.mxu0 0.0
  %1381 = vmatprep.subr.mxu0 0.0
  %1382 = vmatpush1.msra.mxu0 0.0
  %1383 = vmatprep.subr.mxu0 0.0
  %1384 = vmatpush1.msra.mxu0 0.0
  %1385 = vmatprep.subr.mxu0 0.0
  %1386 = vmatpush1.msra.mxu0 0.0
  %1387 = vmatprep.subr.mxu0 0.0
  %1388 = vmatpush1.msra.mxu0 0.0
  %1389 = vmatprep.subr.mxu0 0.0
  %1390 = vmatpush1.msra.mxu0 0.0
  %1391 = vmatprep.subr.mxu0 0.0
  %1392 = vmatpush1.msra.mxu0 0.0
  %1393 = vmatprep.subr.mxu0 0.0
  %1394 = vmatpush1.msra.mxu0 0.0
  %1395 = vmatprep.subr.mxu0 0.0
  %1396 = vmatpush1.msra.mxu0 0.0
  %1397 = vmatprep.subr.mxu0 0.0
  %1398 = vmatpush1.msra.mxu0 0.0
  %1399 = vmatprep.subr.mxu0 0.0
  %1400 = vmatpush1.msra.mxu0 0.0
  %1401 = vmatprep.subr.mxu0 0.0
  %1402 = vmatpush1.msra.mxu0 0.0
  %1403 = vmatprep.subr.mxu0 0.0
  %1404 = vmatpush1.msra.mxu0 0.0
  %1405 = vmatprep.subr.mxu0 0.0
  %1406 = vmatpush1.msra.mxu0 0.0
  %1407 = vmatprep.subr.mxu0 0.0
  %1408 = vmatpush1.msra.mxu0 0.0
  %1409 = vmatprep.subr.mxu0 0.0
  %1410 = vmatpush1.msra.mxu0 0.0
  %1411 = vmatprep.subr.mxu0 0.0
  %1412 = vmatpush1.msra.mxu0 0.0
  %1413 = vmatprep.subr.mxu0 0.0
  %1414 = vmatpush1.msra.mxu0 0.0
  %1415 = vmatprep.mubr.f32.mxu0 0.0
  %1416 = vmatmul.mubr.f32.gmra.mrb[0].mxu0 %v1340
  %v1417 = vpop.f32.mrb[0].mxu0
  %v1418 = vadd.f32 0.0, %v1417
  %v1419 = vpop.f32.mrb[0].mxu0
  %1420 = vmatprep.mubr.f32.mxu0 0.0
  %1421 = vmatmul.mubr.f32.gmra.mrb[0].mxu0 %v1343
  %v1422 = vpop.f32.mrb[0].mxu0
  %v1423 = vadd.f32 0.0, %v1422
  %v1424 = vpop.f32.mrb[0].mxu0
  %1425 = vmatprep.mubr.f32.mxu0 0.0
  %1426 = vmatmul.mubr.f32.gmra.mrb[0].mxu0 %v1346
  %v1427 = vpop.f32.mrb[0].mxu0
  %v1428 = vadd.f32 0.0, %v1427
  %v1429 = vpop.f32.mrb[0].mxu0
  %1430 = vmatprep.mubr.f32.mxu0 0.0
  %1431 = vmatmul.mubr.f32.gmra.mrb[0].mxu0 %v1349
  %v1432 = vpop.f32.mrb[0].mxu0
  %v1433 = vadd.f32 0.0, %v1432
  %v1434 = vpop.f32.mrb[0].mxu0
  %1435 = vdwg.mxu0
  %v1436 = vadd.f32 %v1322, %v1418
  %v1437 = vadd.f32 %v1323, %v1423
  %v1438 = vadd.f32 %v1324, %v1428
  %v1439 = vadd.f32 %v1325, %v1433
  %v1440 = vld [vmem:[#allocation2 + $0x32] sm:$0xff]
  %v1441 = vld [vmem:[#allocation2 + $0x3a] sm:$0xff]
  %v1442 = vld [vmem:[#allocation2 + $0x42] sm:$0xff]
  %v1443 = vld [vmem:[#allocation2 + $0x4a] sm:$0x3]
  %s1444 = scalar_lea.vmem %s3, 640
  %v1445 = vld [vmem:[%s1444] sm:$0xff]
  %v1446 = vld [vmem:[%s1444 + $0x8] sm:$0xff]
  %v1447 = vld [vmem:[%s1444 + $0x10] sm:$0xff]
  %v1448 = vld [vmem:[%s1444 + $0x18] sm:$0xff]
  %v1449 = vld [vmem:[%s1444 + $0x20] sm:$0xff]
  %v1450 = vld [vmem:[%s1444 + $0x28] sm:$0xff]
  %v1451 = vld [vmem:[%s1444 + $0x30] sm:$0xff]
  %v1452 = vld [vmem:[%s1444 + $0x38] sm:$0xff]
  %v1454 = vsel %vm290, %v1440, 0
  %v1457 = vsel %vm290, %v1441, 0
  %v1460 = vsel %vm290, %v1442, 0
  %v1463 = vsel %vm290, %v1443, 0
  %1465 = vmatprep.subr.mxu0 0.0
  %1466 = vmatpush1.msra.mxu0 %v1445
  %1467 = vmatprep.subr.mxu0 0.0
  %1468 = vmatpush1.msra.mxu0 %v1446
  %1469 = vmatprep.subr.mxu0 0.0
  %1470 = vmatpush1.msra.mxu0 %v1447
  %1471 = vmatprep.subr.mxu0 0.0
  %1472 = vmatpush1.msra.mxu0 %v1448
  %1473 = vmatprep.subr.mxu0 0.0
  %1474 = vmatpush1.msra.mxu0 %v1449
  %1475 = vmatprep.subr.mxu0 0.0
  %1476 = vmatpush1.msra.mxu0 %v1450
  %1477 = vmatprep.subr.mxu0 0.0
  %1478 = vmatpush1.msra.mxu0 %v1451
  %1479 = vmatprep.subr.mxu0 0.0
  %1480 = vmatpush1.msra.mxu0 %v1452
  %1481 = vmatprep.subr.mxu0 0.0
  %1482 = vmatpush1.msra.mxu0 0.0
  %1483 = vmatprep.subr.mxu0 0.0
  %1484 = vmatpush1.msra.mxu0 0.0
  %1485 = vmatprep.subr.mxu0 0.0
  %1486 = vmatpush1.msra.mxu0 0.0
  %1487 = vmatprep.subr.mxu0 0.0
  %1488 = vmatpush1.msra.mxu0 0.0
  %1489 = vmatprep.subr.mxu0 0.0
  %1490 = vmatpush1.msra.mxu0 0.0
  %1491 = vmatprep.subr.mxu0 0.0
  %1492 = vmatpush1.msra.mxu0 0.0
  %1493 = vmatprep.subr.mxu0 0.0
  %1494 = vmatpush1.msra.mxu0 0.0
  %1495 = vmatprep.subr.mxu0 0.0
  %1496 = vmatpush1.msra.mxu0 0.0
  %1497 = vmatprep.subr.mxu0 0.0
  %1498 = vmatpush1.msra.mxu0 0.0
  %1499 = vmatprep.subr.mxu0 0.0
  %1500 = vmatpush1.msra.mxu0 0.0
  %1501 = vmatprep.subr.mxu0 0.0
  %1502 = vmatpush1.msra.mxu0 0.0
  %1503 = vmatprep.subr.mxu0 0.0
  %1504 = vmatpush1.msra.mxu0 0.0
  %1505 = vmatprep.subr.mxu0 0.0
  %1506 = vmatpush1.msra.mxu0 0.0
  %1507 = vmatprep.subr.mxu0 0.0
  %1508 = vmatpush1.msra.mxu0 0.0
  %1509 = vmatprep.subr.mxu0 0.0
  %1510 = vmatpush1.msra.mxu0 0.0
  %1511 = vmatprep.subr.mxu0 0.0
  %1512 = vmatpush1.msra.mxu0 0.0
  %1513 = vmatprep.subr.mxu0 0.0
  %1514 = vmatpush1.msra.mxu0 0.0
  %1515 = vmatprep.subr.mxu0 0.0
  %1516 = vmatpush1.msra.mxu0 0.0
  %1517 = vmatprep.subr.mxu0 0.0
  %1518 = vmatpush1.msra.mxu0 0.0
  %1519 = vmatprep.subr.mxu0 0.0
  %1520 = vmatpush1.msra.mxu0 0.0
  %1521 = vmatprep.subr.mxu0 0.0
  %1522 = vmatpush1.msra.mxu0 0.0
  %1523 = vmatprep.subr.mxu0 0.0
  %1524 = vmatpush1.msra.mxu0 0.0
  %1525 = vmatprep.subr.mxu0 0.0
  %1526 = vmatpush1.msra.mxu0 0.0
  %1527 = vmatprep.subr.mxu0 0.0
  %1528 = vmatpush1.msra.mxu0 0.0
  %1529 = vmatprep.mubr.f32.mxu0 0.0
  %1530 = vmatmul.mubr.f32.gmra.mrb[0].mxu0 %v1454
  %v1531 = vpop.f32.mrb[0].mxu0
  %v1532 = vadd.f32 0.0, %v1531
  %v1533 = vpop.f32.mrb[0].mxu0
  %1534 = vmatprep.mubr.f32.mxu0 0.0
  %1535 = vmatmul.mubr.f32.gmra.mrb[0].mxu0 %v1457
  %v1536 = vpop.f32.mrb[0].mxu0
  %v1537 = vadd.f32 0.0, %v1536
  %v1538 = vpop.f32.mrb[0].mxu0
  %1539 = vmatprep.mubr.f32.mxu0 0.0
  %1540 = vmatmul.mubr.f32.gmra.mrb[0].mxu0 %v1460
  %v1541 = vpop.f32.mrb[0].mxu0
  %v1542 = vadd.f32 0.0, %v1541
  %v1543 = vpop.f32.mrb[0].mxu0
  %1544 = vmatprep.mubr.f32.mxu0 0.0
  %1545 = vmatmul.mubr.f32.gmra.mrb[0].mxu0 %v1463
  %v1546 = vpop.f32.mrb[0].mxu0
  %v1547 = vadd.f32 0.0, %v1546
  %v1548 = vpop.f32.mrb[0].mxu0
  %1549 = vdwg.mxu0
  %v1550 = vadd.f32 %v1436, %v1532
  %v1551 = vadd.f32 %v1437, %v1537
  %v1552 = vadd.f32 %v1438, %v1542
  %v1553 = vadd.f32 %v1439, %v1547
  %v1554 = vld [vmem:[#allocation2 + $0x5e] sm:$0xff]
  %v1555 = vld [vmem:[#allocation2 + $0x66] sm:$0xff]
  %v1556 = vld [vmem:[#allocation2 + $0x6e] sm:$0xff]
  %v1557 = vld [vmem:[#allocation2 + $0x76] sm:$0x3]
  %s1558 = scalar_lea.vmem %s3, 704
  %v1559 = vld [vmem:[%s1558] sm:$0xff]
  %v1560 = vld [vmem:[%s1558 + $0x8] sm:$0xff]
  %v1561 = vld [vmem:[%s1558 + $0x10] sm:$0xff]
  %v1562 = vld [vmem:[%s1558 + $0x18] sm:$0xff]
  %v1563 = vld [vmem:[%s1558 + $0x20] sm:$0xff]
  %v1564 = vld [vmem:[%s1558 + $0x28] sm:$0xff]
  %v1565 = vld [vmem:[%s1558 + $0x30] sm:$0xff]
  %v1566 = vld [vmem:[%s1558 + $0x38] sm:$0xff]
  %v1568 = vsel %vm290, %v1554, 0
  %v1571 = vsel %vm290, %v1555, 0
  %v1574 = vsel %vm290, %v1556, 0
  %v1577 = vsel %vm290, %v1557, 0
  %1579 = vmatprep.subr.mxu0 0.0
  %1580 = vmatpush1.msra.mxu0 %v1559
  %1581 = vmatprep.subr.mxu0 0.0
  %1582 = vmatpush1.msra.mxu0 %v1560
  %1583 = vmatprep.subr.mxu0 0.0
  %1584 = vmatpush1.msra.mxu0 %v1561
  %1585 = vmatprep.subr.mxu0 0.0
  %1586 = vmatpush1.msra.mxu0 %v1562
  %1587 = vmatprep.subr.mxu0 0.0
  %1588 = vmatpush1.msra.mxu0 %v1563
  %1589 = vmatprep.subr.mxu0 0.0
  %1590 = vmatpush1.msra.mxu0 %v1564
  %1591 = vmatprep.subr.mxu0 0.0
  %1592 = vmatpush1.msra.mxu0 %v1565
  %1593 = vmatprep.subr.mxu0 0.0
  %1594 = vmatpush1.msra.mxu0 %v1566
  %1595 = vmatprep.subr.mxu0 0.0
  %1596 = vmatpush1.msra.mxu0 0.0
  %1597 = vmatprep.subr.mxu0 0.0
  %1598 = vmatpush1.msra.mxu0 0.0
  %1599 = vmatprep.subr.mxu0 0.0
  %1600 = vmatpush1.msra.mxu0 0.0
  %1601 = vmatprep.subr.mxu0 0.0
  %1602 = vmatpush1.msra.mxu0 0.0
  %1603 = vmatprep.subr.mxu0 0.0
  %1604 = vmatpush1.msra.mxu0 0.0
  %1605 = vmatprep.subr.mxu0 0.0
  %1606 = vmatpush1.msra.mxu0 0.0
  %1607 = vmatprep.subr.mxu0 0.0
  %1608 = vmatpush1.msra.mxu0 0.0
  %1609 = vmatprep.subr.mxu0 0.0
  %1610 = vmatpush1.msra.mxu0 0.0
  %1611 = vmatprep.subr.mxu0 0.0
  %1612 = vmatpush1.msra.mxu0 0.0
  %1613 = vmatprep.subr.mxu0 0.0
  %1614 = vmatpush1.msra.mxu0 0.0
  %1615 = vmatprep.subr.mxu0 0.0
  %1616 = vmatpush1.msra.mxu0 0.0
  %1617 = vmatprep.subr.mxu0 0.0
  %1618 = vmatpush1.msra.mxu0 0.0
  %1619 = vmatprep.subr.mxu0 0.0
  %1620 = vmatpush1.msra.mxu0 0.0
  %1621 = vmatprep.subr.mxu0 0.0
  %1622 = vmatpush1.msra.mxu0 0.0
  %1623 = vmatprep.subr.mxu0 0.0
  %1624 = vmatpush1.msra.mxu0 0.0
  %1625 = vmatprep.subr.mxu0 0.0
  %1626 = vmatpush1.msra.mxu0 0.0
  %1627 = vmatprep.subr.mxu0 0.0
  %1628 = vmatpush1.msra.mxu0 0.0
  %1629 = vmatprep.subr.mxu0 0.0
  %1630 = vmatpush1.msra.mxu0 0.0
  %1631 = vmatprep.subr.mxu0 0.0
  %1632 = vmatpush1.msra.mxu0 0.0
  %1633 = vmatprep.subr.mxu0 0.0
  %1634 = vmatpush1.msra.mxu0 0.0
  %1635 = vmatprep.subr.mxu0 0.0
  %1636 = vmatpush1.msra.mxu0 0.0
  %1637 = vmatprep.subr.mxu0 0.0
  %1638 = vmatpush1.msra.mxu0 0.0
  %1639 = vmatprep.subr.mxu0 0.0
  %1640 = vmatpush1.msra.mxu0 0.0
  %1641 = vmatprep.subr.mxu0 0.0
  %1642 = vmatpush1.msra.mxu0 0.0
  %1643 = vmatprep.mubr.f32.mxu0 0.0
  %1644 = vmatmul.mubr.f32.gmra.mrb[0].mxu0 %v1568
  %v1645 = vpop.f32.mrb[0].mxu0
  %v1646 = vadd.f32 0.0, %v1645
  %v1647 = vpop.f32.mrb[0].mxu0
  %1648 = vmatprep.mubr.f32.mxu0 0.0
  %1649 = vmatmul.mubr.f32.gmra.mrb[0].mxu0 %v1571
  %v1650 = vpop.f32.mrb[0].mxu0
  %v1651 = vadd.f32 0.0, %v1650
  %v1652 = vpop.f32.mrb[0].mxu0
  %1653 = vmatprep.mubr.f32.mxu0 0.0
  %1654 = vmatmul.mubr.f32.gmra.mrb[0].mxu0 %v1574
  %v1655 = vpop.f32.mrb[0].mxu0
  %v1656 = vadd.f32 0.0, %v1655
  %v1657 = vpop.f32.mrb[0].mxu0
  %1658 = vmatprep.mubr.f32.mxu0 0.0
  %1659 = vmatmul.mubr.f32.gmra.mrb[0].mxu0 %v1577
  %v1660 = vpop.f32.mrb[0].mxu0
  %v1661 = vadd.f32 0.0, %v1660
  %v1662 = vpop.f32.mrb[0].mxu0
  %1663 = vdwg.mxu0
  %v1664 = vadd.f32 %v1550, %v1646
  %v1665 = vadd.f32 %v1551, %v1651
  %v1666 = vadd.f32 %v1552, %v1656
  %v1667 = vadd.f32 %v1553, %v1661
  %v1668 = vld [vmem:[#allocation2 + $0x8] sm:$0xff]
  %v1669 = vld [vmem:[#allocation2 + $0x10] sm:$0xff]
  %v1670 = vld [vmem:[#allocation2 + $0x18] sm:$0xff]
  %v1671 = vld [vmem:[#allocation2 + $0x20] sm:$0x3]
  %s1672 = scalar_lea.vmem %s3, 768
  %v1673 = vld [vmem:[%s1672] sm:$0xff]
  %v1674 = vld [vmem:[%s1672 + $0x8] sm:$0xff]
  %v1675 = vld [vmem:[%s1672 + $0x10] sm:$0xff]
  %v1676 = vld [vmem:[%s1672 + $0x18] sm:$0xff]
  %v1677 = vld [vmem:[%s1672 + $0x20] sm:$0xff]
  %v1678 = vld [vmem:[%s1672 + $0x28] sm:$0xff]
  %v1679 = vld [vmem:[%s1672 + $0x30] sm:$0xff]
  %v1680 = vld [vmem:[%s1672 + $0x38] sm:$0xff]
  %v1682 = vsel %vm290, %v1668, 0
  %v1685 = vsel %vm290, %v1669, 0
  %v1688 = vsel %vm290, %v1670, 0
  %v1691 = vsel %vm290, %v1671, 0
  %1693 = vmatprep.subr.mxu0 0.0
  %1694 = vmatpush1.msra.mxu0 %v1673
  %1695 = vmatprep.subr.mxu0 0.0
  %1696 = vmatpush1.msra.mxu0 %v1674
  %1697 = vmatprep.subr.mxu0 0.0
  %1698 = vmatpush1.msra.mxu0 %v1675
  %1699 = vmatprep.subr.mxu0 0.0
  %1700 = vmatpush1.msra.mxu0 %v1676
  %1701 = vmatprep.subr.mxu0 0.0
  %1702 = vmatpush1.msra.mxu0 %v1677
  %1703 = vmatprep.subr.mxu0 0.0
  %1704 = vmatpush1.msra.mxu0 %v1678
  %1705 = vmatprep.subr.mxu0 0.0
  %1706 = vmatpush1.msra.mxu0 %v1679
  %1707 = vmatprep.subr.mxu0 0.0
  %1708 = vmatpush1.msra.mxu0 %v1680
  %1709 = vmatprep.subr.mxu0 0.0
  %1710 = vmatpush1.msra.mxu0 0.0
  %1711 = vmatprep.subr.mxu0 0.0
  %1712 = vmatpush1.msra.mxu0 0.0
  %1713 = vmatprep.subr.mxu0 0.0
  %1714 = vmatpush1.msra.mxu0 0.0
  %1715 = vmatprep.subr.mxu0 0.0
  %1716 = vmatpush1.msra.mxu0 0.0
  %1717 = vmatprep.subr.mxu0 0.0
  %1718 = vmatpush1.msra.mxu0 0.0
  %1719 = vmatprep.subr.mxu0 0.0
  %1720 = vmatpush1.msra.mxu0 0.0
  %1721 = vmatprep.subr.mxu0 0.0
  %1722 = vmatpush1.msra.mxu0 0.0
  %1723 = vmatprep.subr.mxu0 0.0
  %1724 = vmatpush1.msra.mxu0 0.0
  %1725 = vmatprep.subr.mxu0 0.0
  %1726 = vmatpush1.msra.mxu0 0.0
  %1727 = vmatprep.subr.mxu0 0.0
  %1728 = vmatpush1.msra.mxu0 0.0
  %1729 = vmatprep.subr.mxu0 0.0
  %1730 = vmatpush1.msra.mxu0 0.0
  %1731 = vmatprep.subr.mxu0 0.0
  %1732 = vmatpush1.msra.mxu0 0.0
  %1733 = vmatprep.subr.mxu0 0.0
  %1734 = vmatpush1.msra.mxu0 0.0
  %1735 = vmatprep.subr.mxu0 0.0
  %1736 = vmatpush1.msra.mxu0 0.0
  %1737 = vmatprep.subr.mxu0 0.0
  %1738 = vmatpush1.msra.mxu0 0.0
  %1739 = vmatprep.subr.mxu0 0.0
  %1740 = vmatpush1.msra.mxu0 0.0
  %1741 = vmatprep.subr.mxu0 0.0
  %1742 = vmatpush1.msra.mxu0 0.0
  %1743 = vmatprep.subr.mxu0 0.0
  %1744 = vmatpush1.msra.mxu0 0.0
  %1745 = vmatprep.subr.mxu0 0.0
  %1746 = vmatpush1.msra.mxu0 0.0
  %1747 = vmatprep.subr.mxu0 0.0
  %1748 = vmatpush1.msra.mxu0 0.0
  %1749 = vmatprep.subr.mxu0 0.0
  %1750 = vmatpush1.msra.mxu0 0.0
  %1751 = vmatprep.subr.mxu0 0.0
  %1752 = vmatpush1.msra.mxu0 0.0
  %1753 = vmatprep.subr.mxu0 0.0
  %1754 = vmatpush1.msra.mxu0 0.0
  %1755 = vmatprep.subr.mxu0 0.0
  %1756 = vmatpush1.msra.mxu0 0.0
  %1757 = vmatprep.mubr.f32.mxu0 0.0
  %1758 = vmatmul.mubr.f32.gmra.mrb[0].mxu0 %v1682
  %v1759 = vpop.f32.mrb[0].mxu0
  %v1760 = vadd.f32 0.0, %v1759
  %v1761 = vpop.f32.mrb[0].mxu0
  %1762 = vmatprep.mubr.f32.mxu0 0.0
  %1763 = vmatmul.mubr.f32.gmra.mrb[0].mxu0 %v1685
  %v1764 = vpop.f32.mrb[0].mxu0
  %v1765 = vadd.f32 0.0, %v1764
  %v1766 = vpop.f32.mrb[0].mxu0
  %1767 = vmatprep.mubr.f32.mxu0 0.0
  %1768 = vmatmul.mubr.f32.gmra.mrb[0].mxu0 %v1688
  %v1769 = vpop.f32.mrb[0].mxu0
  %v1770 = vadd.f32 0.0, %v1769
  %v1771 = vpop.f32.mrb[0].mxu0
  %1772 = vmatprep.mubr.f32.mxu0 0.0
  %1773 = vmatmul.mubr.f32.gmra.mrb[0].mxu0 %v1691
  %v1774 = vpop.f32.mrb[0].mxu0
  %v1775 = vadd.f32 0.0, %v1774
  %v1776 = vpop.f32.mrb[0].mxu0
  %1777 = vdwg.mxu0
  %v1778 = vadd.f32 %v1664, %v1760
  %v1779 = vadd.f32 %v1665, %v1765
  %v1780 = vadd.f32 %v1666, %v1770
  %v1781 = vadd.f32 %v1667, %v1775
  %v1782 = vld [vmem:[#allocation2 + $0x34] sm:$0xff]
  %v1783 = vld [vmem:[#allocation2 + $0x3c] sm:$0xff]
  %v1784 = vld [vmem:[#allocation2 + $0x44] sm:$0xff]
  %v1785 = vld [vmem:[#allocation2 + $0x4c] sm:$0x3]
  %s1786 = scalar_lea.vmem %s3, 832
  %v1787 = vld [vmem:[%s1786] sm:$0xff]
  %v1788 = vld [vmem:[%s1786 + $0x8] sm:$0xff]
  %v1789 = vld [vmem:[%s1786 + $0x10] sm:$0xff]
  %v1790 = vld [vmem:[%s1786 + $0x18] sm:$0xff]
  %v1791 = vld [vmem:[%s1786 + $0x20] sm:$0xff]
  %v1792 = vld [vmem:[%s1786 + $0x28] sm:$0xff]
  %v1793 = vld [vmem:[%s1786 + $0x30] sm:$0xff]
  %v1794 = vld [vmem:[%s1786 + $0x38] sm:$0xff]
  %v1796 = vsel %vm290, %v1782, 0
  %v1799 = vsel %vm290, %v1783, 0
  %v1802 = vsel %vm290, %v1784, 0
  %v1805 = vsel %vm290, %v1785, 0
  %1807 = vmatprep.subr.mxu0 0.0
  %1808 = vmatpush1.msra.mxu0 %v1787
  %1809 = vmatprep.subr.mxu0 0.0
  %1810 = vmatpush1.msra.mxu0 %v1788
  %1811 = vmatprep.subr.mxu0 0.0
  %1812 = vmatpush1.msra.mxu0 %v1789
  %1813 = vmatprep.subr.mxu0 0.0
  %1814 = vmatpush1.msra.mxu0 %v1790
  %1815 = vmatprep.subr.mxu0 0.0
  %1816 = vmatpush1.msra.mxu0 %v1791
  %1817 = vmatprep.subr.mxu0 0.0
  %1818 = vmatpush1.msra.mxu0 %v1792
  %1819 = vmatprep.subr.mxu0 0.0
  %1820 = vmatpush1.msra.mxu0 %v1793
  %1821 = vmatprep.subr.mxu0 0.0
  %1822 = vmatpush1.msra.mxu0 %v1794
  %1823 = vmatprep.subr.mxu0 0.0
  %1824 = vmatpush1.msra.mxu0 0.0
  %1825 = vmatprep.subr.mxu0 0.0
  %1826 = vmatpush1.msra.mxu0 0.0
  %1827 = vmatprep.subr.mxu0 0.0
  %1828 = vmatpush1.msra.mxu0 0.0
  %1829 = vmatprep.subr.mxu0 0.0
  %1830 = vmatpush1.msra.mxu0 0.0
  %1831 = vmatprep.subr.mxu0 0.0
  %1832 = vmatpush1.msra.mxu0 0.0
  %1833 = vmatprep.subr.mxu0 0.0
  %1834 = vmatpush1.msra.mxu0 0.0
  %1835 = vmatprep.subr.mxu0 0.0
  %1836 = vmatpush1.msra.mxu0 0.0
  %1837 = vmatprep.subr.mxu0 0.0
  %1838 = vmatpush1.msra.mxu0 0.0
  %1839 = vmatprep.subr.mxu0 0.0
  %1840 = vmatpush1.msra.mxu0 0.0
  %1841 = vmatprep.subr.mxu0 0.0
  %1842 = vmatpush1.msra.mxu0 0.0
  %1843 = vmatprep.subr.mxu0 0.0
  %1844 = vmatpush1.msra.mxu0 0.0
  %1845 = vmatprep.subr.mxu0 0.0
  %1846 = vmatpush1.msra.mxu0 0.0
  %1847 = vmatprep.subr.mxu0 0.0
  %1848 = vmatpush1.msra.mxu0 0.0
  %1849 = vmatprep.subr.mxu0 0.0
  %1850 = vmatpush1.msra.mxu0 0.0
  %1851 = vmatprep.subr.mxu0 0.0
  %1852 = vmatpush1.msra.mxu0 0.0
  %1853 = vmatprep.subr.mxu0 0.0
  %1854 = vmatpush1.msra.mxu0 0.0
  %1855 = vmatprep.subr.mxu0 0.0
  %1856 = vmatpush1.msra.mxu0 0.0
  %1857 = vmatprep.subr.mxu0 0.0
  %1858 = vmatpush1.msra.mxu0 0.0
  %1859 = vmatprep.subr.mxu0 0.0
  %1860 = vmatpush1.msra.mxu0 0.0
  %1861 = vmatprep.subr.mxu0 0.0
  %1862 = vmatpush1.msra.mxu0 0.0
  %1863 = vmatprep.subr.mxu0 0.0
  %1864 = vmatpush1.msra.mxu0 0.0
  %1865 = vmatprep.subr.mxu0 0.0
  %1866 = vmatpush1.msra.mxu0 0.0
  %1867 = vmatprep.subr.mxu0 0.0
  %1868 = vmatpush1.msra.mxu0 0.0
  %1869 = vmatprep.subr.mxu0 0.0
  %1870 = vmatpush1.msra.mxu0 0.0
  %1871 = vmatprep.mubr.f32.mxu0 0.0
  %1872 = vmatmul.mubr.f32.gmra.mrb[0].mxu0 %v1796
  %v1873 = vpop.f32.mrb[0].mxu0
  %v1874 = vadd.f32 0.0, %v1873
  %v1875 = vpop.f32.mrb[0].mxu0
  %1876 = vmatprep.mubr.f32.mxu0 0.0
  %1877 = vmatmul.mubr.f32.gmra.mrb[0].mxu0 %v1799
  %v1878 = vpop.f32.mrb[0].mxu0
  %v1879 = vadd.f32 0.0, %v1878
  %v1880 = vpop.f32.mrb[0].mxu0
  %1881 = vmatprep.mubr.f32.mxu0 0.0
  %1882 = vmatmul.mubr.f32.gmra.mrb[0].mxu0 %v1802
  %v1883 = vpop.f32.mrb[0].mxu0
  %v1884 = vadd.f32 0.0, %v1883
  %v1885 = vpop.f32.mrb[0].mxu0
  %1886 = vmatprep.mubr.f32.mxu0 0.0
  %1887 = vmatmul.mubr.f32.gmra.mrb[0].mxu0 %v1805
  %v1888 = vpop.f32.mrb[0].mxu0
  %v1889 = vadd.f32 0.0, %v1888
  %v1890 = vpop.f32.mrb[0].mxu0
  %1891 = vdwg.mxu0
  %v1892 = vadd.f32 %v1778, %v1874
  %v1893 = vadd.f32 %v1779, %v1879
  %v1894 = vadd.f32 %v1780, %v1884
  %v1895 = vadd.f32 %v1781, %v1889
  %v1896 = vld [vmem:[#allocation2 + $0x60] sm:$0xff]
  %v1897 = vld [vmem:[#allocation2 + $0x68] sm:$0xff]
  %v1898 = vld [vmem:[#allocation2 + $0x70] sm:$0xff]
  %v1899 = vld [vmem:[#allocation2 + $0x78] sm:$0x3]
  %s1900 = scalar_lea.vmem %s3, 896
  %v1901 = vld [vmem:[%s1900] sm:$0xff]
  %v1902 = vld [vmem:[%s1900 + $0x8] sm:$0xff]
  %v1903 = vld [vmem:[%s1900 + $0x10] sm:$0xff]
  %v1904 = vld [vmem:[%s1900 + $0x18] sm:$0xff]
  %v1905 = vld [vmem:[%s1900 + $0x20] sm:$0xff]
  %v1906 = vld [vmem:[%s1900 + $0x28] sm:$0xff]
  %v1907 = vld [vmem:[%s1900 + $0x30] sm:$0xff]
  %v1908 = vld [vmem:[%s1900 + $0x38] sm:$0xff]
  %v1910 = vsel %vm290, %v1896, 0
  %v1913 = vsel %vm290, %v1897, 0
  %v1916 = vsel %vm290, %v1898, 0
  %v1919 = vsel %vm290, %v1899, 0
  %1921 = vmatprep.subr.mxu0 0.0
  %1922 = vmatpush1.msra.mxu0 %v1901
  %1923 = vmatprep.subr.mxu0 0.0
  %1924 = vmatpush1.msra.mxu0 %v1902
  %1925 = vmatprep.subr.mxu0 0.0
  %1926 = vmatpush1.msra.mxu0 %v1903
  %1927 = vmatprep.subr.mxu0 0.0
  %1928 = vmatpush1.msra.mxu0 %v1904
  %1929 = vmatprep.subr.mxu0 0.0
  %1930 = vmatpush1.msra.mxu0 %v1905
  %1931 = vmatprep.subr.mxu0 0.0
  %1932 = vmatpush1.msra.mxu0 %v1906
  %1933 = vmatprep.subr.mxu0 0.0
  %1934 = vmatpush1.msra.mxu0 %v1907
  %1935 = vmatprep.subr.mxu0 0.0
  %1936 = vmatpush1.msra.mxu0 %v1908
  %1937 = vmatprep.subr.mxu0 0.0
  %1938 = vmatpush1.msra.mxu0 0.0
  %1939 = vmatprep.subr.mxu0 0.0
  %1940 = vmatpush1.msra.mxu0 0.0
  %1941 = vmatprep.subr.mxu0 0.0
  %1942 = vmatpush1.msra.mxu0 0.0
  %1943 = vmatprep.subr.mxu0 0.0
  %1944 = vmatpush1.msra.mxu0 0.0
  %1945 = vmatprep.subr.mxu0 0.0
  %1946 = vmatpush1.msra.mxu0 0.0
  %1947 = vmatprep.subr.mxu0 0.0
  %1948 = vmatpush1.msra.mxu0 0.0
  %1949 = vmatprep.subr.mxu0 0.0
  %1950 = vmatpush1.msra.mxu0 0.0
  %1951 = vmatprep.subr.mxu0 0.0
  %1952 = vmatpush1.msra.mxu0 0.0
  %1953 = vmatprep.subr.mxu0 0.0
  %1954 = vmatpush1.msra.mxu0 0.0
  %1955 = vmatprep.subr.mxu0 0.0
  %1956 = vmatpush1.msra.mxu0 0.0
  %1957 = vmatprep.subr.mxu0 0.0
  %1958 = vmatpush1.msra.mxu0 0.0
  %1959 = vmatprep.subr.mxu0 0.0
  %1960 = vmatpush1.msra.mxu0 0.0
  %1961 = vmatprep.subr.mxu0 0.0
  %1962 = vmatpush1.msra.mxu0 0.0
  %1963 = vmatprep.subr.mxu0 0.0
  %1964 = vmatpush1.msra.mxu0 0.0
  %1965 = vmatprep.subr.mxu0 0.0
  %1966 = vmatpush1.msra.mxu0 0.0
  %1967 = vmatprep.subr.mxu0 0.0
  %1968 = vmatpush1.msra.mxu0 0.0
  %1969 = vmatprep.subr.mxu0 0.0
  %1970 = vmatpush1.msra.mxu0 0.0
  %1971 = vmatprep.subr.mxu0 0.0
  %1972 = vmatpush1.msra.mxu0 0.0
  %1973 = vmatprep.subr.mxu0 0.0
  %1974 = vmatpush1.msra.mxu0 0.0
  %1975 = vmatprep.subr.mxu0 0.0
  %1976 = vmatpush1.msra.mxu0 0.0
  %1977 = vmatprep.subr.mxu0 0.0
  %1978 = vmatpush1.msra.mxu0 0.0
  %1979 = vmatprep.subr.mxu0 0.0
  %1980 = vmatpush1.msra.mxu0 0.0
  %1981 = vmatprep.subr.mxu0 0.0
  %1982 = vmatpush1.msra.mxu0 0.0
  %1983 = vmatprep.subr.mxu0 0.0
  %1984 = vmatpush1.msra.mxu0 0.0
  %1985 = vmatprep.mubr.f32.mxu0 0.0
  %1986 = vmatmul.mubr.f32.gmra.mrb[0].mxu0 %v1910
  %v1987 = vpop.f32.mrb[0].mxu0
  %v1988 = vadd.f32 0.0, %v1987
  %v1989 = vpop.f32.mrb[0].mxu0
  %1990 = vmatprep.mubr.f32.mxu0 0.0
  %1991 = vmatmul.mubr.f32.gmra.mrb[0].mxu0 %v1913
  %v1992 = vpop.f32.mrb[0].mxu0
  %v1993 = vadd.f32 0.0, %v1992
  %v1994 = vpop.f32.mrb[0].mxu0
  %1995 = vmatprep.mubr.f32.mxu0 0.0
  %1996 = vmatmul.mubr.f32.gmra.mrb[0].mxu0 %v1916
  %v1997 = vpop.f32.mrb[0].mxu0
  %v1998 = vadd.f32 0.0, %v1997
  %v1999 = vpop.f32.mrb[0].mxu0
  %2000 = vmatprep.mubr.f32.mxu0 0.0
  %2001 = vmatmul.mubr.f32.gmra.mrb[0].mxu0 %v1919
  %v2002 = vpop.f32.mrb[0].mxu0
  %v2003 = vadd.f32 0.0, %v2002
  %v2004 = vpop.f32.mrb[0].mxu0
  %2005 = vdwg.mxu0
  %v2006 = vadd.f32 %v1892, %v1988
  %v2007 = vadd.f32 %v1893, %v1993
  %v2008 = vadd.f32 %v1894, %v1998
  %v2009 = vadd.f32 %v1895, %v2003
  %v2010 = vld [vmem:[#allocation2 + $0xa] sm:$0xff]
  %v2011 = vld [vmem:[#allocation2 + $0x12] sm:$0xff]
  %v2012 = vld [vmem:[#allocation2 + $0x1a] sm:$0xff]
  %v2013 = vld [vmem:[#allocation2 + $0x22] sm:$0x3]
  %s2014 = scalar_lea.vmem %s3, 960
  %v2015 = vld [vmem:[%s2014] sm:$0xff]
  %v2016 = vld [vmem:[%s2014 + $0x8] sm:$0xff]
  %v2017 = vld [vmem:[%s2014 + $0x10] sm:$0xff]
  %v2018 = vld [vmem:[%s2014 + $0x18] sm:$0xff]
  %v2019 = vld [vmem:[%s2014 + $0x20] sm:$0xff]
  %v2020 = vld [vmem:[%s2014 + $0x28] sm:$0xff]
  %v2021 = vld [vmem:[%s2014 + $0x30] sm:$0xff]
  %v2022 = vld [vmem:[%s2014 + $0x38] sm:$0xff]
  %v2024 = vsel %vm290, %v2010, 0
  %v2027 = vsel %vm290, %v2011, 0
  %v2030 = vsel %vm290, %v2012, 0
  %v2033 = vsel %vm290, %v2013, 0
  %2035 = vmatprep.subr.mxu0 0.0
  %2036 = vmatpush1.msra.mxu0 %v2015
  %2037 = vmatprep.subr.mxu0 0.0
  %2038 = vmatpush1.msra.mxu0 %v2016
  %2039 = vmatprep.subr.mxu0 0.0
  %2040 = vmatpush1.msra.mxu0 %v2017
  %2041 = vmatprep.subr.mxu0 0.0
  %2042 = vmatpush1.msra.mxu0 %v2018
  %2043 = vmatprep.subr.mxu0 0.0
  %2044 = vmatpush1.msra.mxu0 %v2019
  %2045 = vmatprep.subr.mxu0 0.0
  %2046 = vmatpush1.msra.mxu0 %v2020
  %2047 = vmatprep.subr.mxu0 0.0
  %2048 = vmatpush1.msra.mxu0 %v2021
  %2049 = vmatprep.subr.mxu0 0.0
  %2050 = vmatpush1.msra.mxu0 %v2022
  %2051 = vmatprep.subr.mxu0 0.0
  %2052 = vmatpush1.msra.mxu0 0.0
  %2053 = vmatprep.subr.mxu0 0.0
  %2054 = vmatpush1.msra.mxu0 0.0
  %2055 = vmatprep.subr.mxu0 0.0
  %2056 = vmatpush1.msra.mxu0 0.0
  %2057 = vmatprep.subr.mxu0 0.0
  %2058 = vmatpush1.msra.mxu0 0.0
  %2059 = vmatprep.subr.mxu0 0.0
  %2060 = vmatpush1.msra.mxu0 0.0
  %2061 = vmatprep.subr.mxu0 0.0
  %2062 = vmatpush1.msra.mxu0 0.0
  %2063 = vmatprep.subr.mxu0 0.0
  %2064 = vmatpush1.msra.mxu0 0.0
  %2065 = vmatprep.subr.mxu0 0.0
  %2066 = vmatpush1.msra.mxu0 0.0
  %2067 = vmatprep.subr.mxu0 0.0
  %2068 = vmatpush1.msra.mxu0 0.0
  %2069 = vmatprep.subr.mxu0 0.0
  %2070 = vmatpush1.msra.mxu0 0.0
  %2071 = vmatprep.subr.mxu0 0.0
  %2072 = vmatpush1.msra.mxu0 0.0
  %2073 = vmatprep.subr.mxu0 0.0
  %2074 = vmatpush1.msra.mxu0 0.0
  %2075 = vmatprep.subr.mxu0 0.0
  %2076 = vmatpush1.msra.mxu0 0.0
  %2077 = vmatprep.subr.mxu0 0.0
  %2078 = vmatpush1.msra.mxu0 0.0
  %2079 = vmatprep.subr.mxu0 0.0
  %2080 = vmatpush1.msra.mxu0 0.0
  %2081 = vmatprep.subr.mxu0 0.0
  %2082 = vmatpush1.msra.mxu0 0.0
  %2083 = vmatprep.subr.mxu0 0.0
  %2084 = vmatpush1.msra.mxu0 0.0
  %2085 = vmatprep.subr.mxu0 0.0
  %2086 = vmatpush1.msra.mxu0 0.0
  %2087 = vmatprep.subr.mxu0 0.0
  %2088 = vmatpush1.msra.mxu0 0.0
  %2089 = vmatprep.subr.mxu0 0.0
  %2090 = vmatpush1.msra.mxu0 0.0
  %2091 = vmatprep.subr.mxu0 0.0
  %2092 = vmatpush1.msra.mxu0 0.0
  %2093 = vmatprep.subr.mxu0 0.0
  %2094 = vmatpush1.msra.mxu0 0.0
  %2095 = vmatprep.subr.mxu0 0.0
  %2096 = vmatpush1.msra.mxu0 0.0
  %2097 = vmatprep.subr.mxu0 0.0
  %2098 = vmatpush1.msra.mxu0 0.0
  %2099 = vmatprep.mubr.f32.mxu0 0.0
  %2100 = vmatmul.mubr.f32.gmra.mrb[0].mxu0 %v2024
  %v2101 = vpop.f32.mrb[0].mxu0
  %v2102 = vadd.f32 0.0, %v2101
  %v2103 = vpop.f32.mrb[0].mxu0
  %2104 = vmatprep.mubr.f32.mxu0 0.0
  %2105 = vmatmul.mubr.f32.gmra.mrb[0].mxu0 %v2027
  %v2106 = vpop.f32.mrb[0].mxu0
  %v2107 = vadd.f32 0.0, %v2106
  %v2108 = vpop.f32.mrb[0].mxu0
  %2109 = vmatprep.mubr.f32.mxu0 0.0
  %2110 = vmatmul.mubr.f32.gmra.mrb[0].mxu0 %v2030
  %v2111 = vpop.f32.mrb[0].mxu0
  %v2112 = vadd.f32 0.0, %v2111
  %v2113 = vpop.f32.mrb[0].mxu0
  %2114 = vmatprep.mubr.f32.mxu0 0.0
  %2115 = vmatmul.mubr.f32.gmra.mrb[0].mxu0 %v2033
  %v2116 = vpop.f32.mrb[0].mxu0
  %v2117 = vadd.f32 0.0, %v2116
  %v2118 = vpop.f32.mrb[0].mxu0
  %2119 = vdwg.mxu0
  %v2120 = vadd.f32 %v2006, %v2102
  %v2121 = vadd.f32 %v2007, %v2107
  %v2122 = vadd.f32 %v2008, %v2112
  %v2123 = vadd.f32 %v2009, %v2117
  %v2124 = vld [vmem:[#allocation2 + $0x36] sm:$0xff]
  %v2125 = vld [vmem:[#allocation2 + $0x3e] sm:$0xff]
  %v2126 = vld [vmem:[#allocation2 + $0x46] sm:$0xff]
  %v2127 = vld [vmem:[#allocation2 + $0x4e] sm:$0x3]
  %s2128 = scalar_lea.vmem %s3, 1024
  %v2129 = vld [vmem:[%s2128] sm:$0xff]
  %v2130 = vld [vmem:[%s2128 + $0x8] sm:$0xff]
  %v2131 = vld [vmem:[%s2128 + $0x10] sm:$0xff]
  %v2132 = vld [vmem:[%s2128 + $0x18] sm:$0xff]
  %v2133 = vld [vmem:[%s2128 + $0x20] sm:$0xff]
  %v2134 = vld [vmem:[%s2128 + $0x28] sm:$0xff]
  %v2135 = vld [vmem:[%s2128 + $0x30] sm:$0xff]
  %v2136 = vld [vmem:[%s2128 + $0x38] sm:$0xff]
  %v2138 = vsel %vm290, %v2124, 0
  %v2141 = vsel %vm290, %v2125, 0
  %v2144 = vsel %vm290, %v2126, 0
  %v2147 = vsel %vm290, %v2127, 0
  %2149 = vmatprep.subr.mxu0 0.0
  %2150 = vmatpush1.msra.mxu0 %v2129
  %2151 = vmatprep.subr.mxu0 0.0
  %2152 = vmatpush1.msra.mxu0 %v2130
  %2153 = vmatprep.subr.mxu0 0.0
  %2154 = vmatpush1.msra.mxu0 %v2131
  %2155 = vmatprep.subr.mxu0 0.0
  %2156 = vmatpush1.msra.mxu0 %v2132
  %2157 = vmatprep.subr.mxu0 0.0
  %2158 = vmatpush1.msra.mxu0 %v2133
  %2159 = vmatprep.subr.mxu0 0.0
  %2160 = vmatpush1.msra.mxu0 %v2134
  %2161 = vmatprep.subr.mxu0 0.0
  %2162 = vmatpush1.msra.mxu0 %v2135
  %2163 = vmatprep.subr.mxu0 0.0
  %2164 = vmatpush1.msra.mxu0 %v2136
  %2165 = vmatprep.subr.mxu0 0.0
  %2166 = vmatpush1.msra.mxu0 0.0
  %2167 = vmatprep.subr.mxu0 0.0
  %2168 = vmatpush1.msra.mxu0 0.0
  %2169 = vmatprep.subr.mxu0 0.0
  %2170 = vmatpush1.msra.mxu0 0.0
  %2171 = vmatprep.subr.mxu0 0.0
  %2172 = vmatpush1.msra.mxu0 0.0
  %2173 = vmatprep.subr.mxu0 0.0
  %2174 = vmatpush1.msra.mxu0 0.0
  %2175 = vmatprep.subr.mxu0 0.0
  %2176 = vmatpush1.msra.mxu0 0.0
  %2177 = vmatprep.subr.mxu0 0.0
  %2178 = vmatpush1.msra.mxu0 0.0
  %2179 = vmatprep.subr.mxu0 0.0
  %2180 = vmatpush1.msra.mxu0 0.0
  %2181 = vmatprep.subr.mxu0 0.0
  %2182 = vmatpush1.msra.mxu0 0.0
  %2183 = vmatprep.subr.mxu0 0.0
  %2184 = vmatpush1.msra.mxu0 0.0
  %2185 = vmatprep.subr.mxu0 0.0
  %2186 = vmatpush1.msra.mxu0 0.0
  %2187 = vmatprep.subr.mxu0 0.0
  %2188 = vmatpush1.msra.mxu0 0.0
  %2189 = vmatprep.subr.mxu0 0.0
  %2190 = vmatpush1.msra.mxu0 0.0
  %2191 = vmatprep.subr.mxu0 0.0
  %2192 = vmatpush1.msra.mxu0 0.0
  %2193 = vmatprep.subr.mxu0 0.0
  %2194 = vmatpush1.msra.mxu0 0.0
  %2195 = vmatprep.subr.mxu0 0.0
  %2196 = vmatpush1.msra.mxu0 0.0
  %2197 = vmatprep.subr.mxu0 0.0
  %2198 = vmatpush1.msra.mxu0 0.0
  %2199 = vmatprep.subr.mxu0 0.0
  %2200 = vmatpush1.msra.mxu0 0.0
  %2201 = vmatprep.subr.mxu0 0.0
  %2202 = vmatpush1.msra.mxu0 0.0
  %2203 = vmatprep.subr.mxu0 0.0
  %2204 = vmatpush1.msra.mxu0 0.0
  %2205 = vmatprep.subr.mxu0 0.0
  %2206 = vmatpush1.msra.mxu0 0.0
  %2207 = vmatprep.subr.mxu0 0.0
  %2208 = vmatpush1.msra.mxu0 0.0
  %2209 = vmatprep.subr.mxu0 0.0
  %2210 = vmatpush1.msra.mxu0 0.0
  %2211 = vmatprep.subr.mxu0 0.0
  %2212 = vmatpush1.msra.mxu0 0.0
  %2213 = vmatprep.mubr.f32.mxu0 0.0
  %2214 = vmatmul.mubr.f32.gmra.mrb[0].mxu0 %v2138
  %v2215 = vpop.f32.mrb[0].mxu0
  %v2216 = vadd.f32 0.0, %v2215
  %v2217 = vpop.f32.mrb[0].mxu0
  %2218 = vmatprep.mubr.f32.mxu0 0.0
  %2219 = vmatmul.mubr.f32.gmra.mrb[0].mxu0 %v2141
  %v2220 = vpop.f32.mrb[0].mxu0
  %v2221 = vadd.f32 0.0, %v2220
  %v2222 = vpop.f32.mrb[0].mxu0
  %2223 = vmatprep.mubr.f32.mxu0 0.0
  %2224 = vmatmul.mubr.f32.gmra.mrb[0].mxu0 %v2144
  %v2225 = vpop.f32.mrb[0].mxu0
  %v2226 = vadd.f32 0.0, %v2225
  %v2227 = vpop.f32.mrb[0].mxu0
  %2228 = vmatprep.mubr.f32.mxu0 0.0
  %2229 = vmatmul.mubr.f32.gmra.mrb[0].mxu0 %v2147
  %v2230 = vpop.f32.mrb[0].mxu0
  %v2231 = vadd.f32 0.0, %v2230
  %v2232 = vpop.f32.mrb[0].mxu0
  %2233 = vdwg.mxu0
  %v2234 = vadd.f32 %v2120, %v2216
  %v2235 = vadd.f32 %v2121, %v2221
  %v2236 = vadd.f32 %v2122, %v2226
  %v2237 = vadd.f32 %v2123, %v2231
  %v2238 = vld [vmem:[#allocation2 + $0x62] sm:$0xff]
  %v2239 = vld [vmem:[#allocation2 + $0x6a] sm:$0xff]
  %v2240 = vld [vmem:[#allocation2 + $0x72] sm:$0xff]
  %v2241 = vld [vmem:[#allocation2 + $0x7a] sm:$0x3]
  %s2242 = scalar_lea.vmem %s3, 1088
  %v2243 = vld [vmem:[%s2242] sm:$0xff]
  %v2244 = vld [vmem:[%s2242 + $0x8] sm:$0xff]
  %v2245 = vld [vmem:[%s2242 + $0x10] sm:$0xff]
  %v2246 = vld [vmem:[%s2242 + $0x18] sm:$0xff]
  %v2247 = vld [vmem:[%s2242 + $0x20] sm:$0xff]
  %v2248 = vld [vmem:[%s2242 + $0x28] sm:$0xff]
  %v2249 = vld [vmem:[%s2242 + $0x30] sm:$0xff]
  %v2250 = vld [vmem:[%s2242 + $0x38] sm:$0xff]
  %v2252 = vsel %vm290, %v2238, 0
  %v2255 = vsel %vm290, %v2239, 0
  %v2258 = vsel %vm290, %v2240, 0
  %v2261 = vsel %vm290, %v2241, 0
  %2263 = vmatprep.subr.mxu0 0.0
  %2264 = vmatpush1.msra.mxu0 %v2243
  %2265 = vmatprep.subr.mxu0 0.0
  %2266 = vmatpush1.msra.mxu0 %v2244
  %2267 = vmatprep.subr.mxu0 0.0
  %2268 = vmatpush1.msra.mxu0 %v2245
  %2269 = vmatprep.subr.mxu0 0.0
  %2270 = vmatpush1.msra.mxu0 %v2246
  %2271 = vmatprep.subr.mxu0 0.0
  %2272 = vmatpush1.msra.mxu0 %v2247
  %2273 = vmatprep.subr.mxu0 0.0
  %2274 = vmatpush1.msra.mxu0 %v2248
  %2275 = vmatprep.subr.mxu0 0.0
  %2276 = vmatpush1.msra.mxu0 %v2249
  %2277 = vmatprep.subr.mxu0 0.0
  %2278 = vmatpush1.msra.mxu0 %v2250
  %2279 = vmatprep.subr.mxu0 0.0
  %2280 = vmatpush1.msra.mxu0 0.0
  %2281 = vmatprep.subr.mxu0 0.0
  %2282 = vmatpush1.msra.mxu0 0.0
  %2283 = vmatprep.subr.mxu0 0.0
  %2284 = vmatpush1.msra.mxu0 0.0
  %2285 = vmatprep.subr.mxu0 0.0
  %2286 = vmatpush1.msra.mxu0 0.0
  %2287 = vmatprep.subr.mxu0 0.0
  %2288 = vmatpush1.msra.mxu0 0.0
  %2289 = vmatprep.subr.mxu0 0.0
  %2290 = vmatpush1.msra.mxu0 0.0
  %2291 = vmatprep.subr.mxu0 0.0
  %2292 = vmatpush1.msra.mxu0 0.0
  %2293 = vmatprep.subr.mxu0 0.0
  %2294 = vmatpush1.msra.mxu0 0.0
  %2295 = vmatprep.subr.mxu0 0.0
  %2296 = vmatpush1.msra.mxu0 0.0
  %2297 = vmatprep.subr.mxu0 0.0
  %2298 = vmatpush1.msra.mxu0 0.0
  %2299 = vmatprep.subr.mxu0 0.0
  %2300 = vmatpush1.msra.mxu0 0.0
  %2301 = vmatprep.subr.mxu0 0.0
  %2302 = vmatpush1.msra.mxu0 0.0
  %2303 = vmatprep.subr.mxu0 0.0
  %2304 = vmatpush1.msra.mxu0 0.0
  %2305 = vmatprep.subr.mxu0 0.0
  %2306 = vmatpush1.msra.mxu0 0.0
  %2307 = vmatprep.subr.mxu0 0.0
  %2308 = vmatpush1.msra.mxu0 0.0
  %2309 = vmatprep.subr.mxu0 0.0
  %2310 = vmatpush1.msra.mxu0 0.0
  %2311 = vmatprep.subr.mxu0 0.0
  %2312 = vmatpush1.msra.mxu0 0.0
  %2313 = vmatprep.subr.mxu0 0.0
  %2314 = vmatpush1.msra.mxu0 0.0
  %2315 = vmatprep.subr.mxu0 0.0
  %2316 = vmatpush1.msra.mxu0 0.0
  %2317 = vmatprep.subr.mxu0 0.0
  %2318 = vmatpush1.msra.mxu0 0.0
  %2319 = vmatprep.subr.mxu0 0.0
  %2320 = vmatpush1.msra.mxu0 0.0
  %2321 = vmatprep.subr.mxu0 0.0
  %2322 = vmatpush1.msra.mxu0 0.0
  %2323 = vmatprep.subr.mxu0 0.0
  %2324 = vmatpush1.msra.mxu0 0.0
  %2325 = vmatprep.subr.mxu0 0.0
  %2326 = vmatpush1.msra.mxu0 0.0
  %2327 = vmatprep.mubr.f32.mxu0 0.0
  %2328 = vmatmul.mubr.f32.gmra.mrb[0].mxu0 %v2252
  %v2329 = vpop.f32.mrb[0].mxu0
  %v2330 = vadd.f32 0.0, %v2329
  %v2331 = vpop.f32.mrb[0].mxu0
  %2332 = vmatprep.mubr.f32.mxu0 0.0
  %2333 = vmatmul.mubr.f32.gmra.mrb[0].mxu0 %v2255
  %v2334 = vpop.f32.mrb[0].mxu0
  %v2335 = vadd.f32 0.0, %v2334
  %v2336 = vpop.f32.mrb[0].mxu0
  %2337 = vmatprep.mubr.f32.mxu0 0.0
  %2338 = vmatmul.mubr.f32.gmra.mrb[0].mxu0 %v2258
  %v2339 = vpop.f32.mrb[0].mxu0
  %v2340 = vadd.f32 0.0, %v2339
  %v2341 = vpop.f32.mrb[0].mxu0
  %2342 = vmatprep.mubr.f32.mxu0 0.0
  %2343 = vmatmul.mubr.f32.gmra.mrb[0].mxu0 %v2261
  %v2344 = vpop.f32.mrb[0].mxu0
  %v2345 = vadd.f32 0.0, %v2344
  %v2346 = vpop.f32.mrb[0].mxu0
  %2347 = vdwg.mxu0
  %v2348 = vadd.f32 %v2234, %v2330
  %v2349 = vadd.f32 %v2235, %v2335
  %v2350 = vadd.f32 %v2236, %v2340
  %v2351 = vadd.f32 %v2237, %v2345
  %v2352 = vld [vmem:[#allocation2 + $0xc] sm:$0xff]
  %v2353 = vld [vmem:[#allocation2 + $0x14] sm:$0xff]
  %v2354 = vld [vmem:[#allocation2 + $0x1c] sm:$0xff]
  %v2355 = vld [vmem:[#allocation2 + $0x24] sm:$0x3]
  %s2356 = scalar_lea.vmem %s3, 1152
  %v2357 = vld [vmem:[%s2356] sm:$0xff]
  %v2358 = vld [vmem:[%s2356 + $0x8] sm:$0xff]
  %v2359 = vld [vmem:[%s2356 + $0x10] sm:$0xff]
  %v2360 = vld [vmem:[%s2356 + $0x18] sm:$0xff]
  %v2361 = vld [vmem:[%s2356 + $0x20] sm:$0xff]
  %v2362 = vld [vmem:[%s2356 + $0x28] sm:$0xff]
  %v2363 = vld [vmem:[%s2356 + $0x30] sm:$0xff]
  %v2364 = vld [vmem:[%s2356 + $0x38] sm:$0xff]
  %v2366 = vsel %vm290, %v2352, 0
  %v2369 = vsel %vm290, %v2353, 0
  %v2372 = vsel %vm290, %v2354, 0
  %v2375 = vsel %vm290, %v2355, 0
  %2377 = vmatprep.subr.mxu0 0.0
  %2378 = vmatpush1.msra.mxu0 %v2357
  %2379 = vmatprep.subr.mxu0 0.0
  %2380 = vmatpush1.msra.mxu0 %v2358
  %2381 = vmatprep.subr.mxu0 0.0
  %2382 = vmatpush1.msra.mxu0 %v2359
  %2383 = vmatprep.subr.mxu0 0.0
  %2384 = vmatpush1.msra.mxu0 %v2360
  %2385 = vmatprep.subr.mxu0 0.0
  %2386 = vmatpush1.msra.mxu0 %v2361
  %2387 = vmatprep.subr.mxu0 0.0
  %2388 = vmatpush1.msra.mxu0 %v2362
  %2389 = vmatprep.subr.mxu0 0.0
  %2390 = vmatpush1.msra.mxu0 %v2363
  %2391 = vmatprep.subr.mxu0 0.0
  %2392 = vmatpush1.msra.mxu0 %v2364
  %2393 = vmatprep.subr.mxu0 0.0
  %2394 = vmatpush1.msra.mxu0 0.0
  %2395 = vmatprep.subr.mxu0 0.0
  %2396 = vmatpush1.msra.mxu0 0.0
  %2397 = vmatprep.subr.mxu0 0.0
  %2398 = vmatpush1.msra.mxu0 0.0
  %2399 = vmatprep.subr.mxu0 0.0
  %2400 = vmatpush1.msra.mxu0 0.0
  %2401 = vmatprep.subr.mxu0 0.0
  %2402 = vmatpush1.msra.mxu0 0.0
  %2403 = vmatprep.subr.mxu0 0.0
  %2404 = vmatpush1.msra.mxu0 0.0
  %2405 = vmatprep.subr.mxu0 0.0
  %2406 = vmatpush1.msra.mxu0 0.0
  %2407 = vmatprep.subr.mxu0 0.0
  %2408 = vmatpush1.msra.mxu0 0.0
  %2409 = vmatprep.subr.mxu0 0.0
  %2410 = vmatpush1.msra.mxu0 0.0
  %2411 = vmatprep.subr.mxu0 0.0
  %2412 = vmatpush1.msra.mxu0 0.0
  %2413 = vmatprep.subr.mxu0 0.0
  %2414 = vmatpush1.msra.mxu0 0.0
  %2415 = vmatprep.subr.mxu0 0.0
  %2416 = vmatpush1.msra.mxu0 0.0
  %2417 = vmatprep.subr.mxu0 0.0
  %2418 = vmatpush1.msra.mxu0 0.0
  %2419 = vmatprep.subr.mxu0 0.0
  %2420 = vmatpush1.msra.mxu0 0.0
  %2421 = vmatprep.subr.mxu0 0.0
  %2422 = vmatpush1.msra.mxu0 0.0
  %2423 = vmatprep.subr.mxu0 0.0
  %2424 = vmatpush1.msra.mxu0 0.0
  %2425 = vmatprep.subr.mxu0 0.0
  %2426 = vmatpush1.msra.mxu0 0.0
  %2427 = vmatprep.subr.mxu0 0.0
  %2428 = vmatpush1.msra.mxu0 0.0
  %2429 = vmatprep.subr.mxu0 0.0
  %2430 = vmatpush1.msra.mxu0 0.0
  %2431 = vmatprep.subr.mxu0 0.0
  %2432 = vmatpush1.msra.mxu0 0.0
  %2433 = vmatprep.subr.mxu0 0.0
  %2434 = vmatpush1.msra.mxu0 0.0
  %2435 = vmatprep.subr.mxu0 0.0
  %2436 = vmatpush1.msra.mxu0 0.0
  %2437 = vmatprep.subr.mxu0 0.0
  %2438 = vmatpush1.msra.mxu0 0.0
  %2439 = vmatprep.subr.mxu0 0.0
  %2440 = vmatpush1.msra.mxu0 0.0
  %2441 = vmatprep.mubr.f32.mxu0 0.0
  %2442 = vmatmul.mubr.f32.gmra.mrb[0].mxu0 %v2366
  %v2443 = vpop.f32.mrb[0].mxu0
  %v2444 = vadd.f32 0.0, %v2443
  %v2445 = vpop.f32.mrb[0].mxu0
  %2446 = vmatprep.mubr.f32.mxu0 0.0
  %2447 = vmatmul.mubr.f32.gmra.mrb[0].mxu0 %v2369
  %v2448 = vpop.f32.mrb[0].mxu0
  %v2449 = vadd.f32 0.0, %v2448
  %v2450 = vpop.f32.mrb[0].mxu0
  %2451 = vmatprep.mubr.f32.mxu0 0.0
  %2452 = vmatmul.mubr.f32.gmra.mrb[0].mxu0 %v2372
  %v2453 = vpop.f32.mrb[0].mxu0
  %v2454 = vadd.f32 0.0, %v2453
  %v2455 = vpop.f32.mrb[0].mxu0
  %2456 = vmatprep.mubr.f32.mxu0 0.0
  %2457 = vmatmul.mubr.f32.gmra.mrb[0].mxu0 %v2375
  %v2458 = vpop.f32.mrb[0].mxu0
  %v2459 = vadd.f32 0.0, %v2458
  %v2460 = vpop.f32.mrb[0].mxu0
  %2461 = vdwg.mxu0
  %v2462 = vadd.f32 %v2348, %v2444
  %v2463 = vadd.f32 %v2349, %v2449
  %v2464 = vadd.f32 %v2350, %v2454
  %v2465 = vadd.f32 %v2351, %v2459
  %v2466 = vld [vmem:[#allocation2 + $0x38] sm:$0xff]
  %v2467 = vld [vmem:[#allocation2 + $0x40] sm:$0xff]
  %v2468 = vld [vmem:[#allocation2 + $0x48] sm:$0xff]
  %v2469 = vld [vmem:[#allocation2 + $0x50] sm:$0x3]
  %s2470 = scalar_lea.vmem %s3, 1216
  %v2471 = vld [vmem:[%s2470] sm:$0xff]
  %v2472 = vld [vmem:[%s2470 + $0x8] sm:$0xff]
  %v2473 = vld [vmem:[%s2470 + $0x10] sm:$0xff]
  %v2474 = vld [vmem:[%s2470 + $0x18] sm:$0xff]
  %v2475 = vld [vmem:[%s2470 + $0x20] sm:$0xff]
  %v2476 = vld [vmem:[%s2470 + $0x28] sm:$0xff]
  %v2477 = vld [vmem:[%s2470 + $0x30] sm:$0xff]
  %v2478 = vld [vmem:[%s2470 + $0x38] sm:$0xff]
  %v2480 = vsel %vm290, %v2466, 0
  %v2483 = vsel %vm290, %v2467, 0
  %v2486 = vsel %vm290, %v2468, 0
  %v2489 = vsel %vm290, %v2469, 0
  %2491 = vmatprep.subr.mxu0 0.0
  %2492 = vmatpush1.msra.mxu0 %v2471
  %2493 = vmatprep.subr.mxu0 0.0
  %2494 = vmatpush1.msra.mxu0 %v2472
  %2495 = vmatprep.subr.mxu0 0.0
  %2496 = vmatpush1.msra.mxu0 %v2473
  %2497 = vmatprep.subr.mxu0 0.0
  %2498 = vmatpush1.msra.mxu0 %v2474
  %2499 = vmatprep.subr.mxu0 0.0
  %2500 = vmatpush1.msra.mxu0 %v2475
  %2501 = vmatprep.subr.mxu0 0.0
  %2502 = vmatpush1.msra.mxu0 %v2476
  %2503 = vmatprep.subr.mxu0 0.0
  %2504 = vmatpush1.msra.mxu0 %v2477
  %2505 = vmatprep.subr.mxu0 0.0
  %2506 = vmatpush1.msra.mxu0 %v2478
  %2507 = vmatprep.subr.mxu0 0.0
  %2508 = vmatpush1.msra.mxu0 0.0
  %2509 = vmatprep.subr.mxu0 0.0
  %2510 = vmatpush1.msra.mxu0 0.0
  %2511 = vmatprep.subr.mxu0 0.0
  %2512 = vmatpush1.msra.mxu0 0.0
  %2513 = vmatprep.subr.mxu0 0.0
  %2514 = vmatpush1.msra.mxu0 0.0
  %2515 = vmatprep.subr.mxu0 0.0
  %2516 = vmatpush1.msra.mxu0 0.0
  %2517 = vmatprep.subr.mxu0 0.0
  %2518 = vmatpush1.msra.mxu0 0.0
  %2519 = vmatprep.subr.mxu0 0.0
  %2520 = vmatpush1.msra.mxu0 0.0
  %2521 = vmatprep.subr.mxu0 0.0
  %2522 = vmatpush1.msra.mxu0 0.0
  %2523 = vmatprep.subr.mxu0 0.0
  %2524 = vmatpush1.msra.mxu0 0.0
  %2525 = vmatprep.subr.mxu0 0.0
  %2526 = vmatpush1.msra.mxu0 0.0
  %2527 = vmatprep.subr.mxu0 0.0
  %2528 = vmatpush1.msra.mxu0 0.0
  %2529 = vmatprep.subr.mxu0 0.0
  %2530 = vmatpush1.msra.mxu0 0.0
  %2531 = vmatprep.subr.mxu0 0.0
  %2532 = vmatpush1.msra.mxu0 0.0
  %2533 = vmatprep.subr.mxu0 0.0
  %2534 = vmatpush1.msra.mxu0 0.0
  %2535 = vmatprep.subr.mxu0 0.0
  %2536 = vmatpush1.msra.mxu0 0.0
  %2537 = vmatprep.subr.mxu0 0.0
  %2538 = vmatpush1.msra.mxu0 0.0
  %2539 = vmatprep.subr.mxu0 0.0
  %2540 = vmatpush1.msra.mxu0 0.0
  %2541 = vmatprep.subr.mxu0 0.0
  %2542 = vmatpush1.msra.mxu0 0.0
  %2543 = vmatprep.subr.mxu0 0.0
  %2544 = vmatpush1.msra.mxu0 0.0
  %2545 = vmatprep.subr.mxu0 0.0
  %2546 = vmatpush1.msra.mxu0 0.0
  %2547 = vmatprep.subr.mxu0 0.0
  %2548 = vmatpush1.msra.mxu0 0.0
  %2549 = vmatprep.subr.mxu0 0.0
  %2550 = vmatpush1.msra.mxu0 0.0
  %2551 = vmatprep.subr.mxu0 0.0
  %2552 = vmatpush1.msra.mxu0 0.0
  %2553 = vmatprep.subr.mxu0 0.0
  %2554 = vmatpush1.msra.mxu0 0.0
  %2555 = vmatprep.mubr.f32.mxu0 0.0
  %2556 = vmatmul.mubr.f32.gmra.mrb[0].mxu0 %v2480
  %v2557 = vpop.f32.mrb[0].mxu0
  %v2558 = vadd.f32 0.0, %v2557
  %v2559 = vpop.f32.mrb[0].mxu0
  %2560 = vmatprep.mubr.f32.mxu0 0.0
  %2561 = vmatmul.mubr.f32.gmra.mrb[0].mxu0 %v2483
  %v2562 = vpop.f32.mrb[0].mxu0
  %v2563 = vadd.f32 0.0, %v2562
  %v2564 = vpop.f32.mrb[0].mxu0
  %2565 = vmatprep.mubr.f32.mxu0 0.0
  %2566 = vmatmul.mubr.f32.gmra.mrb[0].mxu0 %v2486
  %v2567 = vpop.f32.mrb[0].mxu0
  %v2568 = vadd.f32 0.0, %v2567
  %v2569 = vpop.f32.mrb[0].mxu0
  %2570 = vmatprep.mubr.f32.mxu0 0.0
  %2571 = vmatmul.mubr.f32.gmra.mrb[0].mxu0 %v2489
  %v2572 = vpop.f32.mrb[0].mxu0
  %v2573 = vadd.f32 0.0, %v2572
  %v2574 = vpop.f32.mrb[0].mxu0
  %2575 = vdwg.mxu0
  %v2576 = vadd.f32 %v2462, %v2558
  %v2577 = vadd.f32 %v2463, %v2563
  %v2578 = vadd.f32 %v2464, %v2568
  %v2579 = vadd.f32 %v2465, %v2573
  %v2580 = vld [vmem:[#allocation2 + $0x64] sm:$0xff]
  %v2581 = vld [vmem:[#allocation2 + $0x6c] sm:$0xff]
  %v2582 = vld [vmem:[#allocation2 + $0x74] sm:$0xff]
  %v2583 = vld [vmem:[#allocation2 + $0x7c] sm:$0x3]
  %s2584 = scalar_lea.vmem %s3, 1280
  %v2585 = vld [vmem:[%s2584] sm:$0xff]
  %v2586 = vld [vmem:[%s2584 + $0x8] sm:$0xff]
  %v2587 = vld [vmem:[%s2584 + $0x10] sm:$0xff]
  %v2588 = vld [vmem:[%s2584 + $0x18] sm:$0xff]
  %v2589 = vld [vmem:[%s2584 + $0x20] sm:$0xff]
  %v2590 = vld [vmem:[%s2584 + $0x28] sm:$0xff]
  %v2591 = vld [vmem:[%s2584 + $0x30] sm:$0xff]
  %v2592 = vld [vmem:[%s2584 + $0x38] sm:$0xff]
  %v2594 = vsel %vm290, %v2580, 0
  %v2597 = vsel %vm290, %v2581, 0
  %v2600 = vsel %vm290, %v2582, 0
  %v2603 = vsel %vm290, %v2583, 0
  %2605 = vmatprep.subr.mxu0 0.0
  %2606 = vmatpush1.msra.mxu0 %v2585
  %2607 = vmatprep.subr.mxu0 0.0
  %2608 = vmatpush1.msra.mxu0 %v2586
  %2609 = vmatprep.subr.mxu0 0.0
  %2610 = vmatpush1.msra.mxu0 %v2587
  %2611 = vmatprep.subr.mxu0 0.0
  %2612 = vmatpush1.msra.mxu0 %v2588
  %2613 = vmatprep.subr.mxu0 0.0
  %2614 = vmatpush1.msra.mxu0 %v2589
  %2615 = vmatprep.subr.mxu0 0.0
  %2616 = vmatpush1.msra.mxu0 %v2590
  %2617 = vmatprep.subr.mxu0 0.0
  %2618 = vmatpush1.msra.mxu0 %v2591
  %2619 = vmatprep.subr.mxu0 0.0
  %2620 = vmatpush1.msra.mxu0 %v2592
  %2621 = vmatprep.subr.mxu0 0.0
  %2622 = vmatpush1.msra.mxu0 0.0
  %2623 = vmatprep.subr.mxu0 0.0
  %2624 = vmatpush1.msra.mxu0 0.0
  %2625 = vmatprep.subr.mxu0 0.0
  %2626 = vmatpush1.msra.mxu0 0.0
  %2627 = vmatprep.subr.mxu0 0.0
  %2628 = vmatpush1.msra.mxu0 0.0
  %2629 = vmatprep.subr.mxu0 0.0
  %2630 = vmatpush1.msra.mxu0 0.0
  %2631 = vmatprep.subr.mxu0 0.0
  %2632 = vmatpush1.msra.mxu0 0.0
  %2633 = vmatprep.subr.mxu0 0.0
  %2634 = vmatpush1.msra.mxu0 0.0
  %2635 = vmatprep.subr.mxu0 0.0
  %2636 = vmatpush1.msra.mxu0 0.0
  %2637 = vmatprep.subr.mxu0 0.0
  %2638 = vmatpush1.msra.mxu0 0.0
  %2639 = vmatprep.subr.mxu0 0.0
  %2640 = vmatpush1.msra.mxu0 0.0
  %2641 = vmatprep.subr.mxu0 0.0
  %2642 = vmatpush1.msra.mxu0 0.0
  %2643 = vmatprep.subr.mxu0 0.0
  %2644 = vmatpush1.msra.mxu0 0.0
  %2645 = vmatprep.subr.mxu0 0.0
  %2646 = vmatpush1.msra.mxu0 0.0
  %2647 = vmatprep.subr.mxu0 0.0
  %2648 = vmatpush1.msra.mxu0 0.0
  %2649 = vmatprep.subr.mxu0 0.0
  %2650 = vmatpush1.msra.mxu0 0.0
  %2651 = vmatprep.subr.mxu0 0.0
  %2652 = vmatpush1.msra.mxu0 0.0
  %2653 = vmatprep.subr.mxu0 0.0
  %2654 = vmatpush1.msra.mxu0 0.0
  %2655 = vmatprep.subr.mxu0 0.0
  %2656 = vmatpush1.msra.mxu0 0.0
  %2657 = vmatprep.subr.mxu0 0.0
  %2658 = vmatpush1.msra.mxu0 0.0
  %2659 = vmatprep.subr.mxu0 0.0
  %2660 = vmatpush1.msra.mxu0 0.0
  %2661 = vmatprep.subr.mxu0 0.0
  %2662 = vmatpush1.msra.mxu0 0.0
  %2663 = vmatprep.subr.mxu0 0.0
  %2664 = vmatpush1.msra.mxu0 0.0
  %2665 = vmatprep.subr.mxu0 0.0
  %2666 = vmatpush1.msra.mxu0 0.0
  %2667 = vmatprep.subr.mxu0 0.0
  %2668 = vmatpush1.msra.mxu0 0.0
  %2669 = vmatprep.mubr.f32.mxu0 0.0
  %2670 = vmatmul.mubr.f32.gmra.mrb[0].mxu0 %v2594
  %v2671 = vpop.f32.mrb[0].mxu0
  %v2672 = vadd.f32 0.0, %v2671
  %v2673 = vpop.f32.mrb[0].mxu0
  %2674 = vmatprep.mubr.f32.mxu0 0.0
  %2675 = vmatmul.mubr.f32.gmra.mrb[0].mxu0 %v2597
  %v2676 = vpop.f32.mrb[0].mxu0
  %v2677 = vadd.f32 0.0, %v2676
  %v2678 = vpop.f32.mrb[0].mxu0
  %2679 = vmatprep.mubr.f32.mxu0 0.0
  %2680 = vmatmul.mubr.f32.gmra.mrb[0].mxu0 %v2600
  %v2681 = vpop.f32.mrb[0].mxu0
  %v2682 = vadd.f32 0.0, %v2681
  %v2683 = vpop.f32.mrb[0].mxu0
  %2684 = vmatprep.mubr.f32.mxu0 0.0
  %2685 = vmatmul.mubr.f32.gmra.mrb[0].mxu0 %v2603
  %v2686 = vpop.f32.mrb[0].mxu0
  %v2687 = vadd.f32 0.0, %v2686
  %v2688 = vpop.f32.mrb[0].mxu0
  %2689 = vdwg.mxu0
  %v2690 = vadd.f32 %v2576, %v2672
  %v2691 = vadd.f32 %v2577, %v2677
  %v2692 = vadd.f32 %v2578, %v2682
  %v2693 = vadd.f32 %v2579, %v2687
  %v2694 = vld [vmem:[#allocation2 + $0xe] sm:$0xff]
  %v2695 = vld [vmem:[#allocation2 + $0x16] sm:$0xff]
  %v2696 = vld [vmem:[#allocation2 + $0x1e] sm:$0xff]
  %v2697 = vld [vmem:[#allocation2 + $0x26] sm:$0x3]
  %s2698 = scalar_lea.vmem %s3, 1344
  %v2699 = vld [vmem:[%s2698] sm:$0xff]
  %v2700 = vld [vmem:[%s2698 + $0x8] sm:$0xff]
  %v2701 = vld [vmem:[%s2698 + $0x10] sm:$0xff]
  %v2702 = vld [vmem:[%s2698 + $0x18] sm:$0xff]
  %v2703 = vld [vmem:[%s2698 + $0x20] sm:$0xff]
  %v2704 = vld [vmem:[%s2698 + $0x28] sm:$0xff]
  %v2705 = vld [vmem:[%s2698 + $0x30] sm:$0xff]
  %v2706 = vld [vmem:[%s2698 + $0x38] sm:$0xff]
  %v2708 = vsel %vm290, %v2694, 0
  %v2711 = vsel %vm290, %v2695, 0
  %v2714 = vsel %vm290, %v2696, 0
  %v2717 = vsel %vm290, %v2697, 0
  %2719 = vmatprep.subr.mxu0 0.0
  %2720 = vmatpush1.msra.mxu0 %v2699
  %2721 = vmatprep.subr.mxu0 0.0
  %2722 = vmatpush1.msra.mxu0 %v2700
  %2723 = vmatprep.subr.mxu0 0.0
  %2724 = vmatpush1.msra.mxu0 %v2701
  %2725 = vmatprep.subr.mxu0 0.0
  %2726 = vmatpush1.msra.mxu0 %v2702
  %2727 = vmatprep.subr.mxu0 0.0
  %2728 = vmatpush1.msra.mxu0 %v2703
  %2729 = vmatprep.subr.mxu0 0.0
  %2730 = vmatpush1.msra.mxu0 %v2704
  %2731 = vmatprep.subr.mxu0 0.0
  %2732 = vmatpush1.msra.mxu0 %v2705
  %2733 = vmatprep.subr.mxu0 0.0
  %2734 = vmatpush1.msra.mxu0 %v2706
  %2735 = vmatprep.subr.mxu0 0.0
  %2736 = vmatpush1.msra.mxu0 0.0
  %2737 = vmatprep.subr.mxu0 0.0
  %2738 = vmatpush1.msra.mxu0 0.0
  %2739 = vmatprep.subr.mxu0 0.0
  %2740 = vmatpush1.msra.mxu0 0.0
  %2741 = vmatprep.subr.mxu0 0.0
  %2742 = vmatpush1.msra.mxu0 0.0
  %2743 = vmatprep.subr.mxu0 0.0
  %2744 = vmatpush1.msra.mxu0 0.0
  %2745 = vmatprep.subr.mxu0 0.0
  %2746 = vmatpush1.msra.mxu0 0.0
  %2747 = vmatprep.subr.mxu0 0.0
  %2748 = vmatpush1.msra.mxu0 0.0
  %2749 = vmatprep.subr.mxu0 0.0
  %2750 = vmatpush1.msra.mxu0 0.0
  %2751 = vmatprep.subr.mxu0 0.0
  %2752 = vmatpush1.msra.mxu0 0.0
  %2753 = vmatprep.subr.mxu0 0.0
  %2754 = vmatpush1.msra.mxu0 0.0
  %2755 = vmatprep.subr.mxu0 0.0
  %2756 = vmatpush1.msra.mxu0 0.0
  %2757 = vmatprep.subr.mxu0 0.0
  %2758 = vmatpush1.msra.mxu0 0.0
  %2759 = vmatprep.subr.mxu0 0.0
  %2760 = vmatpush1.msra.mxu0 0.0
  %2761 = vmatprep.subr.mxu0 0.0
  %2762 = vmatpush1.msra.mxu0 0.0
  %2763 = vmatprep.subr.mxu0 0.0
  %2764 = vmatpush1.msra.mxu0 0.0
  %2765 = vmatprep.subr.mxu0 0.0
  %2766 = vmatpush1.msra.mxu0 0.0
  %2767 = vmatprep.subr.mxu0 0.0
  %2768 = vmatpush1.msra.mxu0 0.0
  %2769 = vmatprep.subr.mxu0 0.0
  %2770 = vmatpush1.msra.mxu0 0.0
  %2771 = vmatprep.subr.mxu0 0.0
  %2772 = vmatpush1.msra.mxu0 0.0
  %2773 = vmatprep.subr.mxu0 0.0
  %2774 = vmatpush1.msra.mxu0 0.0
  %2775 = vmatprep.subr.mxu0 0.0
  %2776 = vmatpush1.msra.mxu0 0.0
  %2777 = vmatprep.subr.mxu0 0.0
  %2778 = vmatpush1.msra.mxu0 0.0
  %2779 = vmatprep.subr.mxu0 0.0
  %2780 = vmatpush1.msra.mxu0 0.0
  %2781 = vmatprep.subr.mxu0 0.0
  %2782 = vmatpush1.msra.mxu0 0.0
  %2783 = vmatprep.mubr.f32.mxu0 0.0
  %2784 = vmatmul.mubr.f32.gmra.mrb[0].mxu0 %v2708
  %v2785 = vpop.f32.mrb[0].mxu0
  %v2786 = vadd.f32 0.0, %v2785
  %v2787 = vpop.f32.mrb[0].mxu0
  %2788 = vmatprep.mubr.f32.mxu0 0.0
  %2789 = vmatmul.mubr.f32.gmra.mrb[0].mxu0 %v2711
  %v2790 = vpop.f32.mrb[0].mxu0
  %v2791 = vadd.f32 0.0, %v2790
  %v2792 = vpop.f32.mrb[0].mxu0
  %2793 = vmatprep.mubr.f32.mxu0 0.0
  %2794 = vmatmul.mubr.f32.gmra.mrb[0].mxu0 %v2714
  %v2795 = vpop.f32.mrb[0].mxu0
  %v2796 = vadd.f32 0.0, %v2795
  %v2797 = vpop.f32.mrb[0].mxu0
  %2798 = vmatprep.mubr.f32.mxu0 0.0
  %2799 = vmatmul.mubr.f32.gmra.mrb[0].mxu0 %v2717
  %v2800 = vpop.f32.mrb[0].mxu0
  %v2801 = vadd.f32 0.0, %v2800
  %v2802 = vpop.f32.mrb[0].mxu0
  %2803 = vdwg.mxu0
  %v2804 = vadd.f32 %v2690, %v2786
  %v2805 = vadd.f32 %v2691, %v2791
  %v2806 = vadd.f32 %v2692, %v2796
  %v2807 = vadd.f32 %v2693, %v2801
  %v2808 = vld [vmem:[#allocation2 + $0x3a] sm:$0xff]
  %v2809 = vld [vmem:[#allocation2 + $0x42] sm:$0xff]
  %v2810 = vld [vmem:[#allocation2 + $0x4a] sm:$0xff]
  %v2811 = vld [vmem:[#allocation2 + $0x52] sm:$0x3]
  %s2812 = scalar_lea.vmem %s3, 1408
  %v2813 = vld [vmem:[%s2812] sm:$0xff]
  %v2814 = vld [vmem:[%s2812 + $0x8] sm:$0xff]
  %v2815 = vld [vmem:[%s2812 + $0x10] sm:$0xff]
  %v2816 = vld [vmem:[%s2812 + $0x18] sm:$0xff]
  %v2817 = vld [vmem:[%s2812 + $0x20] sm:$0xff]
  %v2818 = vld [vmem:[%s2812 + $0x28] sm:$0xff]
  %v2819 = vld [vmem:[%s2812 + $0x30] sm:$0xff]
  %v2820 = vld [vmem:[%s2812 + $0x38] sm:$0xff]
  %v2822 = vsel %vm290, %v2808, 0
  %v2825 = vsel %vm290, %v2809, 0
  %v2828 = vsel %vm290, %v2810, 0
  %v2831 = vsel %vm290, %v2811, 0
  %2833 = vmatprep.subr.mxu0 0.0
  %2834 = vmatpush1.msra.mxu0 %v2813
  %2835 = vmatprep.subr.mxu0 0.0
  %2836 = vmatpush1.msra.mxu0 %v2814
  %2837 = vmatprep.subr.mxu0 0.0
  %2838 = vmatpush1.msra.mxu0 %v2815
  %2839 = vmatprep.subr.mxu0 0.0
  %2840 = vmatpush1.msra.mxu0 %v2816
  %2841 = vmatprep.subr.mxu0 0.0
  %2842 = vmatpush1.msra.mxu0 %v2817
  %2843 = vmatprep.subr.mxu0 0.0
  %2844 = vmatpush1.msra.mxu0 %v2818
  %2845 = vmatprep.subr.mxu0 0.0
  %2846 = vmatpush1.msra.mxu0 %v2819
  %2847 = vmatprep.subr.mxu0 0.0
  %2848 = vmatpush1.msra.mxu0 %v2820
  %2849 = vmatprep.subr.mxu0 0.0
  %2850 = vmatpush1.msra.mxu0 0.0
  %2851 = vmatprep.subr.mxu0 0.0
  %2852 = vmatpush1.msra.mxu0 0.0
  %2853 = vmatprep.subr.mxu0 0.0
  %2854 = vmatpush1.msra.mxu0 0.0
  %2855 = vmatprep.subr.mxu0 0.0
  %2856 = vmatpush1.msra.mxu0 0.0
  %2857 = vmatprep.subr.mxu0 0.0
  %2858 = vmatpush1.msra.mxu0 0.0
  %2859 = vmatprep.subr.mxu0 0.0
  %2860 = vmatpush1.msra.mxu0 0.0
  %2861 = vmatprep.subr.mxu0 0.0
  %2862 = vmatpush1.msra.mxu0 0.0
  %2863 = vmatprep.subr.mxu0 0.0
  %2864 = vmatpush1.msra.mxu0 0.0
  %2865 = vmatprep.subr.mxu0 0.0
  %2866 = vmatpush1.msra.mxu0 0.0
  %2867 = vmatprep.subr.mxu0 0.0
  %2868 = vmatpush1.msra.mxu0 0.0
  %2869 = vmatprep.subr.mxu0 0.0
  %2870 = vmatpush1.msra.mxu0 0.0
  %2871 = vmatprep.subr.mxu0 0.0
  %2872 = vmatpush1.msra.mxu0 0.0
  %2873 = vmatprep.subr.mxu0 0.0
  %2874 = vmatpush1.msra.mxu0 0.0
  %2875 = vmatprep.subr.mxu0 0.0
  %2876 = vmatpush1.msra.mxu0 0.0
  %2877 = vmatprep.subr.mxu0 0.0
  %2878 = vmatpush1.msra.mxu0 0.0
  %2879 = vmatprep.subr.mxu0 0.0
  %2880 = vmatpush1.msra.mxu0 0.0
  %2881 = vmatprep.subr.mxu0 0.0
  %2882 = vmatpush1.msra.mxu0 0.0
  %2883 = vmatprep.subr.mxu0 0.0
  %2884 = vmatpush1.msra.mxu0 0.0
  %2885 = vmatprep.subr.mxu0 0.0
  %2886 = vmatpush1.msra.mxu0 0.0
  %2887 = vmatprep.subr.mxu0 0.0
  %2888 = vmatpush1.msra.mxu0 0.0
  %2889 = vmatprep.subr.mxu0 0.0
  %2890 = vmatpush1.msra.mxu0 0.0
  %2891 = vmatprep.subr.mxu0 0.0
  %2892 = vmatpush1.msra.mxu0 0.0
  %2893 = vmatprep.subr.mxu0 0.0
  %2894 = vmatpush1.msra.mxu0 0.0
  %2895 = vmatprep.subr.mxu0 0.0
  %2896 = vmatpush1.msra.mxu0 0.0
  %2897 = vmatprep.mubr.f32.mxu0 0.0
  %2898 = vmatmul.mubr.f32.gmra.mrb[0].mxu0 %v2822
  %v2899 = vpop.f32.mrb[0].mxu0
  %v2900 = vadd.f32 0.0, %v2899
  %v2901 = vpop.f32.mrb[0].mxu0
  %2902 = vmatprep.mubr.f32.mxu0 0.0
  %2903 = vmatmul.mubr.f32.gmra.mrb[0].mxu0 %v2825
  %v2904 = vpop.f32.mrb[0].mxu0
  %v2905 = vadd.f32 0.0, %v2904
  %v2906 = vpop.f32.mrb[0].mxu0
  %2907 = vmatprep.mubr.f32.mxu0 0.0
  %2908 = vmatmul.mubr.f32.gmra.mrb[0].mxu0 %v2828
  %v2909 = vpop.f32.mrb[0].mxu0
  %v2910 = vadd.f32 0.0, %v2909
  %v2911 = vpop.f32.mrb[0].mxu0
  %2912 = vmatprep.mubr.f32.mxu0 0.0
  %2913 = vmatmul.mubr.f32.gmra.mrb[0].mxu0 %v2831
  %v2914 = vpop.f32.mrb[0].mxu0
  %v2915 = vadd.f32 0.0, %v2914
  %v2916 = vpop.f32.mrb[0].mxu0
  %2917 = vdwg.mxu0
  %v2918 = vadd.f32 %v2804, %v2900
  %v2919 = vadd.f32 %v2805, %v2905
  %v2920 = vadd.f32 %v2806, %v2910
  %v2921 = vadd.f32 %v2807, %v2915
  %v2922 = vld [vmem:[#allocation2 + $0x66] sm:$0xff]
  %v2923 = vld [vmem:[#allocation2 + $0x6e] sm:$0xff]
  %v2924 = vld [vmem:[#allocation2 + $0x76] sm:$0xff]
  %v2925 = vld [vmem:[#allocation2 + $0x7e] sm:$0x3]
  %s2926 = scalar_lea.vmem %s3, 1472
  %v2927 = vld [vmem:[%s2926] sm:$0xff]
  %v2928 = vld [vmem:[%s2926 + $0x8] sm:$0xff]
  %v2929 = vld [vmem:[%s2926 + $0x10] sm:$0xff]
  %v2930 = vld [vmem:[%s2926 + $0x18] sm:$0xff]
  %v2931 = vld [vmem:[%s2926 + $0x20] sm:$0xff]
  %v2932 = vld [vmem:[%s2926 + $0x28] sm:$0xff]
  %v2933 = vld [vmem:[%s2926 + $0x30] sm:$0xff]
  %v2934 = vld [vmem:[%s2926 + $0x38] sm:$0xff]
  %v2936 = vsel %vm290, %v2922, 0
  %v2939 = vsel %vm290, %v2923, 0
  %v2942 = vsel %vm290, %v2924, 0
  %v2945 = vsel %vm290, %v2925, 0
  %2947 = vmatprep.subr.mxu0 0.0
  %2948 = vmatpush1.msra.mxu0 %v2927
  %2949 = vmatprep.subr.mxu0 0.0
  %2950 = vmatpush1.msra.mxu0 %v2928
  %2951 = vmatprep.subr.mxu0 0.0
  %2952 = vmatpush1.msra.mxu0 %v2929
  %2953 = vmatprep.subr.mxu0 0.0
  %2954 = vmatpush1.msra.mxu0 %v2930
  %2955 = vmatprep.subr.mxu0 0.0
  %2956 = vmatpush1.msra.mxu0 %v2931
  %2957 = vmatprep.subr.mxu0 0.0
  %2958 = vmatpush1.msra.mxu0 %v2932
  %2959 = vmatprep.subr.mxu0 0.0
  %2960 = vmatpush1.msra.mxu0 %v2933
  %2961 = vmatprep.subr.mxu0 0.0
  %2962 = vmatpush1.msra.mxu0 %v2934
  %2963 = vmatprep.subr.mxu0 0.0
  %2964 = vmatpush1.msra.mxu0 0.0
  %2965 = vmatprep.subr.mxu0 0.0
  %2966 = vmatpush1.msra.mxu0 0.0
  %2967 = vmatprep.subr.mxu0 0.0
  %2968 = vmatpush1.msra.mxu0 0.0
  %2969 = vmatprep.subr.mxu0 0.0
  %2970 = vmatpush1.msra.mxu0 0.0
  %2971 = vmatprep.subr.mxu0 0.0
  %2972 = vmatpush1.msra.mxu0 0.0
  %2973 = vmatprep.subr.mxu0 0.0
  %2974 = vmatpush1.msra.mxu0 0.0
  %2975 = vmatprep.subr.mxu0 0.0
  %2976 = vmatpush1.msra.mxu0 0.0
  %2977 = vmatprep.subr.mxu0 0.0
  %2978 = vmatpush1.msra.mxu0 0.0
  %2979 = vmatprep.subr.mxu0 0.0
  %2980 = vmatpush1.msra.mxu0 0.0
  %2981 = vmatprep.subr.mxu0 0.0
  %2982 = vmatpush1.msra.mxu0 0.0
  %2983 = vmatprep.subr.mxu0 0.0
  %2984 = vmatpush1.msra.mxu0 0.0
  %2985 = vmatprep.subr.mxu0 0.0
  %2986 = vmatpush1.msra.mxu0 0.0
  %2987 = vmatprep.subr.mxu0 0.0
  %2988 = vmatpush1.msra.mxu0 0.0
  %2989 = vmatprep.subr.mxu0 0.0
  %2990 = vmatpush1.msra.mxu0 0.0
  %2991 = vmatprep.subr.mxu0 0.0
  %2992 = vmatpush1.msra.mxu0 0.0
  %2993 = vmatprep.subr.mxu0 0.0
  %2994 = vmatpush1.msra.mxu0 0.0
  %2995 = vmatprep.subr.mxu0 0.0
  %2996 = vmatpush1.msra.mxu0 0.0
  %2997 = vmatprep.subr.mxu0 0.0
  %2998 = vmatpush1.msra.mxu0 0.0
  %2999 = vmatprep.subr.mxu0 0.0
  %3000 = vmatpush1.msra.mxu0 0.0
  %3001 = vmatprep.subr.mxu0 0.0
  %3002 = vmatpush1.msra.mxu0 0.0
  %3003 = vmatprep.subr.mxu0 0.0
  %3004 = vmatpush1.msra.mxu0 0.0
  %3005 = vmatprep.subr.mxu0 0.0
  %3006 = vmatpush1.msra.mxu0 0.0
  %3007 = vmatprep.subr.mxu0 0.0
  %3008 = vmatpush1.msra.mxu0 0.0
  %3009 = vmatprep.subr.mxu0 0.0
  %3010 = vmatpush1.msra.mxu0 0.0
  %3011 = vmatprep.mubr.f32.mxu0 0.0
  %3012 = vmatmul.mubr.f32.gmra.mrb[0].mxu0 %v2936
  %v3013 = vpop.f32.mrb[0].mxu0
  %v3014 = vadd.f32 0.0, %v3013
  %v3015 = vpop.f32.mrb[0].mxu0
  %3016 = vmatprep.mubr.f32.mxu0 0.0
  %3017 = vmatmul.mubr.f32.gmra.mrb[0].mxu0 %v2939
  %v3018 = vpop.f32.mrb[0].mxu0
  %v3019 = vadd.f32 0.0, %v3018
  %v3020 = vpop.f32.mrb[0].mxu0
  %3021 = vmatprep.mubr.f32.mxu0 0.0
  %3022 = vmatmul.mubr.f32.gmra.mrb[0].mxu0 %v2942
  %v3023 = vpop.f32.mrb[0].mxu0
  %v3024 = vadd.f32 0.0, %v3023
  %v3025 = vpop.f32.mrb[0].mxu0
  %3026 = vmatprep.mubr.f32.mxu0 0.0
  %3027 = vmatmul.mubr.f32.gmra.mrb[0].mxu0 %v2945
  %v3028 = vpop.f32.mrb[0].mxu0
  %v3029 = vadd.f32 0.0, %v3028
  %v3030 = vpop.f32.mrb[0].mxu0
  %3031 = vdwg.mxu0
  %v3032 = vadd.f32 %v2918, %v3014
  %v3033 = vadd.f32 %v2919, %v3019
  %v3034 = vadd.f32 %v2920, %v3024
  %v3035 = vadd.f32 %v2921, %v3029
  %v3036 = vld [vmem:[#allocation2 + $0x10] sm:$0xff]
  %v3037 = vld [vmem:[#allocation2 + $0x18] sm:$0xff]
  %v3038 = vld [vmem:[#allocation2 + $0x20] sm:$0xff]
  %v3039 = vld [vmem:[#allocation2 + $0x28] sm:$0x3]
  %s3040 = scalar_lea.vmem %s3, 1536
  %v3041 = vld [vmem:[%s3040] sm:$0xff]
  %v3042 = vld [vmem:[%s3040 + $0x8] sm:$0xff]
  %v3043 = vld [vmem:[%s3040 + $0x10] sm:$0xff]
  %v3044 = vld [vmem:[%s3040 + $0x18] sm:$0xff]
  %v3045 = vld [vmem:[%s3040 + $0x20] sm:$0xff]
  %v3046 = vld [vmem:[%s3040 + $0x28] sm:$0xff]
  %v3047 = vld [vmem:[%s3040 + $0x30] sm:$0xff]
  %v3048 = vld [vmem:[%s3040 + $0x38] sm:$0xff]
  %v3050 = vsel %vm290, %v3036, 0
  %v3053 = vsel %vm290, %v3037, 0
  %v3056 = vsel %vm290, %v3038, 0
  %v3059 = vsel %vm290, %v3039, 0
  %3061 = vmatprep.subr.mxu0 0.0
  %3062 = vmatpush1.msra.mxu0 %v3041
  %3063 = vmatprep.subr.mxu0 0.0
  %3064 = vmatpush1.msra.mxu0 %v3042
  %3065 = vmatprep.subr.mxu0 0.0
  %3066 = vmatpush1.msra.mxu0 %v3043
  %3067 = vmatprep.subr.mxu0 0.0
  %3068 = vmatpush1.msra.mxu0 %v3044
  %3069 = vmatprep.subr.mxu0 0.0
  %3070 = vmatpush1.msra.mxu0 %v3045
  %3071 = vmatprep.subr.mxu0 0.0
  %3072 = vmatpush1.msra.mxu0 %v3046
  %3073 = vmatprep.subr.mxu0 0.0
  %3074 = vmatpush1.msra.mxu0 %v3047
  %3075 = vmatprep.subr.mxu0 0.0
  %3076 = vmatpush1.msra.mxu0 %v3048
  %3077 = vmatprep.subr.mxu0 0.0
  %3078 = vmatpush1.msra.mxu0 0.0
  %3079 = vmatprep.subr.mxu0 0.0
  %3080 = vmatpush1.msra.mxu0 0.0
  %3081 = vmatprep.subr.mxu0 0.0
  %3082 = vmatpush1.msra.mxu0 0.0
  %3083 = vmatprep.subr.mxu0 0.0
  %3084 = vmatpush1.msra.mxu0 0.0
  %3085 = vmatprep.subr.mxu0 0.0
  %3086 = vmatpush1.msra.mxu0 0.0
  %3087 = vmatprep.subr.mxu0 0.0
  %3088 = vmatpush1.msra.mxu0 0.0
  %3089 = vmatprep.subr.mxu0 0.0
  %3090 = vmatpush1.msra.mxu0 0.0
  %3091 = vmatprep.subr.mxu0 0.0
  %3092 = vmatpush1.msra.mxu0 0.0
  %3093 = vmatprep.subr.mxu0 0.0
  %3094 = vmatpush1.msra.mxu0 0.0
  %3095 = vmatprep.subr.mxu0 0.0
  %3096 = vmatpush1.msra.mxu0 0.0
  %3097 = vmatprep.subr.mxu0 0.0
  %3098 = vmatpush1.msra.mxu0 0.0
  %3099 = vmatprep.subr.mxu0 0.0
  %3100 = vmatpush1.msra.mxu0 0.0
  %3101 = vmatprep.subr.mxu0 0.0
  %3102 = vmatpush1.msra.mxu0 0.0
  %3103 = vmatprep.subr.mxu0 0.0
  %3104 = vmatpush1.msra.mxu0 0.0
  %3105 = vmatprep.subr.mxu0 0.0
  %3106 = vmatpush1.msra.mxu0 0.0
  %3107 = vmatprep.subr.mxu0 0.0
  %3108 = vmatpush1.msra.mxu0 0.0
  %3109 = vmatprep.subr.mxu0 0.0
  %3110 = vmatpush1.msra.mxu0 0.0
  %3111 = vmatprep.subr.mxu0 0.0
  %3112 = vmatpush1.msra.mxu0 0.0
  %3113 = vmatprep.subr.mxu0 0.0
  %3114 = vmatpush1.msra.mxu0 0.0
  %3115 = vmatprep.subr.mxu0 0.0
  %3116 = vmatpush1.msra.mxu0 0.0
  %3117 = vmatprep.subr.mxu0 0.0
  %3118 = vmatpush1.msra.mxu0 0.0
  %3119 = vmatprep.subr.mxu0 0.0
  %3120 = vmatpush1.msra.mxu0 0.0
  %3121 = vmatprep.subr.mxu0 0.0
  %3122 = vmatpush1.msra.mxu0 0.0
  %3123 = vmatprep.subr.mxu0 0.0
  %3124 = vmatpush1.msra.mxu0 0.0
  %3125 = vmatprep.mubr.f32.mxu0 0.0
  %3126 = vmatmul.mubr.f32.gmra.mrb[0].mxu0 %v3050
  %v3127 = vpop.f32.mrb[0].mxu0
  %v3128 = vadd.f32 0.0, %v3127
  %v3129 = vpop.f32.mrb[0].mxu0
  %3130 = vmatprep.mubr.f32.mxu0 0.0
  %3131 = vmatmul.mubr.f32.gmra.mrb[0].mxu0 %v3053
  %v3132 = vpop.f32.mrb[0].mxu0
  %v3133 = vadd.f32 0.0, %v3132
  %v3134 = vpop.f32.mrb[0].mxu0
  %3135 = vmatprep.mubr.f32.mxu0 0.0
  %3136 = vmatmul.mubr.f32.gmra.mrb[0].mxu0 %v3056
  %v3137 = vpop.f32.mrb[0].mxu0
  %v3138 = vadd.f32 0.0, %v3137
  %v3139 = vpop.f32.mrb[0].mxu0
  %3140 = vmatprep.mubr.f32.mxu0 0.0
  %3141 = vmatmul.mubr.f32.gmra.mrb[0].mxu0 %v3059
  %v3142 = vpop.f32.mrb[0].mxu0
  %v3143 = vadd.f32 0.0, %v3142
  %v3144 = vpop.f32.mrb[0].mxu0
  %3145 = vdwg.mxu0
  %v3146 = vadd.f32 %v3032, %v3128
  %v3147 = vadd.f32 %v3033, %v3133
  %v3148 = vadd.f32 %v3034, %v3138
  %v3149 = vadd.f32 %v3035, %v3143
  %v3150 = vld [vmem:[#allocation2 + $0x3c] sm:$0xff]
  %v3151 = vld [vmem:[#allocation2 + $0x44] sm:$0xff]
  %v3152 = vld [vmem:[#allocation2 + $0x4c] sm:$0xff]
  %v3153 = vld [vmem:[#allocation2 + $0x54] sm:$0x3]
  %s3154 = scalar_lea.vmem %s3, 1600
  %v3155 = vld [vmem:[%s3154] sm:$0xff]
  %v3156 = vld [vmem:[%s3154 + $0x8] sm:$0xff]
  %v3157 = vld [vmem:[%s3154 + $0x10] sm:$0xff]
  %v3158 = vld [vmem:[%s3154 + $0x18] sm:$0xff]
  %v3159 = vld [vmem:[%s3154 + $0x20] sm:$0xff]
  %v3160 = vld [vmem:[%s3154 + $0x28] sm:$0xff]
  %v3161 = vld [vmem:[%s3154 + $0x30] sm:$0xff]
  %v3162 = vld [vmem:[%s3154 + $0x38] sm:$0xff]
  %v3164 = vsel %vm290, %v3150, 0
  %v3167 = vsel %vm290, %v3151, 0
  %v3170 = vsel %vm290, %v3152, 0
  %v3173 = vsel %vm290, %v3153, 0
  %3175 = vmatprep.subr.mxu0 0.0
  %3176 = vmatpush1.msra.mxu0 %v3155
  %3177 = vmatprep.subr.mxu0 0.0
  %3178 = vmatpush1.msra.mxu0 %v3156
  %3179 = vmatprep.subr.mxu0 0.0
  %3180 = vmatpush1.msra.mxu0 %v3157
  %3181 = vmatprep.subr.mxu0 0.0
  %3182 = vmatpush1.msra.mxu0 %v3158
  %3183 = vmatprep.subr.mxu0 0.0
  %3184 = vmatpush1.msra.mxu0 %v3159
  %3185 = vmatprep.subr.mxu0 0.0
  %3186 = vmatpush1.msra.mxu0 %v3160
  %3187 = vmatprep.subr.mxu0 0.0
  %3188 = vmatpush1.msra.mxu0 %v3161
  %3189 = vmatprep.subr.mxu0 0.0
  %3190 = vmatpush1.msra.mxu0 %v3162
  %3191 = vmatprep.subr.mxu0 0.0
  %3192 = vmatpush1.msra.mxu0 0.0
  %3193 = vmatprep.subr.mxu0 0.0
  %3194 = vmatpush1.msra.mxu0 0.0
  %3195 = vmatprep.subr.mxu0 0.0
  %3196 = vmatpush1.msra.mxu0 0.0
  %3197 = vmatprep.subr.mxu0 0.0
  %3198 = vmatpush1.msra.mxu0 0.0
  %3199 = vmatprep.subr.mxu0 0.0
  %3200 = vmatpush1.msra.mxu0 0.0
  %3201 = vmatprep.subr.mxu0 0.0
  %3202 = vmatpush1.msra.mxu0 0.0
  %3203 = vmatprep.subr.mxu0 0.0
  %3204 = vmatpush1.msra.mxu0 0.0
  %3205 = vmatprep.subr.mxu0 0.0
  %3206 = vmatpush1.msra.mxu0 0.0
  %3207 = vmatprep.subr.mxu0 0.0
  %3208 = vmatpush1.msra.mxu0 0.0
  %3209 = vmatprep.subr.mxu0 0.0
  %3210 = vmatpush1.msra.mxu0 0.0
  %3211 = vmatprep.subr.mxu0 0.0
  %3212 = vmatpush1.msra.mxu0 0.0
  %3213 = vmatprep.subr.mxu0 0.0
  %3214 = vmatpush1.msra.mxu0 0.0
  %3215 = vmatprep.subr.mxu0 0.0
  %3216 = vmatpush1.msra.mxu0 0.0
  %3217 = vmatprep.subr.mxu0 0.0
  %3218 = vmatpush1.msra.mxu0 0.0
  %3219 = vmatprep.subr.mxu0 0.0
  %3220 = vmatpush1.msra.mxu0 0.0
  %3221 = vmatprep.subr.mxu0 0.0
  %3222 = vmatpush1.msra.mxu0 0.0
  %3223 = vmatprep.subr.mxu0 0.0
  %3224 = vmatpush1.msra.mxu0 0.0
  %3225 = vmatprep.subr.mxu0 0.0
  %3226 = vmatpush1.msra.mxu0 0.0
  %3227 = vmatprep.subr.mxu0 0.0
  %3228 = vmatpush1.msra.mxu0 0.0
  %3229 = vmatprep.subr.mxu0 0.0
  %3230 = vmatpush1.msra.mxu0 0.0
  %3231 = vmatprep.subr.mxu0 0.0
  %3232 = vmatpush1.msra.mxu0 0.0
  %3233 = vmatprep.subr.mxu0 0.0
  %3234 = vmatpush1.msra.mxu0 0.0
  %3235 = vmatprep.subr.mxu0 0.0
  %3236 = vmatpush1.msra.mxu0 0.0
  %3237 = vmatprep.subr.mxu0 0.0
  %3238 = vmatpush1.msra.mxu0 0.0
  %3239 = vmatprep.mubr.f32.mxu0 0.0
  %3240 = vmatmul.mubr.f32.gmra.mrb[0].mxu0 %v3164
  %v3241 = vpop.f32.mrb[0].mxu0
  %v3242 = vadd.f32 0.0, %v3241
  %v3243 = vpop.f32.mrb[0].mxu0
  %3244 = vmatprep.mubr.f32.mxu0 0.0
  %3245 = vmatmul.mubr.f32.gmra.mrb[0].mxu0 %v3167
  %v3246 = vpop.f32.mrb[0].mxu0
  %v3247 = vadd.f32 0.0, %v3246
  %v3248 = vpop.f32.mrb[0].mxu0
  %3249 = vmatprep.mubr.f32.mxu0 0.0
  %3250 = vmatmul.mubr.f32.gmra.mrb[0].mxu0 %v3170
  %v3251 = vpop.f32.mrb[0].mxu0
  %v3252 = vadd.f32 0.0, %v3251
  %v3253 = vpop.f32.mrb[0].mxu0
  %3254 = vmatprep.mubr.f32.mxu0 0.0
  %3255 = vmatmul.mubr.f32.gmra.mrb[0].mxu0 %v3173
  %v3256 = vpop.f32.mrb[0].mxu0
  %v3257 = vadd.f32 0.0, %v3256
  %v3258 = vpop.f32.mrb[0].mxu0
  %3259 = vdwg.mxu0
  %v3260 = vadd.f32 %v3146, %v3242
  %v3261 = vadd.f32 %v3147, %v3247
  %v3262 = vadd.f32 %v3148, %v3252
  %v3263 = vadd.f32 %v3149, %v3257
  %v3264 = vld [vmem:[#allocation2 + $0x68] sm:$0xff]
  %v3265 = vld [vmem:[#allocation2 + $0x70] sm:$0xff]
  %v3266 = vld [vmem:[#allocation2 + $0x78] sm:$0xff]
  %v3267 = vld [vmem:[#allocation2 + $0x80] sm:$0x3]
  %s3268 = scalar_lea.vmem %s3, 1664
  %v3269 = vld [vmem:[%s3268] sm:$0xff]
  %v3270 = vld [vmem:[%s3268 + $0x8] sm:$0xff]
  %v3271 = vld [vmem:[%s3268 + $0x10] sm:$0xff]
  %v3272 = vld [vmem:[%s3268 + $0x18] sm:$0xff]
  %v3273 = vld [vmem:[%s3268 + $0x20] sm:$0xff]
  %v3274 = vld [vmem:[%s3268 + $0x28] sm:$0xff]
  %v3275 = vld [vmem:[%s3268 + $0x30] sm:$0xff]
  %v3276 = vld [vmem:[%s3268 + $0x38] sm:$0xff]
  %v3278 = vsel %vm290, %v3264, 0
  %v3281 = vsel %vm290, %v3265, 0
  %v3284 = vsel %vm290, %v3266, 0
  %v3287 = vsel %vm290, %v3267, 0
  %3289 = vmatprep.subr.mxu0 0.0
  %3290 = vmatpush1.msra.mxu0 %v3269
  %3291 = vmatprep.subr.mxu0 0.0
  %3292 = vmatpush1.msra.mxu0 %v3270
  %3293 = vmatprep.subr.mxu0 0.0
  %3294 = vmatpush1.msra.mxu0 %v3271
  %3295 = vmatprep.subr.mxu0 0.0
  %3296 = vmatpush1.msra.mxu0 %v3272
  %3297 = vmatprep.subr.mxu0 0.0
  %3298 = vmatpush1.msra.mxu0 %v3273
  %3299 = vmatprep.subr.mxu0 0.0
  %3300 = vmatpush1.msra.mxu0 %v3274
  %3301 = vmatprep.subr.mxu0 0.0
  %3302 = vmatpush1.msra.mxu0 %v3275
  %3303 = vmatprep.subr.mxu0 0.0
  %3304 = vmatpush1.msra.mxu0 %v3276
  %3305 = vmatprep.subr.mxu0 0.0
  %3306 = vmatpush1.msra.mxu0 0.0
  %3307 = vmatprep.subr.mxu0 0.0
  %3308 = vmatpush1.msra.mxu0 0.0
  %3309 = vmatprep.subr.mxu0 0.0
  %3310 = vmatpush1.msra.mxu0 0.0
  %3311 = vmatprep.subr.mxu0 0.0
  %3312 = vmatpush1.msra.mxu0 0.0
  %3313 = vmatprep.subr.mxu0 0.0
  %3314 = vmatpush1.msra.mxu0 0.0
  %3315 = vmatprep.subr.mxu0 0.0
  %3316 = vmatpush1.msra.mxu0 0.0
  %3317 = vmatprep.subr.mxu0 0.0
  %3318 = vmatpush1.msra.mxu0 0.0
  %3319 = vmatprep.subr.mxu0 0.0
  %3320 = vmatpush1.msra.mxu0 0.0
  %3321 = vmatprep.subr.mxu0 0.0
  %3322 = vmatpush1.msra.mxu0 0.0
  %3323 = vmatprep.subr.mxu0 0.0
  %3324 = vmatpush1.msra.mxu0 0.0
  %3325 = vmatprep.subr.mxu0 0.0
  %3326 = vmatpush1.msra.mxu0 0.0
  %3327 = vmatprep.subr.mxu0 0.0
  %3328 = vmatpush1.msra.mxu0 0.0
  %3329 = vmatprep.subr.mxu0 0.0
  %3330 = vmatpush1.msra.mxu0 0.0
  %3331 = vmatprep.subr.mxu0 0.0
  %3332 = vmatpush1.msra.mxu0 0.0
  %3333 = vmatprep.subr.mxu0 0.0
  %3334 = vmatpush1.msra.mxu0 0.0
  %3335 = vmatprep.subr.mxu0 0.0
  %3336 = vmatpush1.msra.mxu0 0.0
  %3337 = vmatprep.subr.mxu0 0.0
  %3338 = vmatpush1.msra.mxu0 0.0
  %3339 = vmatprep.subr.mxu0 0.0
  %3340 = vmatpush1.msra.mxu0 0.0
  %3341 = vmatprep.subr.mxu0 0.0
  %3342 = vmatpush1.msra.mxu0 0.0
  %3343 = vmatprep.subr.mxu0 0.0
  %3344 = vmatpush1.msra.mxu0 0.0
  %3345 = vmatprep.subr.mxu0 0.0
  %3346 = vmatpush1.msra.mxu0 0.0
  %3347 = vmatprep.subr.mxu0 0.0
  %3348 = vmatpush1.msra.mxu0 0.0
  %3349 = vmatprep.subr.mxu0 0.0
  %3350 = vmatpush1.msra.mxu0 0.0
  %3351 = vmatprep.subr.mxu0 0.0
  %3352 = vmatpush1.msra.mxu0 0.0
  %3353 = vmatprep.mubr.f32.mxu0 0.0
  %3354 = vmatmul.mubr.f32.gmra.mrb[0].mxu0 %v3278
  %v3355 = vpop.f32.mrb[0].mxu0
  %v3356 = vadd.f32 0.0, %v3355
  %v3357 = vpop.f32.mrb[0].mxu0
  %3358 = vmatprep.mubr.f32.mxu0 0.0
  %3359 = vmatmul.mubr.f32.gmra.mrb[0].mxu0 %v3281
  %v3360 = vpop.f32.mrb[0].mxu0
  %v3361 = vadd.f32 0.0, %v3360
  %v3362 = vpop.f32.mrb[0].mxu0
  %3363 = vmatprep.mubr.f32.mxu0 0.0
  %3364 = vmatmul.mubr.f32.gmra.mrb[0].mxu0 %v3284
  %v3365 = vpop.f32.mrb[0].mxu0
  %v3366 = vadd.f32 0.0, %v3365
  %v3367 = vpop.f32.mrb[0].mxu0
  %3368 = vmatprep.mubr.f32.mxu0 0.0
  %3369 = vmatmul.mubr.f32.gmra.mrb[0].mxu0 %v3287
  %v3370 = vpop.f32.mrb[0].mxu0
  %v3371 = vadd.f32 0.0, %v3370
  %v3372 = vpop.f32.mrb[0].mxu0
  %3373 = vdwg.mxu0
  %v3374 = vadd.f32 %v3260, %v3356
  %v3375 = vadd.f32 %v3261, %v3361
  %v3376 = vadd.f32 %v3262, %v3366
  %v3377 = vadd.f32 %v3263, %v3371
  %v3378 = vld [vmem:[#allocation2 + $0x12] sm:$0xff]
  %v3379 = vld [vmem:[#allocation2 + $0x1a] sm:$0xff]
  %v3380 = vld [vmem:[#allocation2 + $0x22] sm:$0xff]
  %v3381 = vld [vmem:[#allocation2 + $0x2a] sm:$0x3]
  %s3382 = scalar_lea.vmem %s3, 1728
  %v3383 = vld [vmem:[%s3382] sm:$0xff]
  %v3384 = vld [vmem:[%s3382 + $0x8] sm:$0xff]
  %v3385 = vld [vmem:[%s3382 + $0x10] sm:$0xff]
  %v3386 = vld [vmem:[%s3382 + $0x18] sm:$0xff]
  %v3387 = vld [vmem:[%s3382 + $0x20] sm:$0xff]
  %v3388 = vld [vmem:[%s3382 + $0x28] sm:$0xff]
  %v3389 = vld [vmem:[%s3382 + $0x30] sm:$0xff]
  %v3390 = vld [vmem:[%s3382 + $0x38] sm:$0xff]
  %v3392 = vsel %vm290, %v3378, 0
  %v3395 = vsel %vm290, %v3379, 0
  %v3398 = vsel %vm290, %v3380, 0
  %v3401 = vsel %vm290, %v3381, 0
  %3403 = vmatprep.subr.mxu0 0.0
  %3404 = vmatpush1.msra.mxu0 %v3383
  %3405 = vmatprep.subr.mxu0 0.0
  %3406 = vmatpush1.msra.mxu0 %v3384
  %3407 = vmatprep.subr.mxu0 0.0
  %3408 = vmatpush1.msra.mxu0 %v3385
  %3409 = vmatprep.subr.mxu0 0.0
  %3410 = vmatpush1.msra.mxu0 %v3386
  %3411 = vmatprep.subr.mxu0 0.0
  %3412 = vmatpush1.msra.mxu0 %v3387
  %3413 = vmatprep.subr.mxu0 0.0
  %3414 = vmatpush1.msra.mxu0 %v3388
  %3415 = vmatprep.subr.mxu0 0.0
  %3416 = vmatpush1.msra.mxu0 %v3389
  %3417 = vmatprep.subr.mxu0 0.0
  %3418 = vmatpush1.msra.mxu0 %v3390
  %3419 = vmatprep.subr.mxu0 0.0
  %3420 = vmatpush1.msra.mxu0 0.0
  %3421 = vmatprep.subr.mxu0 0.0
  %3422 = vmatpush1.msra.mxu0 0.0
  %3423 = vmatprep.subr.mxu0 0.0
  %3424 = vmatpush1.msra.mxu0 0.0
  %3425 = vmatprep.subr.mxu0 0.0
  %3426 = vmatpush1.msra.mxu0 0.0
  %3427 = vmatprep.subr.mxu0 0.0
  %3428 = vmatpush1.msra.mxu0 0.0
  %3429 = vmatprep.subr.mxu0 0.0
  %3430 = vmatpush1.msra.mxu0 0.0
  %3431 = vmatprep.subr.mxu0 0.0
  %3432 = vmatpush1.msra.mxu0 0.0
  %3433 = vmatprep.subr.mxu0 0.0
  %3434 = vmatpush1.msra.mxu0 0.0
  %3435 = vmatprep.subr.mxu0 0.0
  %3436 = vmatpush1.msra.mxu0 0.0
  %3437 = vmatprep.subr.mxu0 0.0
  %3438 = vmatpush1.msra.mxu0 0.0
  %3439 = vmatprep.subr.mxu0 0.0
  %3440 = vmatpush1.msra.mxu0 0.0
  %3441 = vmatprep.subr.mxu0 0.0
  %3442 = vmatpush1.msra.mxu0 0.0
  %3443 = vmatprep.subr.mxu0 0.0
  %3444 = vmatpush1.msra.mxu0 0.0
  %3445 = vmatprep.subr.mxu0 0.0
  %3446 = vmatpush1.msra.mxu0 0.0
  %3447 = vmatprep.subr.mxu0 0.0
  %3448 = vmatpush1.msra.mxu0 0.0
  %3449 = vmatprep.subr.mxu0 0.0
  %3450 = vmatpush1.msra.mxu0 0.0
  %3451 = vmatprep.subr.mxu0 0.0
  %3452 = vmatpush1.msra.mxu0 0.0
  %3453 = vmatprep.subr.mxu0 0.0
  %3454 = vmatpush1.msra.mxu0 0.0
  %3455 = vmatprep.subr.mxu0 0.0
  %3456 = vmatpush1.msra.mxu0 0.0
  %3457 = vmatprep.subr.mxu0 0.0
  %3458 = vmatpush1.msra.mxu0 0.0
  %3459 = vmatprep.subr.mxu0 0.0
  %3460 = vmatpush1.msra.mxu0 0.0
  %3461 = vmatprep.subr.mxu0 0.0
  %3462 = vmatpush1.msra.mxu0 0.0
  %3463 = vmatprep.subr.mxu0 0.0
  %3464 = vmatpush1.msra.mxu0 0.0
  %3465 = vmatprep.subr.mxu0 0.0
  %3466 = vmatpush1.msra.mxu0 0.0
  %3467 = vmatprep.mubr.f32.mxu0 0.0
  %3468 = vmatmul.mubr.f32.gmra.mrb[0].mxu0 %v3392
  %v3469 = vpop.f32.mrb[0].mxu0
  %v3470 = vadd.f32 0.0, %v3469
  %v3471 = vpop.f32.mrb[0].mxu0
  %3472 = vmatprep.mubr.f32.mxu0 0.0
  %3473 = vmatmul.mubr.f32.gmra.mrb[0].mxu0 %v3395
  %v3474 = vpop.f32.mrb[0].mxu0
  %v3475 = vadd.f32 0.0, %v3474
  %v3476 = vpop.f32.mrb[0].mxu0
  %3477 = vmatprep.mubr.f32.mxu0 0.0
  %3478 = vmatmul.mubr.f32.gmra.mrb[0].mxu0 %v3398
  %v3479 = vpop.f32.mrb[0].mxu0
  %v3480 = vadd.f32 0.0, %v3479
  %v3481 = vpop.f32.mrb[0].mxu0
  %3482 = vmatprep.mubr.f32.mxu0 0.0
  %3483 = vmatmul.mubr.f32.gmra.mrb[0].mxu0 %v3401
  %v3484 = vpop.f32.mrb[0].mxu0
  %v3485 = vadd.f32 0.0, %v3484
  %v3486 = vpop.f32.mrb[0].mxu0
  %3487 = vdwg.mxu0
  %v3488 = vadd.f32 %v3374, %v3470
  %v3489 = vadd.f32 %v3375, %v3475
  %v3490 = vadd.f32 %v3376, %v3480
  %v3491 = vadd.f32 %v3377, %v3485
  %v3492 = vld [vmem:[#allocation2 + $0x3e] sm:$0xff]
  %v3493 = vld [vmem:[#allocation2 + $0x46] sm:$0xff]
  %v3494 = vld [vmem:[#allocation2 + $0x4e] sm:$0xff]
  %v3495 = vld [vmem:[#allocation2 + $0x56] sm:$0x3]
  %s3496 = scalar_lea.vmem %s3, 1792
  %v3497 = vld [vmem:[%s3496] sm:$0xff]
  %v3498 = vld [vmem:[%s3496 + $0x8] sm:$0xff]
  %v3499 = vld [vmem:[%s3496 + $0x10] sm:$0xff]
  %v3500 = vld [vmem:[%s3496 + $0x18] sm:$0xff]
  %v3501 = vld [vmem:[%s3496 + $0x20] sm:$0xff]
  %v3502 = vld [vmem:[%s3496 + $0x28] sm:$0xff]
  %v3503 = vld [vmem:[%s3496 + $0x30] sm:$0xff]
  %v3504 = vld [vmem:[%s3496 + $0x38] sm:$0xff]
  %v3506 = vsel %vm290, %v3492, 0
  %v3509 = vsel %vm290, %v3493, 0
  %v3512 = vsel %vm290, %v3494, 0
  %v3515 = vsel %vm290, %v3495, 0
  %3517 = vmatprep.subr.mxu0 0.0
  %3518 = vmatpush1.msra.mxu0 %v3497
  %3519 = vmatprep.subr.mxu0 0.0
  %3520 = vmatpush1.msra.mxu0 %v3498
  %3521 = vmatprep.subr.mxu0 0.0
  %3522 = vmatpush1.msra.mxu0 %v3499
  %3523 = vmatprep.subr.mxu0 0.0
  %3524 = vmatpush1.msra.mxu0 %v3500
  %3525 = vmatprep.subr.mxu0 0.0
  %3526 = vmatpush1.msra.mxu0 %v3501
  %3527 = vmatprep.subr.mxu0 0.0
  %3528 = vmatpush1.msra.mxu0 %v3502
  %3529 = vmatprep.subr.mxu0 0.0
  %3530 = vmatpush1.msra.mxu0 %v3503
  %3531 = vmatprep.subr.mxu0 0.0
  %3532 = vmatpush1.msra.mxu0 %v3504
  %3533 = vmatprep.subr.mxu0 0.0
  %3534 = vmatpush1.msra.mxu0 0.0
  %3535 = vmatprep.subr.mxu0 0.0
  %3536 = vmatpush1.msra.mxu0 0.0
  %3537 = vmatprep.subr.mxu0 0.0
  %3538 = vmatpush1.msra.mxu0 0.0
  %3539 = vmatprep.subr.mxu0 0.0
  %3540 = vmatpush1.msra.mxu0 0.0
  %3541 = vmatprep.subr.mxu0 0.0
  %3542 = vmatpush1.msra.mxu0 0.0
  %3543 = vmatprep.subr.mxu0 0.0
  %3544 = vmatpush1.msra.mxu0 0.0
  %3545 = vmatprep.subr.mxu0 0.0
  %3546 = vmatpush1.msra.mxu0 0.0
  %3547 = vmatprep.subr.mxu0 0.0
  %3548 = vmatpush1.msra.mxu0 0.0
  %3549 = vmatprep.subr.mxu0 0.0
  %3550 = vmatpush1.msra.mxu0 0.0
  %3551 = vmatprep.subr.mxu0 0.0
  %3552 = vmatpush1.msra.mxu0 0.0
  %3553 = vmatprep.subr.mxu0 0.0
  %3554 = vmatpush1.msra.mxu0 0.0
  %3555 = vmatprep.subr.mxu0 0.0
  %3556 = vmatpush1.msra.mxu0 0.0
  %3557 = vmatprep.subr.mxu0 0.0
  %3558 = vmatpush1.msra.mxu0 0.0
  %3559 = vmatprep.subr.mxu0 0.0
  %3560 = vmatpush1.msra.mxu0 0.0
  %3561 = vmatprep.subr.mxu0 0.0
  %3562 = vmatpush1.msra.mxu0 0.0
  %3563 = vmatprep.subr.mxu0 0.0
  %3564 = vmatpush1.msra.mxu0 0.0
  %3565 = vmatprep.subr.mxu0 0.0
  %3566 = vmatpush1.msra.mxu0 0.0
  %3567 = vmatprep.subr.mxu0 0.0
  %3568 = vmatpush1.msra.mxu0 0.0
  %3569 = vmatprep.subr.mxu0 0.0
  %3570 = vmatpush1.msra.mxu0 0.0
  %3571 = vmatprep.subr.mxu0 0.0
  %3572 = vmatpush1.msra.mxu0 0.0
  %3573 = vmatprep.subr.mxu0 0.0
  %3574 = vmatpush1.msra.mxu0 0.0
  %3575 = vmatprep.subr.mxu0 0.0
  %3576 = vmatpush1.msra.mxu0 0.0
  %3577 = vmatprep.subr.mxu0 0.0
  %3578 = vmatpush1.msra.mxu0 0.0
  %3579 = vmatprep.subr.mxu0 0.0
  %3580 = vmatpush1.msra.mxu0 0.0
  %3581 = vmatprep.mubr.f32.mxu0 0.0
  %3582 = vmatmul.mubr.f32.gmra.mrb[0].mxu0 %v3506
  %v3583 = vpop.f32.mrb[0].mxu0
  %v3584 = vadd.f32 0.0, %v3583
  %v3585 = vpop.f32.mrb[0].mxu0
  %3586 = vmatprep.mubr.f32.mxu0 0.0
  %3587 = vmatmul.mubr.f32.gmra.mrb[0].mxu0 %v3509
  %v3588 = vpop.f32.mrb[0].mxu0
  %v3589 = vadd.f32 0.0, %v3588
  %v3590 = vpop.f32.mrb[0].mxu0
  %3591 = vmatprep.mubr.f32.mxu0 0.0
  %3592 = vmatmul.mubr.f32.gmra.mrb[0].mxu0 %v3512
  %v3593 = vpop.f32.mrb[0].mxu0
  %v3594 = vadd.f32 0.0, %v3593
  %v3595 = vpop.f32.mrb[0].mxu0
  %3596 = vmatprep.mubr.f32.mxu0 0.0
  %3597 = vmatmul.mubr.f32.gmra.mrb[0].mxu0 %v3515
  %v3598 = vpop.f32.mrb[0].mxu0
  %v3599 = vadd.f32 0.0, %v3598
  %v3600 = vpop.f32.mrb[0].mxu0
  %3601 = vdwg.mxu0
  %v3602 = vadd.f32 %v3488, %v3584
  %v3603 = vadd.f32 %v3489, %v3589
  %v3604 = vadd.f32 %v3490, %v3594
  %v3605 = vadd.f32 %v3491, %v3599
  %v3606 = vld [vmem:[#allocation2 + $0x6a] sm:$0xff]
  %v3607 = vld [vmem:[#allocation2 + $0x72] sm:$0xff]
  %v3608 = vld [vmem:[#allocation2 + $0x7a] sm:$0xff]
  %v3609 = vld [vmem:[#allocation2 + $0x82] sm:$0x3]
  %s3610 = scalar_lea.vmem %s3, 1856
  %v3611 = vld [vmem:[%s3610] sm:$0xff]
  %v3612 = vld [vmem:[%s3610 + $0x8] sm:$0xff]
  %v3613 = vld [vmem:[%s3610 + $0x10] sm:$0xff]
  %v3614 = vld [vmem:[%s3610 + $0x18] sm:$0xff]
  %v3615 = vld [vmem:[%s3610 + $0x20] sm:$0xff]
  %v3616 = vld [vmem:[%s3610 + $0x28] sm:$0xff]
  %v3617 = vld [vmem:[%s3610 + $0x30] sm:$0xff]
  %v3618 = vld [vmem:[%s3610 + $0x38] sm:$0xff]
  %v3620 = vsel %vm290, %v3606, 0
  %v3623 = vsel %vm290, %v3607, 0
  %v3626 = vsel %vm290, %v3608, 0
  %v3629 = vsel %vm290, %v3609, 0
  %3631 = vmatprep.subr.mxu0 0.0
  %3632 = vmatpush1.msra.mxu0 %v3611
  %3633 = vmatprep.subr.mxu0 0.0
  %3634 = vmatpush1.msra.mxu0 %v3612
  %3635 = vmatprep.subr.mxu0 0.0
  %3636 = vmatpush1.msra.mxu0 %v3613
  %3637 = vmatprep.subr.mxu0 0.0
  %3638 = vmatpush1.msra.mxu0 %v3614
  %3639 = vmatprep.subr.mxu0 0.0
  %3640 = vmatpush1.msra.mxu0 %v3615
  %3641 = vmatprep.subr.mxu0 0.0
  %3642 = vmatpush1.msra.mxu0 %v3616
  %3643 = vmatprep.subr.mxu0 0.0
  %3644 = vmatpush1.msra.mxu0 %v3617
  %3645 = vmatprep.subr.mxu0 0.0
  %3646 = vmatpush1.msra.mxu0 %v3618
  %3647 = vmatprep.subr.mxu0 0.0
  %3648 = vmatpush1.msra.mxu0 0.0
  %3649 = vmatprep.subr.mxu0 0.0
  %3650 = vmatpush1.msra.mxu0 0.0
  %3651 = vmatprep.subr.mxu0 0.0
  %3652 = vmatpush1.msra.mxu0 0.0
  %3653 = vmatprep.subr.mxu0 0.0
  %3654 = vmatpush1.msra.mxu0 0.0
  %3655 = vmatprep.subr.mxu0 0.0
  %3656 = vmatpush1.msra.mxu0 0.0
  %3657 = vmatprep.subr.mxu0 0.0
  %3658 = vmatpush1.msra.mxu0 0.0
  %3659 = vmatprep.subr.mxu0 0.0
  %3660 = vmatpush1.msra.mxu0 0.0
  %3661 = vmatprep.subr.mxu0 0.0
  %3662 = vmatpush1.msra.mxu0 0.0
  %3663 = vmatprep.subr.mxu0 0.0
  %3664 = vmatpush1.msra.mxu0 0.0
  %3665 = vmatprep.subr.mxu0 0.0
  %3666 = vmatpush1.msra.mxu0 0.0
  %3667 = vmatprep.subr.mxu0 0.0
  %3668 = vmatpush1.msra.mxu0 0.0
  %3669 = vmatprep.subr.mxu0 0.0
  %3670 = vmatpush1.msra.mxu0 0.0
  %3671 = vmatprep.subr.mxu0 0.0
  %3672 = vmatpush1.msra.mxu0 0.0
  %3673 = vmatprep.subr.mxu0 0.0
  %3674 = vmatpush1.msra.mxu0 0.0
  %3675 = vmatprep.subr.mxu0 0.0
  %3676 = vmatpush1.msra.mxu0 0.0
  %3677 = vmatprep.subr.mxu0 0.0
  %3678 = vmatpush1.msra.mxu0 0.0
  %3679 = vmatprep.subr.mxu0 0.0
  %3680 = vmatpush1.msra.mxu0 0.0
  %3681 = vmatprep.subr.mxu0 0.0
  %3682 = vmatpush1.msra.mxu0 0.0
  %3683 = vmatprep.subr.mxu0 0.0
  %3684 = vmatpush1.msra.mxu0 0.0
  %3685 = vmatprep.subr.mxu0 0.0
  %3686 = vmatpush1.msra.mxu0 0.0
  %3687 = vmatprep.subr.mxu0 0.0
  %3688 = vmatpush1.msra.mxu0 0.0
  %3689 = vmatprep.subr.mxu0 0.0
  %3690 = vmatpush1.msra.mxu0 0.0
  %3691 = vmatprep.subr.mxu0 0.0
  %3692 = vmatpush1.msra.mxu0 0.0
  %3693 = vmatprep.subr.mxu0 0.0
  %3694 = vmatpush1.msra.mxu0 0.0
  %3695 = vmatprep.mubr.f32.mxu0 0.0
  %3696 = vmatmul.mubr.f32.gmra.mrb[0].mxu0 %v3620
  %v3697 = vpop.f32.mrb[0].mxu0
  %v3698 = vadd.f32 0.0, %v3697
  %v3699 = vpop.f32.mrb[0].mxu0
  %3700 = vmatprep.mubr.f32.mxu0 0.0
  %3701 = vmatmul.mubr.f32.gmra.mrb[0].mxu0 %v3623
  %v3702 = vpop.f32.mrb[0].mxu0
  %v3703 = vadd.f32 0.0, %v3702
  %v3704 = vpop.f32.mrb[0].mxu0
  %3705 = vmatprep.mubr.f32.mxu0 0.0
  %3706 = vmatmul.mubr.f32.gmra.mrb[0].mxu0 %v3626
  %v3707 = vpop.f32.mrb[0].mxu0
  %v3708 = vadd.f32 0.0, %v3707
  %v3709 = vpop.f32.mrb[0].mxu0
  %3710 = vmatprep.mubr.f32.mxu0 0.0
  %3711 = vmatmul.mubr.f32.gmra.mrb[0].mxu0 %v3629
  %v3712 = vpop.f32.mrb[0].mxu0
  %v3713 = vadd.f32 0.0, %v3712
  %v3714 = vpop.f32.mrb[0].mxu0
  %3715 = vdwg.mxu0
  %v3716 = vadd.f32 %v3602, %v3698
  %v3717 = vadd.f32 %v3603, %v3703
  %v3718 = vadd.f32 %v3604, %v3708
  %v3719 = vadd.f32 %v3605, %v3713
  %v3720 = vlaneseq
  %v3721 = vshrl.u32 %v3720, 7
  %v3722 = vsub.s32 0, %v3721
  %v3723 = vrot.slane %v30, %v3722
  %v3724 = vadd.f32 %v3716, %v3723
  %v3725 = vadd.f32 %v3717, %v3723
  %v3726 = vadd.f32 %v3718, %v3723
  %v3727 = vadd.f32 %v3719, %v3723
  %v3728 = vmax.f32 %v3724, 0.0
  %v3729 = vmax.f32 %v3725, 0.0
  %v3730 = vmax.f32 %v3726, 0.0
  %v3731 = vmax.f32 %v3727, 0.0
  %vm3732 = vcmask 261120
  %3733 = vst.msk [vmem:[#allocation3] sm:$0xff] %vm3732, %v3728
  %3734 = vst.msk [vmem:[#allocation3 + $0x8] sm:$0xff] %vm3732, %v3729
  %3735 = vst.msk [vmem:[#allocation3 + $0x10] sm:$0xff] %vm3732, %v3730
  %vm3736 = vcmask 254976
  %3737 = vst.msk [vmem:[#allocation3 + $0x18] sm:$0x3] %vm3736, %v3731
  %v3738 = vld [vmem:[#allocation3] sm:$0xff]
  %v3739 = vld [vmem:[%s4] sm:$0xff]
  %v3740 = vld [vmem:[%s4 + $0x8] sm:$0xff]
  %v3741 = vld [vmem:[%s4 + $0x10] sm:$0xff]
  %v3742 = vld [vmem:[%s4 + $0x18] sm:$0xff]
  %v3743 = vld [vmem:[#allocation3 + $0x2] sm:$0xff]
  %s3744 = scalar_lea.vmem %s4, 32
  %v3745 = vld [vmem:[%s3744] sm:$0xff]
  %v3746 = vld [vmem:[%s3744 + $0x8] sm:$0xff]
  %v3747 = vld [vmem:[%s3744 + $0x10] sm:$0xff]
  %v3748 = vld [vmem:[%s3744 + $0x18] sm:$0xff]
  %v3750 = vsel %vm3732, %v3743, 0
  %3752 = vmatprep.subr.mxu0 0.0
  %3753 = vmatpush1.msra.mxu0 %v3745
  %3754 = vmatprep.subr.mxu0 0.0
  %3755 = vmatpush1.msra.mxu0 %v3746
  %3756 = vmatprep.subr.mxu0 0.0
  %3757 = vmatpush1.msra.mxu0 %v3747
  %3758 = vmatprep.subr.mxu0 0.0
  %3759 = vmatpush1.msra.mxu0 %v3748
  %3760 = vmatprep.subr.mxu0 0.0
  %3761 = vmatpush1.msra.mxu0 0.0
  %3762 = vmatprep.subr.mxu0 0.0
  %3763 = vmatpush1.msra.mxu0 0.0
  %3764 = vmatprep.subr.mxu0 0.0
  %3765 = vmatpush1.msra.mxu0 0.0
  %3766 = vmatprep.subr.mxu0 0.0
  %3767 = vmatpush1.msra.mxu0 0.0
  %3768 = vmatprep.subr.mxu0 0.0
  %3769 = vmatpush1.msra.mxu0 0.0
  %3770 = vmatprep.subr.mxu0 0.0
  %3771 = vmatpush1.msra.mxu0 0.0
  %3772 = vmatprep.subr.mxu0 0.0
  %3773 = vmatpush1.msra.mxu0 0.0
  %3774 = vmatprep.subr.mxu0 0.0
  %3775 = vmatpush1.msra.mxu0 0.0
  %3776 = vmatprep.subr.mxu0 0.0
  %3777 = vmatpush1.msra.mxu0 0.0
  %3778 = vmatprep.subr.mxu0 0.0
  %3779 = vmatpush1.msra.mxu0 0.0
  %3780 = vmatprep.subr.mxu0 0.0
  %3781 = vmatpush1.msra.mxu0 0.0
  %3782 = vmatprep.subr.mxu0 0.0
  %3783 = vmatpush1.msra.mxu0 0.0
  %3784 = vmatprep.subr.mxu0 0.0
  %3785 = vmatpush1.msra.mxu0 0.0
  %3786 = vmatprep.subr.mxu0 0.0
  %3787 = vmatpush1.msra.mxu0 0.0
  %3788 = vmatprep.subr.mxu0 0.0
  %3789 = vmatpush1.msra.mxu0 0.0
  %3790 = vmatprep.subr.mxu0 0.0
  %3791 = vmatpush1.msra.mxu0 0.0
  %3792 = vmatprep.subr.mxu0 0.0
  %3793 = vmatpush1.msra.mxu0 0.0
  %3794 = vmatprep.subr.mxu0 0.0
  %3795 = vmatpush1.msra.mxu0 0.0
  %3796 = vmatprep.subr.mxu0 0.0
  %3797 = vmatpush1.msra.mxu0 0.0
  %3798 = vmatprep.subr.mxu0 0.0
  %3799 = vmatpush1.msra.mxu0 0.0
  %3800 = vmatprep.subr.mxu0 0.0
  %3801 = vmatpush1.msra.mxu0 0.0
  %3802 = vmatprep.subr.mxu0 0.0
  %3803 = vmatpush1.msra.mxu0 0.0
  %3804 = vmatprep.subr.mxu0 0.0
  %3805 = vmatpush1.msra.mxu0 0.0
  %3806 = vmatprep.subr.mxu0 0.0
  %3807 = vmatpush1.msra.mxu0 0.0
  %3808 = vmatprep.subr.mxu0 0.0
  %3809 = vmatpush1.msra.mxu0 0.0
  %3810 = vmatprep.subr.mxu0 0.0
  %3811 = vmatpush1.msra.mxu0 0.0
  %3812 = vmatprep.subr.mxu0 0.0
  %3813 = vmatpush1.msra.mxu0 0.0
  %3814 = vmatprep.subr.mxu0 0.0
  %3815 = vmatpush1.msra.mxu0 0.0
  %3816 = vmatprep.mubr.f32.mxu0 0.0
  %3817 = vmatmul.mubr.f32.gmra.mrb[0].mxu0 %v3750
  %v3818 = vpop.f32.mrb[0].mxu0
  %v3819 = vadd.f32 0.0, %v3818
  %v3820 = vpop.f32.mrb[0].mxu0
  %3821 = vdwg.mxu0
  %v3823 = vsel %vm3732, %v3738, 0
  %3825 = vmatprep.subr.mxu0 0.0
  %3826 = vmatpush1.msra.mxu0 %v3739
  %3827 = vmatprep.subr.mxu0 0.0
  %3828 = vmatpush1.msra.mxu0 %v3740
  %3829 = vmatprep.subr.mxu0 0.0
  %3830 = vmatpush1.msra.mxu0 %v3741
  %3831 = vmatprep.subr.mxu0 0.0
  %3832 = vmatpush1.msra.mxu0 %v3742
  %3833 = vmatprep.subr.mxu0 0.0
  %3834 = vmatpush1.msra.mxu0 0.0
  %3835 = vmatprep.subr.mxu0 0.0
  %3836 = vmatpush1.msra.mxu0 0.0
  %3837 = vmatprep.subr.mxu0 0.0
  %3838 = vmatpush1.msra.mxu0 0.0
  %3839 = vmatprep.subr.mxu0 0.0
  %3840 = vmatpush1.msra.mxu0 0.0
  %3841 = vmatprep.subr.mxu0 0.0
  %3842 = vmatpush1.msra.mxu0 0.0
  %3843 = vmatprep.subr.mxu0 0.0
  %3844 = vmatpush1.msra.mxu0 0.0
  %3845 = vmatprep.subr.mxu0 0.0
  %3846 = vmatpush1.msra.mxu0 0.0
  %3847 = vmatprep.subr.mxu0 0.0
  %3848 = vmatpush1.msra.mxu0 0.0
  %3849 = vmatprep.subr.mxu0 0.0
  %3850 = vmatpush1.msra.mxu0 0.0
  %3851 = vmatprep.subr.mxu0 0.0
  %3852 = vmatpush1.msra.mxu0 0.0
  %3853 = vmatprep.subr.mxu0 0.0
  %3854 = vmatpush1.msra.mxu0 0.0
  %3855 = vmatprep.subr.mxu0 0.0
  %3856 = vmatpush1.msra.mxu0 0.0
  %3857 = vmatprep.subr.mxu0 0.0
  %3858 = vmatpush1.msra.mxu0 0.0
  %3859 = vmatprep.subr.mxu0 0.0
  %3860 = vmatpush1.msra.mxu0 0.0
  %3861 = vmatprep.subr.mxu0 0.0
  %3862 = vmatpush1.msra.mxu0 0.0
  %3863 = vmatprep.subr.mxu0 0.0
  %3864 = vmatpush1.msra.mxu0 0.0
  %3865 = vmatprep.subr.mxu0 0.0
  %3866 = vmatpush1.msra.mxu0 0.0
  %3867 = vmatprep.subr.mxu0 0.0
  %3868 = vmatpush1.msra.mxu0 0.0
  %3869 = vmatprep.subr.mxu0 0.0
  %3870 = vmatpush1.msra.mxu0 0.0
  %3871 = vmatprep.subr.mxu0 0.0
  %3872 = vmatpush1.msra.mxu0 0.0
  %3873 = vmatprep.subr.mxu0 0.0
  %3874 = vmatpush1.msra.mxu0 0.0
  %3875 = vmatprep.subr.mxu0 0.0
  %3876 = vmatpush1.msra.mxu0 0.0
  %3877 = vmatprep.subr.mxu0 0.0
  %3878 = vmatpush1.msra.mxu0 0.0
  %3879 = vmatprep.subr.mxu0 0.0
  %3880 = vmatpush1.msra.mxu0 0.0
  %3881 = vmatprep.subr.mxu0 0.0
  %3882 = vmatpush1.msra.mxu0 0.0
  %3883 = vmatprep.subr.mxu0 0.0
  %3884 = vmatpush1.msra.mxu0 0.0
  %3885 = vmatprep.subr.mxu0 0.0
  %3886 = vmatpush1.msra.mxu0 0.0
  %3887 = vmatprep.subr.mxu0 0.0
  %3888 = vmatpush1.msra.mxu0 0.0
  %3889 = vmatprep.mubr.f32.mxu0 0.0
  %3890 = vmatmul.mubr.f32.gmra.mrb[0].mxu0 %v3823
  %v3891 = vpop.f32.mrb[0].mxu0
  %v3892 = vadd.f32 %v3819, %v3891
  %v3893 = vpop.f32.mrb[0].mxu0
  %3894 = vdwg.mxu0
  %v3895 = vld [vmem:[#allocation3 + $0x4] sm:$0xff]
  %s3896 = scalar_lea.vmem %s4, 64
  %v3897 = vld [vmem:[%s3896] sm:$0xff]
  %v3898 = vld [vmem:[%s3896 + $0x8] sm:$0xff]
  %v3899 = vld [vmem:[%s3896 + $0x10] sm:$0xff]
  %v3900 = vld [vmem:[%s3896 + $0x18] sm:$0xff]
  %v3902 = vsel %vm3732, %v3895, 0
  %3904 = vmatprep.subr.mxu0 0.0
  %3905 = vmatpush1.msra.mxu0 %v3897
  %3906 = vmatprep.subr.mxu0 0.0
  %3907 = vmatpush1.msra.mxu0 %v3898
  %3908 = vmatprep.subr.mxu0 0.0
  %3909 = vmatpush1.msra.mxu0 %v3899
  %3910 = vmatprep.subr.mxu0 0.0
  %3911 = vmatpush1.msra.mxu0 %v3900
  %3912 = vmatprep.subr.mxu0 0.0
  %3913 = vmatpush1.msra.mxu0 0.0
  %3914 = vmatprep.subr.mxu0 0.0
  %3915 = vmatpush1.msra.mxu0 0.0
  %3916 = vmatprep.subr.mxu0 0.0
  %3917 = vmatpush1.msra.mxu0 0.0
  %3918 = vmatprep.subr.mxu0 0.0
  %3919 = vmatpush1.msra.mxu0 0.0
  %3920 = vmatprep.subr.mxu0 0.0
  %3921 = vmatpush1.msra.mxu0 0.0
  %3922 = vmatprep.subr.mxu0 0.0
  %3923 = vmatpush1.msra.mxu0 0.0
  %3924 = vmatprep.subr.mxu0 0.0
  %3925 = vmatpush1.msra.mxu0 0.0
  %3926 = vmatprep.subr.mxu0 0.0
  %3927 = vmatpush1.msra.mxu0 0.0
  %3928 = vmatprep.subr.mxu0 0.0
  %3929 = vmatpush1.msra.mxu0 0.0
  %3930 = vmatprep.subr.mxu0 0.0
  %3931 = vmatpush1.msra.mxu0 0.0
  %3932 = vmatprep.subr.mxu0 0.0
  %3933 = vmatpush1.msra.mxu0 0.0
  %3934 = vmatprep.subr.mxu0 0.0
  %3935 = vmatpush1.msra.mxu0 0.0
  %3936 = vmatprep.subr.mxu0 0.0
  %3937 = vmatpush1.msra.mxu0 0.0
  %3938 = vmatprep.subr.mxu0 0.0
  %3939 = vmatpush1.msra.mxu0 0.0
  %3940 = vmatprep.subr.mxu0 0.0
  %3941 = vmatpush1.msra.mxu0 0.0
  %3942 = vmatprep.subr.mxu0 0.0
  %3943 = vmatpush1.msra.mxu0 0.0
  %3944 = vmatprep.subr.mxu0 0.0
  %3945 = vmatpush1.msra.mxu0 0.0
  %3946 = vmatprep.subr.mxu0 0.0
  %3947 = vmatpush1.msra.mxu0 0.0
  %3948 = vmatprep.subr.mxu0 0.0
  %3949 = vmatpush1.msra.mxu0 0.0
  %3950 = vmatprep.subr.mxu0 0.0
  %3951 = vmatpush1.msra.mxu0 0.0
  %3952 = vmatprep.subr.mxu0 0.0
  %3953 = vmatpush1.msra.mxu0 0.0
  %3954 = vmatprep.subr.mxu0 0.0
  %3955 = vmatpush1.msra.mxu0 0.0
  %3956 = vmatprep.subr.mxu0 0.0
  %3957 = vmatpush1.msra.mxu0 0.0
  %3958 = vmatprep.subr.mxu0 0.0
  %3959 = vmatpush1.msra.mxu0 0.0
  %3960 = vmatprep.subr.mxu0 0.0
  %3961 = vmatpush1.msra.mxu0 0.0
  %3962 = vmatprep.subr.mxu0 0.0
  %3963 = vmatpush1.msra.mxu0 0.0
  %3964 = vmatprep.subr.mxu0 0.0
  %3965 = vmatpush1.msra.mxu0 0.0
  %3966 = vmatprep.subr.mxu0 0.0
  %3967 = vmatpush1.msra.mxu0 0.0
  %3968 = vmatprep.mubr.f32.mxu0 0.0
  %3969 = vmatmul.mubr.f32.gmra.mrb[0].mxu0 %v3902
  %v3970 = vpop.f32.mrb[0].mxu0
  %v3971 = vadd.f32 0.0, %v3970
  %v3972 = vpop.f32.mrb[0].mxu0
  %3973 = vdwg.mxu0
  %v3974 = vadd.f32 %v3892, %v3971
  %v3975 = vld [vmem:[#allocation3 + $0x6] sm:$0xff]
  %s3976 = scalar_lea.vmem %s4, 96
  %v3977 = vld [vmem:[%s3976] sm:$0xff]
  %v3978 = vld [vmem:[%s3976 + $0x8] sm:$0xff]
  %v3979 = vld [vmem:[%s3976 + $0x10] sm:$0xff]
  %v3980 = vld [vmem:[%s3976 + $0x18] sm:$0xff]
  %v3982 = vsel %vm3732, %v3975, 0
  %3984 = vmatprep.subr.mxu0 0.0
  %3985 = vmatpush1.msra.mxu0 %v3977
  %3986 = vmatprep.subr.mxu0 0.0
  %3987 = vmatpush1.msra.mxu0 %v3978
  %3988 = vmatprep.subr.mxu0 0.0
  %3989 = vmatpush1.msra.mxu0 %v3979
  %3990 = vmatprep.subr.mxu0 0.0
  %3991 = vmatpush1.msra.mxu0 %v3980
  %3992 = vmatprep.subr.mxu0 0.0
  %3993 = vmatpush1.msra.mxu0 0.0
  %3994 = vmatprep.subr.mxu0 0.0
  %3995 = vmatpush1.msra.mxu0 0.0
  %3996 = vmatprep.subr.mxu0 0.0
  %3997 = vmatpush1.msra.mxu0 0.0
  %3998 = vmatprep.subr.mxu0 0.0
  %3999 = vmatpush1.msra.mxu0 0.0
  %4000 = vmatprep.subr.mxu0 0.0
  %4001 = vmatpush1.msra.mxu0 0.0
  %4002 = vmatprep.subr.mxu0 0.0
  %4003 = vmatpush1.msra.mxu0 0.0
  %4004 = vmatprep.subr.mxu0 0.0
  %4005 = vmatpush1.msra.mxu0 0.0
  %4006 = vmatprep.subr.mxu0 0.0
  %4007 = vmatpush1.msra.mxu0 0.0
  %4008 = vmatprep.subr.mxu0 0.0
  %4009 = vmatpush1.msra.mxu0 0.0
  %4010 = vmatprep.subr.mxu0 0.0
  %4011 = vmatpush1.msra.mxu0 0.0
  %4012 = vmatprep.subr.mxu0 0.0
  %4013 = vmatpush1.msra.mxu0 0.0
  %4014 = vmatprep.subr.mxu0 0.0
  %4015 = vmatpush1.msra.mxu0 0.0
  %4016 = vmatprep.subr.mxu0 0.0
  %4017 = vmatpush1.msra.mxu0 0.0
  %4018 = vmatprep.subr.mxu0 0.0
  %4019 = vmatpush1.msra.mxu0 0.0
  %4020 = vmatprep.subr.mxu0 0.0
  %4021 = vmatpush1.msra.mxu0 0.0
  %4022 = vmatprep.subr.mxu0 0.0
  %4023 = vmatpush1.msra.mxu0 0.0
  %4024 = vmatprep.subr.mxu0 0.0
  %4025 = vmatpush1.msra.mxu0 0.0
  %4026 = vmatprep.subr.mxu0 0.0
  %4027 = vmatpush1.msra.mxu0 0.0
  %4028 = vmatprep.subr.mxu0 0.0
  %4029 = vmatpush1.msra.mxu0 0.0
  %4030 = vmatprep.subr.mxu0 0.0
  %4031 = vmatpush1.msra.mxu0 0.0
  %4032 = vmatprep.subr.mxu0 0.0
  %4033 = vmatpush1.msra.mxu0 0.0
  %4034 = vmatprep.subr.mxu0 0.0
  %4035 = vmatpush1.msra.mxu0 0.0
  %4036 = vmatprep.subr.mxu0 0.0
  %4037 = vmatpush1.msra.mxu0 0.0
  %4038 = vmatprep.subr.mxu0 0.0
  %4039 = vmatpush1.msra.mxu0 0.0
  %4040 = vmatprep.subr.mxu0 0.0
  %4041 = vmatpush1.msra.mxu0 0.0
  %4042 = vmatprep.subr.mxu0 0.0
  %4043 = vmatpush1.msra.mxu0 0.0
  %4044 = vmatprep.subr.mxu0 0.0
  %4045 = vmatpush1.msra.mxu0 0.0
  %4046 = vmatprep.subr.mxu0 0.0
  %4047 = vmatpush1.msra.mxu0 0.0
  %4048 = vmatprep.mubr.f32.mxu0 0.0
  %4049 = vmatmul.mubr.f32.gmra.mrb[0].mxu0 %v3982
  %v4050 = vpop.f32.mrb[0].mxu0
  %v4051 = vadd.f32 0.0, %v4050
  %v4052 = vpop.f32.mrb[0].mxu0
  %4053 = vdwg.mxu0
  %v4054 = vadd.f32 %v3974, %v4051
  %v4055 = vld [vmem:[#allocation3 + $0x8] sm:$0xff]
  %s4056 = scalar_lea.vmem %s4, 128
  %v4057 = vld [vmem:[%s4056] sm:$0xff]
  %v4058 = vld [vmem:[%s4056 + $0x8] sm:$0xff]
  %v4059 = vld [vmem:[%s4056 + $0x10] sm:$0xff]
  %v4060 = vld [vmem:[%s4056 + $0x18] sm:$0xff]
  %v4062 = vsel %vm3732, %v4055, 0
  %4064 = vmatprep.subr.mxu0 0.0
  %4065 = vmatpush1.msra.mxu0 %v4057
  %4066 = vmatprep.subr.mxu0 0.0
  %4067 = vmatpush1.msra.mxu0 %v4058
  %4068 = vmatprep.subr.mxu0 0.0
  %4069 = vmatpush1.msra.mxu0 %v4059
  %4070 = vmatprep.subr.mxu0 0.0
  %4071 = vmatpush1.msra.mxu0 %v4060
  %4072 = vmatprep.subr.mxu0 0.0
  %4073 = vmatpush1.msra.mxu0 0.0
  %4074 = vmatprep.subr.mxu0 0.0
  %4075 = vmatpush1.msra.mxu0 0.0
  %4076 = vmatprep.subr.mxu0 0.0
  %4077 = vmatpush1.msra.mxu0 0.0
  %4078 = vmatprep.subr.mxu0 0.0
  %4079 = vmatpush1.msra.mxu0 0.0
  %4080 = vmatprep.subr.mxu0 0.0
  %4081 = vmatpush1.msra.mxu0 0.0
  %4082 = vmatprep.subr.mxu0 0.0
  %4083 = vmatpush1.msra.mxu0 0.0
  %4084 = vmatprep.subr.mxu0 0.0
  %4085 = vmatpush1.msra.mxu0 0.0
  %4086 = vmatprep.subr.mxu0 0.0
  %4087 = vmatpush1.msra.mxu0 0.0
  %4088 = vmatprep.subr.mxu0 0.0
  %4089 = vmatpush1.msra.mxu0 0.0
  %4090 = vmatprep.subr.mxu0 0.0
  %4091 = vmatpush1.msra.mxu0 0.0
  %4092 = vmatprep.subr.mxu0 0.0
  %4093 = vmatpush1.msra.mxu0 0.0
  %4094 = vmatprep.subr.mxu0 0.0
  %4095 = vmatpush1.msra.mxu0 0.0
  %4096 = vmatprep.subr.mxu0 0.0
  %4097 = vmatpush1.msra.mxu0 0.0
  %4098 = vmatprep.subr.mxu0 0.0
  %4099 = vmatpush1.msra.mxu0 0.0
  %4100 = vmatprep.subr.mxu0 0.0
  %4101 = vmatpush1.msra.mxu0 0.0
  %4102 = vmatprep.subr.mxu0 0.0
  %4103 = vmatpush1.msra.mxu0 0.0
  %4104 = vmatprep.subr.mxu0 0.0
  %4105 = vmatpush1.msra.mxu0 0.0
  %4106 = vmatprep.subr.mxu0 0.0
  %4107 = vmatpush1.msra.mxu0 0.0
  %4108 = vmatprep.subr.mxu0 0.0
  %4109 = vmatpush1.msra.mxu0 0.0
  %4110 = vmatprep.subr.mxu0 0.0
  %4111 = vmatpush1.msra.mxu0 0.0
  %4112 = vmatprep.subr.mxu0 0.0
  %4113 = vmatpush1.msra.mxu0 0.0
  %4114 = vmatprep.subr.mxu0 0.0
  %4115 = vmatpush1.msra.mxu0 0.0
  %4116 = vmatprep.subr.mxu0 0.0
  %4117 = vmatpush1.msra.mxu0 0.0
  %4118 = vmatprep.subr.mxu0 0.0
  %4119 = vmatpush1.msra.mxu0 0.0
  %4120 = vmatprep.subr.mxu0 0.0
  %4121 = vmatpush1.msra.mxu0 0.0
  %4122 = vmatprep.subr.mxu0 0.0
  %4123 = vmatpush1.msra.mxu0 0.0
  %4124 = vmatprep.subr.mxu0 0.0
  %4125 = vmatpush1.msra.mxu0 0.0
  %4126 = vmatprep.subr.mxu0 0.0
  %4127 = vmatpush1.msra.mxu0 0.0
  %4128 = vmatprep.mubr.f32.mxu0 0.0
  %4129 = vmatmul.mubr.f32.gmra.mrb[0].mxu0 %v4062
  %v4130 = vpop.f32.mrb[0].mxu0
  %v4131 = vadd.f32 0.0, %v4130
  %v4132 = vpop.f32.mrb[0].mxu0
  %4133 = vdwg.mxu0
  %v4134 = vadd.f32 %v4054, %v4131
  %v4135 = vld [vmem:[#allocation3 + $0xa] sm:$0xff]
  %s4136 = scalar_lea.vmem %s4, 160
  %v4137 = vld [vmem:[%s4136] sm:$0xff]
  %v4138 = vld [vmem:[%s4136 + $0x8] sm:$0xff]
  %v4139 = vld [vmem:[%s4136 + $0x10] sm:$0xff]
  %v4140 = vld [vmem:[%s4136 + $0x18] sm:$0xff]
  %v4142 = vsel %vm3732, %v4135, 0
  %4144 = vmatprep.subr.mxu0 0.0
  %4145 = vmatpush1.msra.mxu0 %v4137
  %4146 = vmatprep.subr.mxu0 0.0
  %4147 = vmatpush1.msra.mxu0 %v4138
  %4148 = vmatprep.subr.mxu0 0.0
  %4149 = vmatpush1.msra.mxu0 %v4139
  %4150 = vmatprep.subr.mxu0 0.0
  %4151 = vmatpush1.msra.mxu0 %v4140
  %4152 = vmatprep.subr.mxu0 0.0
  %4153 = vmatpush1.msra.mxu0 0.0
  %4154 = vmatprep.subr.mxu0 0.0
  %4155 = vmatpush1.msra.mxu0 0.0
  %4156 = vmatprep.subr.mxu0 0.0
  %4157 = vmatpush1.msra.mxu0 0.0
  %4158 = vmatprep.subr.mxu0 0.0
  %4159 = vmatpush1.msra.mxu0 0.0
  %4160 = vmatprep.subr.mxu0 0.0
  %4161 = vmatpush1.msra.mxu0 0.0
  %4162 = vmatprep.subr.mxu0 0.0
  %4163 = vmatpush1.msra.mxu0 0.0
  %4164 = vmatprep.subr.mxu0 0.0
  %4165 = vmatpush1.msra.mxu0 0.0
  %4166 = vmatprep.subr.mxu0 0.0
  %4167 = vmatpush1.msra.mxu0 0.0
  %4168 = vmatprep.subr.mxu0 0.0
  %4169 = vmatpush1.msra.mxu0 0.0
  %4170 = vmatprep.subr.mxu0 0.0
  %4171 = vmatpush1.msra.mxu0 0.0
  %4172 = vmatprep.subr.mxu0 0.0
  %4173 = vmatpush1.msra.mxu0 0.0
  %4174 = vmatprep.subr.mxu0 0.0
  %4175 = vmatpush1.msra.mxu0 0.0
  %4176 = vmatprep.subr.mxu0 0.0
  %4177 = vmatpush1.msra.mxu0 0.0
  %4178 = vmatprep.subr.mxu0 0.0
  %4179 = vmatpush1.msra.mxu0 0.0
  %4180 = vmatprep.subr.mxu0 0.0
  %4181 = vmatpush1.msra.mxu0 0.0
  %4182 = vmatprep.subr.mxu0 0.0
  %4183 = vmatpush1.msra.mxu0 0.0
  %4184 = vmatprep.subr.mxu0 0.0
  %4185 = vmatpush1.msra.mxu0 0.0
  %4186 = vmatprep.subr.mxu0 0.0
  %4187 = vmatpush1.msra.mxu0 0.0
  %4188 = vmatprep.subr.mxu0 0.0
  %4189 = vmatpush1.msra.mxu0 0.0
  %4190 = vmatprep.subr.mxu0 0.0
  %4191 = vmatpush1.msra.mxu0 0.0
  %4192 = vmatprep.subr.mxu0 0.0
  %4193 = vmatpush1.msra.mxu0 0.0
  %4194 = vmatprep.subr.mxu0 0.0
  %4195 = vmatpush1.msra.mxu0 0.0
  %4196 = vmatprep.subr.mxu0 0.0
  %4197 = vmatpush1.msra.mxu0 0.0
  %4198 = vmatprep.subr.mxu0 0.0
  %4199 = vmatpush1.msra.mxu0 0.0
  %4200 = vmatprep.subr.mxu0 0.0
  %4201 = vmatpush1.msra.mxu0 0.0
  %4202 = vmatprep.subr.mxu0 0.0
  %4203 = vmatpush1.msra.mxu0 0.0
  %4204 = vmatprep.subr.mxu0 0.0
  %4205 = vmatpush1.msra.mxu0 0.0
  %4206 = vmatprep.subr.mxu0 0.0
  %4207 = vmatpush1.msra.mxu0 0.0
  %4208 = vmatprep.mubr.f32.mxu0 0.0
  %4209 = vmatmul.mubr.f32.gmra.mrb[0].mxu0 %v4142
  %v4210 = vpop.f32.mrb[0].mxu0
  %v4211 = vadd.f32 0.0, %v4210
  %v4212 = vpop.f32.mrb[0].mxu0
  %4213 = vdwg.mxu0
  %v4214 = vadd.f32 %v4134, %v4211
  %v4215 = vld [vmem:[#allocation3 + $0xc] sm:$0xff]
  %s4216 = scalar_lea.vmem %s4, 192
  %v4217 = vld [vmem:[%s4216] sm:$0xff]
  %v4218 = vld [vmem:[%s4216 + $0x8] sm:$0xff]
  %v4219 = vld [vmem:[%s4216 + $0x10] sm:$0xff]
  %v4220 = vld [vmem:[%s4216 + $0x18] sm:$0xff]
  %v4222 = vsel %vm3732, %v4215, 0
  %4224 = vmatprep.subr.mxu0 0.0
  %4225 = vmatpush1.msra.mxu0 %v4217
  %4226 = vmatprep.subr.mxu0 0.0
  %4227 = vmatpush1.msra.mxu0 %v4218
  %4228 = vmatprep.subr.mxu0 0.0
  %4229 = vmatpush1.msra.mxu0 %v4219
  %4230 = vmatprep.subr.mxu0 0.0
  %4231 = vmatpush1.msra.mxu0 %v4220
  %4232 = vmatprep.subr.mxu0 0.0
  %4233 = vmatpush1.msra.mxu0 0.0
  %4234 = vmatprep.subr.mxu0 0.0
  %4235 = vmatpush1.msra.mxu0 0.0
  %4236 = vmatprep.subr.mxu0 0.0
  %4237 = vmatpush1.msra.mxu0 0.0
  %4238 = vmatprep.subr.mxu0 0.0
  %4239 = vmatpush1.msra.mxu0 0.0
  %4240 = vmatprep.subr.mxu0 0.0
  %4241 = vmatpush1.msra.mxu0 0.0
  %4242 = vmatprep.subr.mxu0 0.0
  %4243 = vmatpush1.msra.mxu0 0.0
  %4244 = vmatprep.subr.mxu0 0.0
  %4245 = vmatpush1.msra.mxu0 0.0
  %4246 = vmatprep.subr.mxu0 0.0
  %4247 = vmatpush1.msra.mxu0 0.0
  %4248 = vmatprep.subr.mxu0 0.0
  %4249 = vmatpush1.msra.mxu0 0.0
  %4250 = vmatprep.subr.mxu0 0.0
  %4251 = vmatpush1.msra.mxu0 0.0
  %4252 = vmatprep.subr.mxu0 0.0
  %4253 = vmatpush1.msra.mxu0 0.0
  %4254 = vmatprep.subr.mxu0 0.0
  %4255 = vmatpush1.msra.mxu0 0.0
  %4256 = vmatprep.subr.mxu0 0.0
  %4257 = vmatpush1.msra.mxu0 0.0
  %4258 = vmatprep.subr.mxu0 0.0
  %4259 = vmatpush1.msra.mxu0 0.0
  %4260 = vmatprep.subr.mxu0 0.0
  %4261 = vmatpush1.msra.mxu0 0.0
  %4262 = vmatprep.subr.mxu0 0.0
  %4263 = vmatpush1.msra.mxu0 0.0
  %4264 = vmatprep.subr.mxu0 0.0
  %4265 = vmatpush1.msra.mxu0 0.0
  %4266 = vmatprep.subr.mxu0 0.0
  %4267 = vmatpush1.msra.mxu0 0.0
  %4268 = vmatprep.subr.mxu0 0.0
  %4269 = vmatpush1.msra.mxu0 0.0
  %4270 = vmatprep.subr.mxu0 0.0
  %4271 = vmatpush1.msra.mxu0 0.0
  %4272 = vmatprep.subr.mxu0 0.0
  %4273 = vmatpush1.msra.mxu0 0.0
  %4274 = vmatprep.subr.mxu0 0.0
  %4275 = vmatpush1.msra.mxu0 0.0
  %4276 = vmatprep.subr.mxu0 0.0
  %4277 = vmatpush1.msra.mxu0 0.0
  %4278 = vmatprep.subr.mxu0 0.0
  %4279 = vmatpush1.msra.mxu0 0.0
  %4280 = vmatprep.subr.mxu0 0.0
  %4281 = vmatpush1.msra.mxu0 0.0
  %4282 = vmatprep.subr.mxu0 0.0
  %4283 = vmatpush1.msra.mxu0 0.0
  %4284 = vmatprep.subr.mxu0 0.0
  %4285 = vmatpush1.msra.mxu0 0.0
  %4286 = vmatprep.subr.mxu0 0.0
  %4287 = vmatpush1.msra.mxu0 0.0
  %4288 = vmatprep.mubr.f32.mxu0 0.0
  %4289 = vmatmul.mubr.f32.gmra.mrb[0].mxu0 %v4222
  %v4290 = vpop.f32.mrb[0].mxu0
  %v4291 = vadd.f32 0.0, %v4290
  %v4292 = vpop.f32.mrb[0].mxu0
  %4293 = vdwg.mxu0
  %v4294 = vadd.f32 %v4214, %v4291
  %v4295 = vld [vmem:[#allocation3 + $0xe] sm:$0xff]
  %s4296 = scalar_lea.vmem %s4, 224
  %v4297 = vld [vmem:[%s4296] sm:$0xff]
  %v4298 = vld [vmem:[%s4296 + $0x8] sm:$0xff]
  %v4299 = vld [vmem:[%s4296 + $0x10] sm:$0xff]
  %v4300 = vld [vmem:[%s4296 + $0x18] sm:$0xff]
  %v4302 = vsel %vm3732, %v4295, 0
  %4304 = vmatprep.subr.mxu0 0.0
  %4305 = vmatpush1.msra.mxu0 %v4297
  %4306 = vmatprep.subr.mxu0 0.0
  %4307 = vmatpush1.msra.mxu0 %v4298
  %4308 = vmatprep.subr.mxu0 0.0
  %4309 = vmatpush1.msra.mxu0 %v4299
  %4310 = vmatprep.subr.mxu0 0.0
  %4311 = vmatpush1.msra.mxu0 %v4300
  %4312 = vmatprep.subr.mxu0 0.0
  %4313 = vmatpush1.msra.mxu0 0.0
  %4314 = vmatprep.subr.mxu0 0.0
  %4315 = vmatpush1.msra.mxu0 0.0
  %4316 = vmatprep.subr.mxu0 0.0
  %4317 = vmatpush1.msra.mxu0 0.0
  %4318 = vmatprep.subr.mxu0 0.0
  %4319 = vmatpush1.msra.mxu0 0.0
  %4320 = vmatprep.subr.mxu0 0.0
  %4321 = vmatpush1.msra.mxu0 0.0
  %4322 = vmatprep.subr.mxu0 0.0
  %4323 = vmatpush1.msra.mxu0 0.0
  %4324 = vmatprep.subr.mxu0 0.0
  %4325 = vmatpush1.msra.mxu0 0.0
  %4326 = vmatprep.subr.mxu0 0.0
  %4327 = vmatpush1.msra.mxu0 0.0
  %4328 = vmatprep.subr.mxu0 0.0
  %4329 = vmatpush1.msra.mxu0 0.0
  %4330 = vmatprep.subr.mxu0 0.0
  %4331 = vmatpush1.msra.mxu0 0.0
  %4332 = vmatprep.subr.mxu0 0.0
  %4333 = vmatpush1.msra.mxu0 0.0
  %4334 = vmatprep.subr.mxu0 0.0
  %4335 = vmatpush1.msra.mxu0 0.0
  %4336 = vmatprep.subr.mxu0 0.0
  %4337 = vmatpush1.msra.mxu0 0.0
  %4338 = vmatprep.subr.mxu0 0.0
  %4339 = vmatpush1.msra.mxu0 0.0
  %4340 = vmatprep.subr.mxu0 0.0
  %4341 = vmatpush1.msra.mxu0 0.0
  %4342 = vmatprep.subr.mxu0 0.0
  %4343 = vmatpush1.msra.mxu0 0.0
  %4344 = vmatprep.subr.mxu0 0.0
  %4345 = vmatpush1.msra.mxu0 0.0
  %4346 = vmatprep.subr.mxu0 0.0
  %4347 = vmatpush1.msra.mxu0 0.0
  %4348 = vmatprep.subr.mxu0 0.0
  %4349 = vmatpush1.msra.mxu0 0.0
  %4350 = vmatprep.subr.mxu0 0.0
  %4351 = vmatpush1.msra.mxu0 0.0
  %4352 = vmatprep.subr.mxu0 0.0
  %4353 = vmatpush1.msra.mxu0 0.0
  %4354 = vmatprep.subr.mxu0 0.0
  %4355 = vmatpush1.msra.mxu0 0.0
  %4356 = vmatprep.subr.mxu0 0.0
  %4357 = vmatpush1.msra.mxu0 0.0
  %4358 = vmatprep.subr.mxu0 0.0
  %4359 = vmatpush1.msra.mxu0 0.0
  %4360 = vmatprep.subr.mxu0 0.0
  %4361 = vmatpush1.msra.mxu0 0.0
  %4362 = vmatprep.subr.mxu0 0.0
  %4363 = vmatpush1.msra.mxu0 0.0
  %4364 = vmatprep.subr.mxu0 0.0
  %4365 = vmatpush1.msra.mxu0 0.0
  %4366 = vmatprep.subr.mxu0 0.0
  %4367 = vmatpush1.msra.mxu0 0.0
  %4368 = vmatprep.mubr.f32.mxu0 0.0
  %4369 = vmatmul.mubr.f32.gmra.mrb[0].mxu0 %v4302
  %v4370 = vpop.f32.mrb[0].mxu0
  %v4371 = vadd.f32 0.0, %v4370
  %v4372 = vpop.f32.mrb[0].mxu0
  %4373 = vdwg.mxu0
  %v4374 = vadd.f32 %v4294, %v4371
  %v4375 = vld [vmem:[#allocation3 + $0x10] sm:$0xff]
  %s4376 = scalar_lea.vmem %s4, 256
  %v4377 = vld [vmem:[%s4376] sm:$0xff]
  %v4378 = vld [vmem:[%s4376 + $0x8] sm:$0xff]
  %v4379 = vld [vmem:[%s4376 + $0x10] sm:$0xff]
  %v4380 = vld [vmem:[%s4376 + $0x18] sm:$0xff]
  %v4382 = vsel %vm3732, %v4375, 0
  %4384 = vmatprep.subr.mxu0 0.0
  %4385 = vmatpush1.msra.mxu0 %v4377
  %4386 = vmatprep.subr.mxu0 0.0
  %4387 = vmatpush1.msra.mxu0 %v4378
  %4388 = vmatprep.subr.mxu0 0.0
  %4389 = vmatpush1.msra.mxu0 %v4379
  %4390 = vmatprep.subr.mxu0 0.0
  %4391 = vmatpush1.msra.mxu0 %v4380
  %4392 = vmatprep.subr.mxu0 0.0
  %4393 = vmatpush1.msra.mxu0 0.0
  %4394 = vmatprep.subr.mxu0 0.0
  %4395 = vmatpush1.msra.mxu0 0.0
  %4396 = vmatprep.subr.mxu0 0.0
  %4397 = vmatpush1.msra.mxu0 0.0
  %4398 = vmatprep.subr.mxu0 0.0
  %4399 = vmatpush1.msra.mxu0 0.0
  %4400 = vmatprep.subr.mxu0 0.0
  %4401 = vmatpush1.msra.mxu0 0.0
  %4402 = vmatprep.subr.mxu0 0.0
  %4403 = vmatpush1.msra.mxu0 0.0
  %4404 = vmatprep.subr.mxu0 0.0
  %4405 = vmatpush1.msra.mxu0 0.0
  %4406 = vmatprep.subr.mxu0 0.0
  %4407 = vmatpush1.msra.mxu0 0.0
  %4408 = vmatprep.subr.mxu0 0.0
  %4409 = vmatpush1.msra.mxu0 0.0
  %4410 = vmatprep.subr.mxu0 0.0
  %4411 = vmatpush1.msra.mxu0 0.0
  %4412 = vmatprep.subr.mxu0 0.0
  %4413 = vmatpush1.msra.mxu0 0.0
  %4414 = vmatprep.subr.mxu0 0.0
  %4415 = vmatpush1.msra.mxu0 0.0
  %4416 = vmatprep.subr.mxu0 0.0
  %4417 = vmatpush1.msra.mxu0 0.0
  %4418 = vmatprep.subr.mxu0 0.0
  %4419 = vmatpush1.msra.mxu0 0.0
  %4420 = vmatprep.subr.mxu0 0.0
  %4421 = vmatpush1.msra.mxu0 0.0
  %4422 = vmatprep.subr.mxu0 0.0
  %4423 = vmatpush1.msra.mxu0 0.0
  %4424 = vmatprep.subr.mxu0 0.0
  %4425 = vmatpush1.msra.mxu0 0.0
  %4426 = vmatprep.subr.mxu0 0.0
  %4427 = vmatpush1.msra.mxu0 0.0
  %4428 = vmatprep.subr.mxu0 0.0
  %4429 = vmatpush1.msra.mxu0 0.0
  %4430 = vmatprep.subr.mxu0 0.0
  %4431 = vmatpush1.msra.mxu0 0.0
  %4432 = vmatprep.subr.mxu0 0.0
  %4433 = vmatpush1.msra.mxu0 0.0
  %4434 = vmatprep.subr.mxu0 0.0
  %4435 = vmatpush1.msra.mxu0 0.0
  %4436 = vmatprep.subr.mxu0 0.0
  %4437 = vmatpush1.msra.mxu0 0.0
  %4438 = vmatprep.subr.mxu0 0.0
  %4439 = vmatpush1.msra.mxu0 0.0
  %4440 = vmatprep.subr.mxu0 0.0
  %4441 = vmatpush1.msra.mxu0 0.0
  %4442 = vmatprep.subr.mxu0 0.0
  %4443 = vmatpush1.msra.mxu0 0.0
  %4444 = vmatprep.subr.mxu0 0.0
  %4445 = vmatpush1.msra.mxu0 0.0
  %4446 = vmatprep.subr.mxu0 0.0
  %4447 = vmatpush1.msra.mxu0 0.0
  %4448 = vmatprep.mubr.f32.mxu0 0.0
  %4449 = vmatmul.mubr.f32.gmra.mrb[0].mxu0 %v4382
  %v4450 = vpop.f32.mrb[0].mxu0
  %v4451 = vadd.f32 0.0, %v4450
  %v4452 = vpop.f32.mrb[0].mxu0
  %4453 = vdwg.mxu0
  %v4454 = vadd.f32 %v4374, %v4451
  %v4455 = vld [vmem:[#allocation3 + $0x12] sm:$0xff]
  %s4456 = scalar_lea.vmem %s4, 288
  %v4457 = vld [vmem:[%s4456] sm:$0xff]
  %v4458 = vld [vmem:[%s4456 + $0x8] sm:$0xff]
  %v4459 = vld [vmem:[%s4456 + $0x10] sm:$0xff]
  %v4460 = vld [vmem:[%s4456 + $0x18] sm:$0xff]
  %v4462 = vsel %vm3732, %v4455, 0
  %4464 = vmatprep.subr.mxu0 0.0
  %4465 = vmatpush1.msra.mxu0 %v4457
  %4466 = vmatprep.subr.mxu0 0.0
  %4467 = vmatpush1.msra.mxu0 %v4458
  %4468 = vmatprep.subr.mxu0 0.0
  %4469 = vmatpush1.msra.mxu0 %v4459
  %4470 = vmatprep.subr.mxu0 0.0
  %4471 = vmatpush1.msra.mxu0 %v4460
  %4472 = vmatprep.subr.mxu0 0.0
  %4473 = vmatpush1.msra.mxu0 0.0
  %4474 = vmatprep.subr.mxu0 0.0
  %4475 = vmatpush1.msra.mxu0 0.0
  %4476 = vmatprep.subr.mxu0 0.0
  %4477 = vmatpush1.msra.mxu0 0.0
  %4478 = vmatprep.subr.mxu0 0.0
  %4479 = vmatpush1.msra.mxu0 0.0
  %4480 = vmatprep.subr.mxu0 0.0
  %4481 = vmatpush1.msra.mxu0 0.0
  %4482 = vmatprep.subr.mxu0 0.0
  %4483 = vmatpush1.msra.mxu0 0.0
  %4484 = vmatprep.subr.mxu0 0.0
  %4485 = vmatpush1.msra.mxu0 0.0
  %4486 = vmatprep.subr.mxu0 0.0
  %4487 = vmatpush1.msra.mxu0 0.0
  %4488 = vmatprep.subr.mxu0 0.0
  %4489 = vmatpush1.msra.mxu0 0.0
  %4490 = vmatprep.subr.mxu0 0.0
  %4491 = vmatpush1.msra.mxu0 0.0
  %4492 = vmatprep.subr.mxu0 0.0
  %4493 = vmatpush1.msra.mxu0 0.0
  %4494 = vmatprep.subr.mxu0 0.0
  %4495 = vmatpush1.msra.mxu0 0.0
  %4496 = vmatprep.subr.mxu0 0.0
  %4497 = vmatpush1.msra.mxu0 0.0
  %4498 = vmatprep.subr.mxu0 0.0
  %4499 = vmatpush1.msra.mxu0 0.0
  %4500 = vmatprep.subr.mxu0 0.0
  %4501 = vmatpush1.msra.mxu0 0.0
  %4502 = vmatprep.subr.mxu0 0.0
  %4503 = vmatpush1.msra.mxu0 0.0
  %4504 = vmatprep.subr.mxu0 0.0
  %4505 = vmatpush1.msra.mxu0 0.0
  %4506 = vmatprep.subr.mxu0 0.0
  %4507 = vmatpush1.msra.mxu0 0.0
  %4508 = vmatprep.subr.mxu0 0.0
  %4509 = vmatpush1.msra.mxu0 0.0
  %4510 = vmatprep.subr.mxu0 0.0
  %4511 = vmatpush1.msra.mxu0 0.0
  %4512 = vmatprep.subr.mxu0 0.0
  %4513 = vmatpush1.msra.mxu0 0.0
  %4514 = vmatprep.subr.mxu0 0.0
  %4515 = vmatpush1.msra.mxu0 0.0
  %4516 = vmatprep.subr.mxu0 0.0
  %4517 = vmatpush1.msra.mxu0 0.0
  %4518 = vmatprep.subr.mxu0 0.0
  %4519 = vmatpush1.msra.mxu0 0.0
  %4520 = vmatprep.subr.mxu0 0.0
  %4521 = vmatpush1.msra.mxu0 0.0
  %4522 = vmatprep.subr.mxu0 0.0
  %4523 = vmatpush1.msra.mxu0 0.0
  %4524 = vmatprep.subr.mxu0 0.0
  %4525 = vmatpush1.msra.mxu0 0.0
  %4526 = vmatprep.subr.mxu0 0.0
  %4527 = vmatpush1.msra.mxu0 0.0
  %4528 = vmatprep.mubr.f32.mxu0 0.0
  %4529 = vmatmul.mubr.f32.gmra.mrb[0].mxu0 %v4462
  %v4530 = vpop.f32.mrb[0].mxu0
  %v4531 = vadd.f32 0.0, %v4530
  %v4532 = vpop.f32.mrb[0].mxu0
  %4533 = vdwg.mxu0
  %v4534 = vadd.f32 %v4454, %v4531
  %v4535 = vlaneseq
  %v4536 = vshrl.u32 %v4535, 7
  %v4537 = vsub.s32 0, %v4536
  %v4538 = vrot.slane %v31, %v4537
  %v4539 = vadd.f32 %v4534, %v4538
  %v4540 = vld [vmem:[%s1] sm:$0x3]
  %v4541 = vld [vmem:[%s5] sm:$0xff]
  %v4542 = vld [vmem:[%s5 + $0x8] sm:$0xff]
  %v4543 = vld [vmem:[%s5 + $0x10] sm:$0xff]
  %v4544 = vld [vmem:[%s5 + $0x18] sm:$0xff]
  %v4545 = vlaneseq
  %v4546 = vshrl.u32 %v4545, 7
  %v4547 = vsub.s32 0, %v4546
  %v4548 = vrot.slane %v32, %v4547
  %v4550 = vsel %vm3732, %v4540, 0
  %4552 = vmatprep.subr.mxu0 0.0
  %4553 = vmatpush1.msra.mxu0 %v4541
  %4554 = vmatprep.subr.mxu0 0.0
  %4555 = vmatpush1.msra.mxu0 %v4542
  %4556 = vmatprep.subr.mxu0 0.0
  %4557 = vmatpush1.msra.mxu0 %v4543
  %4558 = vmatprep.subr.mxu0 0.0
  %4559 = vmatpush1.msra.mxu0 %v4544
  %4560 = vmatprep.subr.mxu0 0.0
  %4561 = vmatpush1.msra.mxu0 0.0
  %4562 = vmatprep.subr.mxu0 0.0
  %4563 = vmatpush1.msra.mxu0 0.0
  %4564 = vmatprep.subr.mxu0 0.0
  %4565 = vmatpush1.msra.mxu0 0.0
  %4566 = vmatprep.subr.mxu0 0.0
  %4567 = vmatpush1.msra.mxu0 0.0
  %4568 = vmatprep.subr.mxu0 0.0
  %4569 = vmatpush1.msra.mxu0 0.0
  %4570 = vmatprep.subr.mxu0 0.0
  %4571 = vmatpush1.msra.mxu0 0.0
  %4572 = vmatprep.subr.mxu0 0.0
  %4573 = vmatpush1.msra.mxu0 0.0
  %4574 = vmatprep.subr.mxu0 0.0
  %4575 = vmatpush1.msra.mxu0 0.0
  %4576 = vmatprep.subr.mxu0 0.0
  %4577 = vmatpush1.msra.mxu0 0.0
  %4578 = vmatprep.subr.mxu0 0.0
  %4579 = vmatpush1.msra.mxu0 0.0
  %4580 = vmatprep.subr.mxu0 0.0
  %4581 = vmatpush1.msra.mxu0 0.0
  %4582 = vmatprep.subr.mxu0 0.0
  %4583 = vmatpush1.msra.mxu0 0.0
  %4584 = vmatprep.subr.mxu0 0.0
  %4585 = vmatpush1.msra.mxu0 0.0
  %4586 = vmatprep.subr.mxu0 0.0
  %4587 = vmatpush1.msra.mxu0 0.0
  %4588 = vmatprep.subr.mxu0 0.0
  %4589 = vmatpush1.msra.mxu0 0.0
  %4590 = vmatprep.subr.mxu0 0.0
  %4591 = vmatpush1.msra.mxu0 0.0
  %4592 = vmatprep.subr.mxu0 0.0
  %4593 = vmatpush1.msra.mxu0 0.0
  %4594 = vmatprep.subr.mxu0 0.0
  %4595 = vmatpush1.msra.mxu0 0.0
  %4596 = vmatprep.subr.mxu0 0.0
  %4597 = vmatpush1.msra.mxu0 0.0
  %4598 = vmatprep.subr.mxu0 0.0
  %4599 = vmatpush1.msra.mxu0 0.0
  %4600 = vmatprep.subr.mxu0 0.0
  %4601 = vmatpush1.msra.mxu0 0.0
  %4602 = vmatprep.subr.mxu0 0.0
  %4603 = vmatpush1.msra.mxu0 0.0
  %4604 = vmatprep.subr.mxu0 0.0
  %4605 = vmatpush1.msra.mxu0 0.0
  %4606 = vmatprep.subr.mxu0 0.0
  %4607 = vmatpush1.msra.mxu0 0.0
  %4608 = vmatprep.subr.mxu0 0.0
  %4609 = vmatpush1.msra.mxu0 0.0
  %4610 = vmatprep.subr.mxu0 0.0
  %4611 = vmatpush1.msra.mxu0 0.0
  %4612 = vmatprep.subr.mxu0 0.0
  %4613 = vmatpush1.msra.mxu0 0.0
  %4614 = vmatprep.subr.mxu0 0.0
  %4615 = vmatpush1.msra.mxu0 0.0
  %4616 = vmatprep.mubr.f32.mxu0 0.0
  %4617 = vmatmul.mubr.f32.gmra.mrb[0].mxu0 %v4550
  %v4618 = vpop.f32.mrb[0].mxu0
  %v4619 = vadd.f32 %v4548, %v4618
  %v4620 = vpop.f32.mrb[0].mxu0
  %4621 = vdwg.mxu0
  %v4622 = vld [vmem:[%s6] sm:$0xff]
  %v4623 = vld [vmem:[%s6 + $0x8] sm:$0xff]
  %vm4624 = vcmask 130048
  %v4626 = vsel %vm4624, %v4619, 0
  %4628 = vmatprep.subr.mxu0 0.0
  %4629 = vmatpush1.msra.mxu0 %v4622
  %4630 = vmatprep.subr.mxu0 0.0
  %4631 = vmatpush1.msra.mxu0 %v4623
  %4632 = vmatprep.subr.mxu0 0.0
  %4633 = vmatpush1.msra.mxu0 0.0
  %4634 = vmatprep.subr.mxu0 0.0
  %4635 = vmatpush1.msra.mxu0 0.0
  %4636 = vmatprep.subr.mxu0 0.0
  %4637 = vmatpush1.msra.mxu0 0.0
  %4638 = vmatprep.subr.mxu0 0.0
  %4639 = vmatpush1.msra.mxu0 0.0
  %4640 = vmatprep.subr.mxu0 0.0
  %4641 = vmatpush1.msra.mxu0 0.0
  %4642 = vmatprep.subr.mxu0 0.0
  %4643 = vmatpush1.msra.mxu0 0.0
  %4644 = vmatprep.subr.mxu0 0.0
  %4645 = vmatpush1.msra.mxu0 0.0
  %4646 = vmatprep.subr.mxu0 0.0
  %4647 = vmatpush1.msra.mxu0 0.0
  %4648 = vmatprep.subr.mxu0 0.0
  %4649 = vmatpush1.msra.mxu0 0.0
  %4650 = vmatprep.subr.mxu0 0.0
  %4651 = vmatpush1.msra.mxu0 0.0
  %4652 = vmatprep.subr.mxu0 0.0
  %4653 = vmatpush1.msra.mxu0 0.0
  %4654 = vmatprep.subr.mxu0 0.0
  %4655 = vmatpush1.msra.mxu0 0.0
  %4656 = vmatprep.subr.mxu0 0.0
  %4657 = vmatpush1.msra.mxu0 0.0
  %4658 = vmatprep.subr.mxu0 0.0
  %4659 = vmatpush1.msra.mxu0 0.0
  %4660 = vmatprep.subr.mxu0 0.0
  %4661 = vmatpush1.msra.mxu0 0.0
  %4662 = vmatprep.subr.mxu0 0.0
  %4663 = vmatpush1.msra.mxu0 0.0
  %4664 = vmatprep.subr.mxu0 0.0
  %4665 = vmatpush1.msra.mxu0 0.0
  %4666 = vmatprep.subr.mxu0 0.0
  %4667 = vmatpush1.msra.mxu0 0.0
  %4668 = vmatprep.subr.mxu0 0.0
  %4669 = vmatpush1.msra.mxu0 0.0
  %4670 = vmatprep.subr.mxu0 0.0
  %4671 = vmatpush1.msra.mxu0 0.0
  %4672 = vmatprep.subr.mxu0 0.0
  %4673 = vmatpush1.msra.mxu0 0.0
  %4674 = vmatprep.subr.mxu0 0.0
  %4675 = vmatpush1.msra.mxu0 0.0
  %4676 = vmatprep.subr.mxu0 0.0
  %4677 = vmatpush1.msra.mxu0 0.0
  %4678 = vmatprep.subr.mxu0 0.0
  %4679 = vmatpush1.msra.mxu0 0.0
  %4680 = vmatprep.subr.mxu0 0.0
  %4681 = vmatpush1.msra.mxu0 0.0
  %4682 = vmatprep.subr.mxu0 0.0
  %4683 = vmatpush1.msra.mxu0 0.0
  %4684 = vmatprep.subr.mxu0 0.0
  %4685 = vmatpush1.msra.mxu0 0.0
  %4686 = vmatprep.subr.mxu0 0.0
  %4687 = vmatpush1.msra.mxu0 0.0
  %4688 = vmatprep.subr.mxu0 0.0
  %4689 = vmatpush1.msra.mxu0 0.0
  %4690 = vmatprep.subr.mxu0 0.0
  %4691 = vmatpush1.msra.mxu0 0.0
  %4692 = vmatprep.mubr.f32.mxu0 0.0
  %4693 = vmatmul.mubr.f32.gmra.mrb[0].mxu0 %v4626
  %v4694 = vpop.f32.mrb[0].mxu0
  %v4695 = vadd.f32 0.0, %v4694
  %v4696 = vpop.f32.mrb[0].mxu0
  %4697 = vdwg.mxu0
  %v4698 = vadd.f32 %v4539, %v4695
  %v4699 = vxor.u32 %v4698, 2147483648
  %v4700 = vmul.f32 %v4699, 1.442695
  %v4701 = vpow.pop %v4700
  %v4702 = vadd.f32 %v4701, 1.0
  %v4703 = vrcp.pop %v4702
  %v4704 = vmul.f32 1.0, %v4703
  %v4705 = vtanh.pop %v4698
  %v4706 = vmul.f32 %v4704, %v4619
  %4708 = vrot.lane.b32.xlu0 %v4705, 96
  %v4709 = vpop.permute.xlu0 %4708
  %v4711 = vmul.f32 %v4704, %v4709
  %4713 = vrot.lane.b32.xlu0 %v4711, 16
  %v4714 = vpop.permute.xlu0 %4713
  %v4716 = vadd.f32 %v4706, %v4714
  %v4717 = vtanh.pop %v4716
  %4719 = vrot.lane.b32.xlu0 %v4717, 32
  %v4720 = vpop.permute.xlu0 %4719
  %v4722 = vmul.f32 %v4704, %v4720
  %4724 = vrot.lane.b32.xlu0 %v4722, 80
  %v4725 = vpop.permute.xlu0 %4724
  %v4726 = vsel %vm4624, %v4725, 0
  %4728 = vmatprep.subr.mxu0 0.0
  %4729 = vmatpush1.msra.mxu0 %v4622
  %4730 = vmatprep.subr.mxu0 0.0
  %4731 = vmatpush1.msra.mxu0 %v4623
  %4732 = vmatprep.subr.mxu0 0.0
  %4733 = vmatpush1.msra.mxu0 0.0
  %4734 = vmatprep.subr.mxu0 0.0
  %4735 = vmatpush1.msra.mxu0 0.0
  %4736 = vmatprep.subr.mxu0 0.0
  %4737 = vmatpush1.msra.mxu0 0.0
  %4738 = vmatprep.subr.mxu0 0.0
  %4739 = vmatpush1.msra.mxu0 0.0
  %4740 = vmatprep.subr.mxu0 0.0
  %4741 = vmatpush1.msra.mxu0 0.0
  %4742 = vmatprep.subr.mxu0 0.0
  %4743 = vmatpush1.msra.mxu0 0.0
  %4744 = vmatprep.subr.mxu0 0.0
  %4745 = vmatpush1.msra.mxu0 0.0
  %4746 = vmatprep.subr.mxu0 0.0
  %4747 = vmatpush1.msra.mxu0 0.0
  %4748 = vmatprep.subr.mxu0 0.0
  %4749 = vmatpush1.msra.mxu0 0.0
  %4750 = vmatprep.subr.mxu0 0.0
  %4751 = vmatpush1.msra.mxu0 0.0
  %4752 = vmatprep.subr.mxu0 0.0
  %4753 = vmatpush1.msra.mxu0 0.0
  %4754 = vmatprep.subr.mxu0 0.0
  %4755 = vmatpush1.msra.mxu0 0.0
  %4756 = vmatprep.subr.mxu0 0.0
  %4757 = vmatpush1.msra.mxu0 0.0
  %4758 = vmatprep.subr.mxu0 0.0
  %4759 = vmatpush1.msra.mxu0 0.0
  %4760 = vmatprep.subr.mxu0 0.0
  %4761 = vmatpush1.msra.mxu0 0.0
  %4762 = vmatprep.subr.mxu0 0.0
  %4763 = vmatpush1.msra.mxu0 0.0
  %4764 = vmatprep.subr.mxu0 0.0
  %4765 = vmatpush1.msra.mxu0 0.0
  %4766 = vmatprep.subr.mxu0 0.0
  %4767 = vmatpush1.msra.mxu0 0.0
  %4768 = vmatprep.subr.mxu0 0.0
  %4769 = vmatpush1.msra.mxu0 0.0
  %4770 = vmatprep.subr.mxu0 0.0
  %4771 = vmatpush1.msra.mxu0 0.0
  %4772 = vmatprep.subr.mxu0 0.0
  %4773 = vmatpush1.msra.mxu0 0.0
  %4774 = vmatprep.subr.mxu0 0.0
  %4775 = vmatpush1.msra.mxu0 0.0
  %4776 = vmatprep.subr.mxu0 0.0
  %4777 = vmatpush1.msra.mxu0 0.0
  %4778 = vmatprep.subr.mxu0 0.0
  %4779 = vmatpush1.msra.mxu0 0.0
  %4780 = vmatprep.subr.mxu0 0.0
  %4781 = vmatpush1.msra.mxu0 0.0
  %4782 = vmatprep.subr.mxu0 0.0
  %4783 = vmatpush1.msra.mxu0 0.0
  %4784 = vmatprep.subr.mxu0 0.0
  %4785 = vmatpush1.msra.mxu0 0.0
  %4786 = vmatprep.subr.mxu0 0.0
  %4787 = vmatpush1.msra.mxu0 0.0
  %4788 = vmatprep.subr.mxu0 0.0
  %4789 = vmatpush1.msra.mxu0 0.0
  %4790 = vmatprep.subr.mxu0 0.0
  %4791 = vmatpush1.msra.mxu0 0.0
  %4792 = vmatprep.mubr.f32.mxu0 0.0
  %4793 = vmatmul.mubr.f32.gmra.mrb[0].mxu0 %v4726
  %v4794 = vpop.f32.mrb[0].mxu0
  %v4795 = vadd.f32 0.0, %v4794
  %v4796 = vpop.f32.mrb[0].mxu0
  %4797 = vdwg.mxu0
  %v4799 = vrot.slane %v4795, 6
  %v4801 = vadd.f32 %v4539, %v4799
  %v4802 = vxor.u32 %v4801, 2147483648
  %v4803 = vmul.f32 %v4802, 1.442695
  %v4804 = vpow.pop %v4803
  %v4805 = vadd.f32 %v4804, 1.0
  %v4806 = vrcp.pop %v4805
  %v4807 = vmul.f32 1.0, %v4806
  %v4808 = vtanh.pop %v4801
  %v4810 = vrot.slane %v4716, 6
  %v4812 = vmul.f32 %v4807, %v4810
  %4814 = vrot.lane.b32.xlu0 %v4808, 96
  %v4815 = vpop.permute.xlu0 %4814
  %v4817 = vmul.f32 %v4807, %v4815
  %4819 = vrot.lane.b32.xlu0 %v4817, 16
  %v4820 = vpop.permute.xlu0 %4819
  %v4822 = vadd.f32 %v4812, %v4820
  %v4823 = vtanh.pop %v4822
  %4825 = vrot.lane.b32.xlu0 %v4823, 32
  %v4826 = vpop.permute.xlu0 %4825
  %v4828 = vmul.f32 %v4807, %v4826
  %v4830 = vrot.slane %v4828, 2
  %4831 = vrot.lane.b32.xlu0 %v4830, 80
  %v4832 = vpop.permute.xlu0 %4831
  %v4833 = vsel %vm4624, %v4832, 0
  %4835 = vmatprep.subr.mxu0 0.0
  %4836 = vmatpush1.msra.mxu0 %v4622
  %4837 = vmatprep.subr.mxu0 0.0
  %4838 = vmatpush1.msra.mxu0 %v4623
  %4839 = vmatprep.subr.mxu0 0.0
  %4840 = vmatpush1.msra.mxu0 0.0
  %4841 = vmatprep.subr.mxu0 0.0
  %4842 = vmatpush1.msra.mxu0 0.0
  %4843 = vmatprep.subr.mxu0 0.0
  %4844 = vmatpush1.msra.mxu0 0.0
  %4845 = vmatprep.subr.mxu0 0.0
  %4846 = vmatpush1.msra.mxu0 0.0
  %4847 = vmatprep.subr.mxu0 0.0
  %4848 = vmatpush1.msra.mxu0 0.0
  %4849 = vmatprep.subr.mxu0 0.0
  %4850 = vmatpush1.msra.mxu0 0.0
  %4851 = vmatprep.subr.mxu0 0.0
  %4852 = vmatpush1.msra.mxu0 0.0
  %4853 = vmatprep.subr.mxu0 0.0
  %4854 = vmatpush1.msra.mxu0 0.0
  %4855 = vmatprep.subr.mxu0 0.0
  %4856 = vmatpush1.msra.mxu0 0.0
  %4857 = vmatprep.subr.mxu0 0.0
  %4858 = vmatpush1.msra.mxu0 0.0
  %4859 = vmatprep.subr.mxu0 0.0
  %4860 = vmatpush1.msra.mxu0 0.0
  %4861 = vmatprep.subr.mxu0 0.0
  %4862 = vmatpush1.msra.mxu0 0.0
  %4863 = vmatprep.subr.mxu0 0.0
  %4864 = vmatpush1.msra.mxu0 0.0
  %4865 = vmatprep.subr.mxu0 0.0
  %4866 = vmatpush1.msra.mxu0 0.0
  %4867 = vmatprep.subr.mxu0 0.0
  %4868 = vmatpush1.msra.mxu0 0.0
  %4869 = vmatprep.subr.mxu0 0.0
  %4870 = vmatpush1.msra.mxu0 0.0
  %4871 = vmatprep.subr.mxu0 0.0
  %4872 = vmatpush1.msra.mxu0 0.0
  %4873 = vmatprep.subr.mxu0 0.0
  %4874 = vmatpush1.msra.mxu0 0.0
  %4875 = vmatprep.subr.mxu0 0.0
  %4876 = vmatpush1.msra.mxu0 0.0
  %4877 = vmatprep.subr.mxu0 0.0
  %4878 = vmatpush1.msra.mxu0 0.0
  %4879 = vmatprep.subr.mxu0 0.0
  %4880 = vmatpush1.msra.mxu0 0.0
  %4881 = vmatprep.subr.mxu0 0.0
  %4882 = vmatpush1.msra.mxu0 0.0
  %4883 = vmatprep.subr.mxu0 0.0
  %4884 = vmatpush1.msra.mxu0 0.0
  %4885 = vmatprep.subr.mxu0 0.0
  %4886 = vmatpush1.msra.mxu0 0.0
  %4887 = vmatprep.subr.mxu0 0.0
  %4888 = vmatpush1.msra.mxu0 0.0
  %4889 = vmatprep.subr.mxu0 0.0
  %4890 = vmatpush1.msra.mxu0 0.0
  %4891 = vmatprep.subr.mxu0 0.0
  %4892 = vmatpush1.msra.mxu0 0.0
  %4893 = vmatprep.subr.mxu0 0.0
  %4894 = vmatpush1.msra.mxu0 0.0
  %4895 = vmatprep.subr.mxu0 0.0
  %4896 = vmatpush1.msra.mxu0 0.0
  %4897 = vmatprep.subr.mxu0 0.0
  %4898 = vmatpush1.msra.mxu0 0.0
  %4899 = vmatprep.mubr.f32.mxu0 0.0
  %4900 = vmatmul.mubr.f32.gmra.mrb[0].mxu0 %v4833
  %v4901 = vpop.f32.mrb[0].mxu0
  %v4902 = vadd.f32 0.0, %v4901
  %v4903 = vpop.f32.mrb[0].mxu0
  %4904 = vdwg.mxu0
  %v4906 = vrot.slane %v4902, 4
  %v4908 = vadd.f32 %v4539, %v4906
  %v4909 = vxor.u32 %v4908, 2147483648
  %v4910 = vmul.f32 %v4909, 1.442695
  %v4911 = vpow.pop %v4910
  %v4912 = vadd.f32 %v4911, 1.0
  %v4913 = vrcp.pop %v4912
  %v4914 = vmul.f32 1.0, %v4913
  %v4915 = vtanh.pop %v4908
  %v4917 = vrot.slane %v4822, 6
  %v4919 = vmul.f32 %v4914, %v4917
  %4921 = vrot.lane.b32.xlu0 %v4915, 96
  %v4922 = vpop.permute.xlu0 %4921
  %v4924 = vmul.f32 %v4914, %v4922
  %4926 = vrot.lane.b32.xlu0 %v4924, 16
  %v4927 = vpop.permute.xlu0 %4926
  %v4929 = vadd.f32 %v4919, %v4927
  %v4930 = vtanh.pop %v4929
  %4932 = vrot.lane.b32.xlu0 %v4930, 32
  %v4933 = vpop.permute.xlu0 %4932
  %v4935 = vmul.f32 %v4914, %v4933
  %v4937 = vrot.slane %v4935, 4
  %4938 = vrot.lane.b32.xlu0 %v4937, 80
  %v4939 = vpop.permute.xlu0 %4938
  %v4940 = vsel %vm4624, %v4939, 0
  %4942 = vmatprep.subr.mxu0 0.0
  %4943 = vmatpush1.msra.mxu0 %v4622
  %4944 = vmatprep.subr.mxu0 0.0
  %4945 = vmatpush1.msra.mxu0 %v4623
  %4946 = vmatprep.subr.mxu0 0.0
  %4947 = vmatpush1.msra.mxu0 0.0
  %4948 = vmatprep.subr.mxu0 0.0
  %4949 = vmatpush1.msra.mxu0 0.0
  %4950 = vmatprep.subr.mxu0 0.0
  %4951 = vmatpush1.msra.mxu0 0.0
  %4952 = vmatprep.subr.mxu0 0.0
  %4953 = vmatpush1.msra.mxu0 0.0
  %4954 = vmatprep.subr.mxu0 0.0
  %4955 = vmatpush1.msra.mxu0 0.0
  %4956 = vmatprep.subr.mxu0 0.0
  %4957 = vmatpush1.msra.mxu0 0.0
  %4958 = vmatprep.subr.mxu0 0.0
  %4959 = vmatpush1.msra.mxu0 0.0
  %4960 = vmatprep.subr.mxu0 0.0
  %4961 = vmatpush1.msra.mxu0 0.0
  %4962 = vmatprep.subr.mxu0 0.0
  %4963 = vmatpush1.msra.mxu0 0.0
  %4964 = vmatprep.subr.mxu0 0.0
  %4965 = vmatpush1.msra.mxu0 0.0
  %4966 = vmatprep.subr.mxu0 0.0
  %4967 = vmatpush1.msra.mxu0 0.0
  %4968 = vmatprep.subr.mxu0 0.0
  %4969 = vmatpush1.msra.mxu0 0.0
  %4970 = vmatprep.subr.mxu0 0.0
  %4971 = vmatpush1.msra.mxu0 0.0
  %4972 = vmatprep.subr.mxu0 0.0
  %4973 = vmatpush1.msra.mxu0 0.0
  %4974 = vmatprep.subr.mxu0 0.0
  %4975 = vmatpush1.msra.mxu0 0.0
  %4976 = vmatprep.subr.mxu0 0.0
  %4977 = vmatpush1.msra.mxu0 0.0
  %4978 = vmatprep.subr.mxu0 0.0
  %4979 = vmatpush1.msra.mxu0 0.0
  %4980 = vmatprep.subr.mxu0 0.0
  %4981 = vmatpush1.msra.mxu0 0.0
  %4982 = vmatprep.subr.mxu0 0.0
  %4983 = vmatpush1.msra.mxu0 0.0
  %4984 = vmatprep.subr.mxu0 0.0
  %4985 = vmatpush1.msra.mxu0 0.0
  %4986 = vmatprep.subr.mxu0 0.0
  %4987 = vmatpush1.msra.mxu0 0.0
  %4988 = vmatprep.subr.mxu0 0.0
  %4989 = vmatpush1.msra.mxu0 0.0
  %4990 = vmatprep.subr.mxu0 0.0
  %4991 = vmatpush1.msra.mxu0 0.0
  %4992 = vmatprep.subr.mxu0 0.0
  %4993 = vmatpush1.msra.mxu0 0.0
  %4994 = vmatprep.subr.mxu0 0.0
  %4995 = vmatpush1.msra.mxu0 0.0
  %4996 = vmatprep.subr.mxu0 0.0
  %4997 = vmatpush1.msra.mxu0 0.0
  %4998 = vmatprep.subr.mxu0 0.0
  %4999 = vmatpush1.msra.mxu0 0.0
  %5000 = vmatprep.subr.mxu0 0.0
  %5001 = vmatpush1.msra.mxu0 0.0
  %5002 = vmatprep.subr.mxu0 0.0
  %5003 = vmatpush1.msra.mxu0 0.0
  %5004 = vmatprep.subr.mxu0 0.0
  %5005 = vmatpush1.msra.mxu0 0.0
  %5006 = vmatprep.mubr.f32.mxu0 0.0
  %5007 = vmatmul.mubr.f32.gmra.mrb[0].mxu0 %v4940
  %v5008 = vpop.f32.mrb[0].mxu0
  %v5009 = vadd.f32 0.0, %v5008
  %v5010 = vpop.f32.mrb[0].mxu0
  %5011 = vdwg.mxu0
  %v5013 = vrot.slane %v5009, 2
  %v5015 = vadd.f32 %v4539, %v5013
  %v5016 = vxor.u32 %v5015, 2147483648
  %v5017 = vmul.f32 %v5016, 1.442695
  %v5018 = vpow.pop %v5017
  %v5019 = vadd.f32 %v5018, 1.0
  %v5020 = vrcp.pop %v5019
  %v5021 = vmul.f32 1.0, %v5020
  %v5022 = vtanh.pop %v5015
  %v5024 = vrot.slane %v4929, 6
  %v5026 = vmul.f32 %v5021, %v5024
  %5028 = vrot.lane.b32.xlu0 %v5022, 96
  %v5029 = vpop.permute.xlu0 %5028
  %v5031 = vmul.f32 %v5021, %v5029
  %5033 = vrot.lane.b32.xlu0 %v5031, 16
  %v5034 = vpop.permute.xlu0 %5033
  %v5036 = vadd.f32 %v5026, %v5034
  %v5037 = vtanh.pop %v5036
  %5039 = vrot.lane.b32.xlu0 %v5037, 32
  %v5040 = vpop.permute.xlu0 %5039
  %v5042 = vmul.f32 %v5021, %v5040
  %v5043 = vlaneseq
  %v5044 = vshrl.u32 %v5043, 7
  %v5045 = vsub.s32 0, %v5044
  %v5046 = vrot.slane %v33, %v5045
  %5048 = vrot.lane.b32.xlu0 %v5046, 48
  %v5049 = vpop.permute.xlu0 %5048
  %v5051 = vmul.f32 %v5042, %v5049
  %5053 = vrot.lane.b32.xlu0 %v5051, 80
  %v5054 = vpop.permute.xlu0 %5053
  %vm5056 = vcmask 130054
  %v5057 = vsel %vm5056, %v5054, 0.0
  %5058 = vadd.xlane.f32.xlu0 %v5057
  %v5059 = vpop.xlane.xlu0 %5058
  %v5060 = vlaneseq
  %v5061 = vshrl.u32 %v5060, 7
  %v5062 = vsub.s32 0, %v5061
  %v5063 = vrot.slane %v34, %v5062
  %v5064 = vadd.f32 %v5059, %v5063
  %vm5065 = vcmask 7174
  %5066 = vst.msk [vmem:[%s8 - $0x6] sm:$0xc0] %vm5065, %v5064
  // Predicated region
  $region34: #{rnn_score_forward.1} parent=0 // pred_check
    _
  $region35: #{rnn_score_forward.1} parent=0 // pred_check_branch
    %5068 = sbr.rel (0) target = $region37
  $region36: #{rnn_score_forward.1} parent=0 // pred_region
    _
  $region37: #{rnn_score_forward.1} parent=0 // pred_fallthru
    _
  // Predicated region
  $region38: #{rnn_score_forward.1} parent=0 // pred_check
    _
  $region39: #{rnn_score_forward.1} parent=0 // pred_check_branch
    %5070 = sbr.rel (0) target = $region41
  $region40: #{rnn_score_forward.1} parent=0 // pred_region
    _
  $region41: #{rnn_score_forward.1} parent=0 // pred_fallthru
    _

</llo_original>
